<compile_context>
chip_gen: v7x
topology: tpu7x:2x2x1
jax: 0.10.0
libtpu: 0.0.40
codegen_flags: <defaults>
</compile_context>

<pallas_src>
import jax
import jax.numpy as jnp
from jax.experimental import pallas as pl
from jax.experimental.pallas import tpu as pltpu  # noqa: F401  (kept for TPU backend import)


# -----------------------------------------------------------------------------
# Kernel: one invocation runs the one-time init + all internal ticks.
# -----------------------------------------------------------------------------
def ctm_kernel(x_ref, w_init_ref, b_init_ref, w_tick_ref, w_head_ref, b_head_ref,
               out_ref):
    f32 = jnp.float32
    B = x_ref.shape[0]
    T, _, out_w = out_ref.shape                  # iterations, batch, output_dim + 1
    d_out = w_head_ref.shape[0]                  # sync_out width
    H = w_tick_ref.shape[1] - d_out              # hidden_size
    MH = w_tick_ref.shape[0] - H                 # memory_length * hidden_size

    # ---- one-time init: single fused matmul ---------------------------------
    # columns of z0: [ processed_input (H) | attn_const (H) | sync bias (d_out) ]
    #   attn_const = state-updater contribution of the (iteration-invariant)
    #   attention output, pre-folded with the updater bias.
    z0 = jnp.dot(x_ref[...], w_init_ref[...],
                 preferred_element_type=f32) + b_init_ref[...]
    hidden0 = jnp.maximum(z0[:, :H], 0.0)        # relu(processed_input)
    bias_tick = z0[:, H:]                        # (B, H + d_out), reused every tick

    # carried state: [ flat_trace (time-major, newest last) | hidden ]
    ext0 = jnp.concatenate([jnp.zeros((B, MH), f32), hidden0], axis=1)

    # loop-invariant small constants
    w_head = w_head_ref[...]
    b_head = b_head_ref[...]
    cert_lane = jax.lax.broadcasted_iota(jnp.int32, (B, out_w), 1) == (out_w - 1)

    # ---- internal ticks (state carried in vregs, fully unrolled) ------------
    def tick(i, ext):
        # one fused MXU call:
        #   z[:, :H]  = hidden @ W_upd_h + attn_const          (state-updater pre-act)
        #   z[:, H:]  = flat_trace @ W_sync_out + b_sync       (sync-layer pre-act)
        z = jnp.dot(ext, w_tick_ref[...], preferred_element_type=f32) + bias_tick

        new_hidden = jnp.maximum(z[:, :H], 0.0)
        # TODO(synk): tanh is the classical surrogate for the quantum sync layer.
        sync_out = jnp.tanh(z[:, H:])

        # fused output_projector ++ certainty_head; sigmoid only on the last lane
        head = jnp.dot(sync_out, w_head, preferred_element_type=f32) + b_head
        head = jnp.where(cert_lane, jax.nn.sigmoid(head), head)
        out_ref[i] = head

        # shift the trace (drop oldest slot), append new hidden, carry new hidden
        return jnp.concatenate([ext[:, H:MH], new_hidden, new_hidden], axis=1)

    jax.lax.fori_loop(0, T, tick, ext0, unroll=True)


# -----------------------------------------------------------------------------
# Parameter construction (deterministic, synthetic) + exact host-side folds
# -----------------------------------------------------------------------------
def make_params(key, *, input_size, hidden_size, output_dim, num_mem_slots,
                num_qubits_per_slot, memory_length):
    H, M = hidden_size, memory_length
    MH = H * M
    # TODO(synk): num_sync_pairs stands in for len(sync_layer.correlation_connectors)
    num_sync_pairs = 2 * num_mem_slots * num_qubits_per_slot
    d_action = num_sync_pairs // 2
    d_out = num_sync_pairs - d_action

    keys = iter(jax.random.split(key, 32))

    def lin(in_f, out_f):
        w = (jax.random.normal(next(keys), (in_f, out_f)) * (in_f ** -0.5)).astype(jnp.float32)
        b = (jax.random.normal(next(keys), (1, out_f)) * 0.01).astype(jnp.float32)
        return w, b

    # logical module parameters (weights stored as (in, out))
    wi, bi = lin(input_size, H)                      # input_layer
    sync_w, sync_b = lin(MH, num_sync_pairs)         # sync layer surrogate
    sync_wo, sync_bo = sync_w[:, d_action:], sync_b[:, d_action:]
    attn_v_w, attn_v_b = lin(H, H)                   # MHA V in-projection
    attn_out_w, attn_out_b = lin(H, H)               # MHA out-projection
    outp_w, outp_b = lin(d_out, output_dim)          # output_projector
    cert_w, cert_b = lin(d_out, 1)                   # certainty_head Linear
    upd_w, upd_b = lin(2 * H, H)                     # state_updater Linear
    upd_wh, upd_wa = upd_w[:H], upd_w[H:]
    # NOTE: q_trace_processors / q_memory_models / q_output_mappers parameters are
    # intentionally not generated: their output is never used by the forward pass.

    # ---- exact folds (run once on host) --------------------------------------
    # single-KV-token attention: attn = out_proj(v_proj(processed));
    # its state-updater contribution: attn @ upd_wa + upd_b == processed @ w_fold + b_fold
    w_fold = attn_v_w @ attn_out_w @ upd_wa
    b_fold = attn_v_b @ attn_out_w @ upd_wa + attn_out_b @ upd_wa + upd_b

    # init fusion: z0 = x @ w_init + b_init
    #   [:, :H]          processed_input
    #   [:, H:2H]        attn_const  (attention contribution + updater bias)
    #   [:, 2H:2H+d_out] sync-layer output bias (broadcast over batch)
    w_init = jnp.concatenate(
        [wi, wi @ w_fold, jnp.zeros((input_size, d_out), jnp.float32)], axis=1)
    b_init = jnp.concatenate([bi, bi @ w_fold + b_fold, sync_bo], axis=1)

    # per-tick fused RHS: LHS is [flat_trace (MH) | hidden (H)]
    #   output cols = [state-updater pre-act (H) | sync_out pre-act (d_out)]
    w_tick = jnp.zeros((MH + H, H + d_out), jnp.float32)
    w_tick = w_tick.at[MH:, :H].set(upd_wh)
    w_tick = w_tick.at[:MH, H:].set(sync_wo)

    # fused output_projector ++ certainty_head
    w_head = jnp.concatenate([outp_w, cert_w], axis=1)
    b_head = jnp.concatenate([outp_b, cert_b], axis=1)

    params = dict(w_init=w_init, b_init=b_init, w_tick=w_tick,
                  w_head=w_head, b_head=b_head)
    meta = dict(hidden_size=H, memory_length=M, output_dim=output_dim,
                d_action=d_action, d_out=d_out)
    return params, meta


# -----------------------------------------------------------------------------
# Wrapper
# -----------------------------------------------------------------------------
def hybrid_ctm_forward(x, params, meta, iterations=10):
    B = x.shape[0]
    out_dim = meta["output_dim"]
    out_w = out_dim + 1

    # pad the batch to a sublane multiple (8); padded rows are computed & discarded
    B_pad = ((B + 7) // 8) * 8
    if B_pad != B:
        x = jnp.pad(x, ((0, B_pad - B), (0, 0)))

    out = pl.pallas_call(
        ctm_kernel,
        out_shape=jax.ShapeDtypeStruct((iterations, B_pad, out_w), jnp.float32),
    )(x, params["w_init"], params["b_init"], params["w_tick"],
      params["w_head"], params["b_head"])

    out = out[:, :B, :]
    # match torch output layout: (B, output_dim, iterations), (B, iterations)
    all_predictions = jnp.transpose(out[..., :out_dim], (1, 2, 0))
    all_certainties = jnp.transpose(out[..., out_dim], (1, 0))
    return all_predictions, all_certainties


# -----------------------------------------------------------------------------
# Demo
# -----------------------------------------------------------------------------
if __name__ == "__main__":
    key = jax.random.PRNGKey(0)
    k_x, k_p = jax.random.split(key)

    B = 2
    input_size = 16
    hidden_size = 32
    output_dim = 4
    num_mem_slots = 2
    num_qubits_per_slot = 2
    memory_length = 8
    iterations = 10

    params, meta = make_params(
        k_p,
        input_size=input_size,
        hidden_size=hidden_size,
        output_dim=output_dim,
        num_mem_slots=num_mem_slots,
        num_qubits_per_slot=num_qubits_per_slot,
        memory_length=memory_length,
    )

    x = jax.random.normal(k_x, (B, input_size), dtype=jnp.float32)

    preds, certs = hybrid_ctm_forward(x, params, meta, iterations=iterations)
    jax.block_until_ready((preds, certs))

    assert preds.shape == (B, output_dim, iterations)
    assert certs.shape == (B, iterations)
    assert bool(jnp.all(jnp.isfinite(preds))) and bool(jnp.all(jnp.isfinite(certs)))
    assert bool(jnp.all(certs >= 0.0)) and bool(jnp.all(certs <= 1.0))
    print("KERNEL_OK")
</pallas_src>

<mosaic_0001>
module attributes {stable_mosaic.version = 11 : i64} {
  func.func @ctm_kernel(%arg0: memref<8x16xf32, #tpu.memory_space<vmem>>, %arg1: memref<16x68xf32, #tpu.memory_space<vmem>>, %arg2: memref<1x68xf32, #tpu.memory_space<vmem>>, %arg3: memref<288x36xf32, #tpu.memory_space<vmem>>, %arg4: memref<4x5xf32, #tpu.memory_space<vmem>>, %arg5: memref<1x5xf32, #tpu.memory_space<vmem>>, %arg6: memref<10x8x5xf32, #tpu.memory_space<vmem>>) attributes {dimension_semantics = [], scalar_prefetch = 0 : i64, scratch_operands = 0 : i64, tpu.core_type = #tpu.core_type<tc>} {
    %c0 = arith.constant 0 : index
    %c0_0 = arith.constant 0 : index
    %0 = vector.load %arg0[%c0, %c0_0] : memref<8x16xf32, #tpu.memory_space<vmem>>, vector<8x16xf32>
    %c0_1 = arith.constant 0 : index
    %c0_2 = arith.constant 0 : index
    %1 = vector.load %arg1[%c0_1, %c0_2] : memref<16x68xf32, #tpu.memory_space<vmem>>, vector<16x68xf32>
    %cst = arith.constant dense<0.000000e+00> : vector<8x68xf32>
    %2 = tpu.matmul %0, %1, %cst {dimension_numbers = #tpu.dot_dimension_numbers<[1], [0], [0], [1], [0, 0, 1, 1], [], []>} : vector<8x16xf32>, vector<16x68xf32>, vector<8x68xf32> -> vector<8x68xf32>
    %c0_3 = arith.constant 0 : index
    %c0_4 = arith.constant 0 : index
    %3 = vector.load %arg2[%c0_3, %c0_4] : memref<1x68xf32, #tpu.memory_space<vmem>>, vector<1x68xf32>
    %4 = vector.broadcast %3 : vector<1x68xf32> to vector<8x68xf32>
    %5 = arith.addf %2, %4 : vector<8x68xf32>
    %6 = vector.extract_strided_slice %5 {offsets = [0, 0], sizes = [8, 32], strides = [1, 1]} : vector<8x68xf32> to vector<8x32xf32>
    %cst_5 = arith.constant 0.000000e+00 : f32
    %7 = vector.broadcast %cst_5 : f32 to vector<8x32xf32>
    %8 = arith.maximumf %6, %7 : vector<8x32xf32>
    %9 = vector.extract_strided_slice %5 {offsets = [0, 32], sizes = [8, 36], strides = [1, 1]} : vector<8x68xf32> to vector<8x36xf32>
    %cst_6 = arith.constant 0.000000e+00 : f32
    %10 = vector.broadcast %cst_6 : f32 to vector<8x256xf32>
    %11 = tpu.concatenate %10, %8 in 1 : vector<8x256xf32>, vector<8x32xf32> -> vector<8x288xf32>
    %c0_7 = arith.constant 0 : index
    %c0_8 = arith.constant 0 : index
    %12 = vector.load %arg4[%c0_7, %c0_8] : memref<4x5xf32, #tpu.memory_space<vmem>>, vector<4x5xf32>
    %c0_9 = arith.constant 0 : index
    %c0_10 = arith.constant 0 : index
    %13 = vector.load %arg5[%c0_9, %c0_10] : memref<1x5xf32, #tpu.memory_space<vmem>>, vector<1x5xf32>
    %14 = tpu.iota {dimensions = array<i32: 1>} : vector<8x5xi32>
    %c4_i32 = arith.constant 4 : i32
    %15 = vector.broadcast %c4_i32 : i32 to vector<8x5xi32>
    %16 = arith.cmpi eq, %14, %15 : vector<8x5xi32>
    %c0_i32 = arith.constant 0 : i32
    %c0_11 = arith.constant 0 : index
    %c0_12 = arith.constant 0 : index
    %17 = vector.load %arg3[%c0_11, %c0_12] : memref<288x36xf32, #tpu.memory_space<vmem>>, vector<288x36xf32>
    %cst_13 = arith.constant dense<0.000000e+00> : vector<8x36xf32>
    %18 = tpu.matmul %11, %17, %cst_13 {dimension_numbers = #tpu.dot_dimension_numbers<[1], [0], [0], [1], [0, 0, 1, 1], [], []>} : vector<8x288xf32>, vector<288x36xf32>, vector<8x36xf32> -> vector<8x36xf32>
    %19 = arith.addf %18, %9 : vector<8x36xf32>
    %20 = vector.extract_strided_slice %19 {offsets = [0, 0], sizes = [8, 32], strides = [1, 1]} : vector<8x36xf32> to vector<8x32xf32>
    %cst_14 = arith.constant 0.000000e+00 : f32
    %21 = vector.broadcast %cst_14 : f32 to vector<8x32xf32>
    %22 = arith.maximumf %20, %21 : vector<8x32xf32>
    %23 = vector.extract_strided_slice %19 {offsets = [0, 32], sizes = [8, 4], strides = [1, 1]} : vector<8x36xf32> to vector<8x4xf32>
    %24 = math.tanh %23 : vector<8x4xf32>
    %cst_15 = arith.constant dense<0.000000e+00> : vector<8x5xf32>
    %25 = tpu.matmul %24, %12, %cst_15 {dimension_numbers = #tpu.dot_dimension_numbers<[1], [0], [0], [1], [0, 0, 1, 1], [], []>} : vector<8x4xf32>, vector<4x5xf32>, vector<8x5xf32> -> vector<8x5xf32>
    %26 = vector.broadcast %13 : vector<1x5xf32> to vector<8x5xf32>
    %27 = arith.addf %25, %26 : vector<8x5xf32>
    %28 = arith.negf %27 : vector<8x5xf32>
    %29 = math.exp %28 : vector<8x5xf32>
    %cst_16 = arith.constant 1.000000e+00 : f32
    %30 = vector.broadcast %cst_16 : f32 to vector<8x5xf32>
    %31 = arith.addf %30, %29 : vector<8x5xf32>
    %32 = arith.divf %30, %31 : vector<8x5xf32>
    %33 = arith.select %16, %32, %27 : vector<8x5xi1>, vector<8x5xf32>
    %34 = arith.index_cast %c0_i32 : i32 to index
    %c0_17 = arith.constant 0 : index
    %c0_18 = arith.constant 0 : index
    %35 = vector.load %arg6[%34, %c0_17, %c0_18] : memref<10x8x5xf32, #tpu.memory_space<vmem>>, vector<1x8x5xf32>
    %36 = vector.shape_cast %35 : vector<1x8x5xf32> to vector<8x5xf32>
    %37 = vector.shape_cast %33 : vector<8x5xf32> to vector<1x8x5xf32>
    tpu.vector_store %arg6[%34, %c0_17, %c0_18], %37 {strides = array<i32>} : memref<10x8x5xf32, #tpu.memory_space<vmem>>, vector<1x8x5xf32>,
    %38 = vector.extract_strided_slice %11 {offsets = [0, 32], sizes = [8, 224], strides = [1, 1]} : vector<8x288xf32> to vector<8x224xf32>
    %39 = tpu.concatenate %38, %22, %22 in 1 : vector<8x224xf32>, vector<8x32xf32>, vector<8x32xf32> -> vector<8x288xf32>
    %c1_i32 = arith.constant 1 : i32
    %c0_19 = arith.constant 0 : index
    %c0_20 = arith.constant 0 : index
    %40 = vector.load %arg3[%c0_19, %c0_20] : memref<288x36xf32, #tpu.memory_space<vmem>>, vector<288x36xf32>
    %cst_21 = arith.constant dense<0.000000e+00> : vector<8x36xf32>
    %41 = tpu.matmul %39, %40, %cst_21 {dimension_numbers = #tpu.dot_dimension_numbers<[1], [0], [0], [1], [0, 0, 1, 1], [], []>} : vector<8x288xf32>, vector<288x36xf32>, vector<8x36xf32> -> vector<8x36xf32>
    %42 = arith.addf %41, %9 : vector<8x36xf32>
    %43 = vector.extract_strided_slice %42 {offsets = [0, 0], sizes = [8, 32], strides = [1, 1]} : vector<8x36xf32> to vector<8x32xf32>
    %cst_22 = arith.constant 0.000000e+00 : f32
    %44 = vector.broadcast %cst_22 : f32 to vector<8x32xf32>
    %45 = arith.maximumf %43, %44 : vector<8x32xf32>
    %46 = vector.extract_strided_slice %42 {offsets = [0, 32], sizes = [8, 4], strides = [1, 1]} : vector<8x36xf32> to vector<8x4xf32>
    %47 = math.tanh %46 : vector<8x4xf32>
    %cst_23 = arith.constant dense<0.000000e+00> : vector<8x5xf32>
    %48 = tpu.matmul %47, %12, %cst_23 {dimension_numbers = #tpu.dot_dimension_numbers<[1], [0], [0], [1], [0, 0, 1, 1], [], []>} : vector<8x4xf32>, vector<4x5xf32>, vector<8x5xf32> -> vector<8x5xf32>
    %49 = vector.broadcast %13 : vector<1x5xf32> to vector<8x5xf32>
    %50 = arith.addf %48, %49 : vector<8x5xf32>
    %51 = arith.negf %50 : vector<8x5xf32>
    %52 = math.exp %51 : vector<8x5xf32>
    %cst_24 = arith.constant 1.000000e+00 : f32
    %53 = vector.broadcast %cst_24 : f32 to vector<8x5xf32>
    %54 = arith.addf %53, %52 : vector<8x5xf32>
    %55 = arith.divf %53, %54 : vector<8x5xf32>
    %56 = arith.select %16, %55, %50 : vector<8x5xi1>, vector<8x5xf32>
    %57 = arith.index_cast %c1_i32 : i32 to index
    %c0_25 = arith.constant 0 : index
    %c0_26 = arith.constant 0 : index
    %58 = vector.load %arg6[%57, %c0_25, %c0_26] : memref<10x8x5xf32, #tpu.memory_space<vmem>>, vector<1x8x5xf32>
    %59 = vector.shape_cast %58 : vector<1x8x5xf32> to vector<8x5xf32>
    %60 = vector.shape_cast %56 : vector<8x5xf32> to vector<1x8x5xf32>
    tpu.vector_store %arg6[%57, %c0_25, %c0_26], %60 {strides = array<i32>} : memref<10x8x5xf32, #tpu.memory_space<vmem>>, vector<1x8x5xf32>,
    %61 = vector.extract_strided_slice %39 {offsets = [0, 32], sizes = [8, 224], strides = [1, 1]} : vector<8x288xf32> to vector<8x224xf32>
    %62 = tpu.concatenate %61, %45, %45 in 1 : vector<8x224xf32>, vector<8x32xf32>, vector<8x32xf32> -> vector<8x288xf32>
    %c2_i32 = arith.constant 2 : i32
    %c0_27 = arith.constant 0 : index
    %c0_28 = arith.constant 0 : index
    %63 = vector.load %arg3[%c0_27, %c0_28] : memref<288x36xf32, #tpu.memory_space<vmem>>, vector<288x36xf32>
    %cst_29 = arith.constant dense<0.000000e+00> : vector<8x36xf32>
    %64 = tpu.matmul %62, %63, %cst_29 {dimension_numbers = #tpu.dot_dimension_numbers<[1], [0], [0], [1], [0, 0, 1, 1], [], []>} : vector<8x288xf32>, vector<288x36xf32>, vector<8x36xf32> -> vector<8x36xf32>
    %65 = arith.addf %64, %9 : vector<8x36xf32>
    %66 = vector.extract_strided_slice %65 {offsets = [0, 0], sizes = [8, 32], strides = [1, 1]} : vector<8x36xf32> to vector<8x32xf32>
    %cst_30 = arith.constant 0.000000e+00 : f32
    %67 = vector.broadcast %cst_30 : f32 to vector<8x32xf32>
    %68 = arith.maximumf %66, %67 : vector<8x32xf32>
    %69 = vector.extract_strided_slice %65 {offsets = [0, 32], sizes = [8, 4], strides = [1, 1]} : vector<8x36xf32> to vector<8x4xf32>
    %70 = math.tanh %69 : vector<8x4xf32>
    %cst_31 = arith.constant dense<0.000000e+00> : vector<8x5xf32>
    %71 = tpu.matmul %70, %12, %cst_31 {dimension_numbers = #tpu.dot_dimension_numbers<[1], [0], [0], [1], [0, 0, 1, 1], [], []>} : vector<8x4xf32>, vector<4x5xf32>, vector<8x5xf32> -> vector<8x5xf32>
    %72 = vector.broadcast %13 : vector<1x5xf32> to vector<8x5xf32>
    %73 = arith.addf %71, %72 : vector<8x5xf32>
    %74 = arith.negf %73 : vector<8x5xf32>
    %75 = math.exp %74 : vector<8x5xf32>
    %cst_32 = arith.constant 1.000000e+00 : f32
    %76 = vector.broadcast %cst_32 : f32 to vector<8x5xf32>
    %77 = arith.addf %76, %75 : vector<8x5xf32>
    %78 = arith.divf %76, %77 : vector<8x5xf32>
    %79 = arith.select %16, %78, %73 : vector<8x5xi1>, vector<8x5xf32>
    %80 = arith.index_cast %c2_i32 : i32 to index
    %c0_33 = arith.constant 0 : index
    %c0_34 = arith.constant 0 : index
    %81 = vector.load %arg6[%80, %c0_33, %c0_34] : memref<10x8x5xf32, #tpu.memory_space<vmem>>, vector<1x8x5xf32>
    %82 = vector.shape_cast %81 : vector<1x8x5xf32> to vector<8x5xf32>
    %83 = vector.shape_cast %79 : vector<8x5xf32> to vector<1x8x5xf32>
    tpu.vector_store %arg6[%80, %c0_33, %c0_34], %83 {strides = array<i32>} : memref<10x8x5xf32, #tpu.memory_space<vmem>>, vector<1x8x5xf32>,
    %84 = vector.extract_strided_slice %62 {offsets = [0, 32], sizes = [8, 224], strides = [1, 1]} : vector<8x288xf32> to vector<8x224xf32>
    %85 = tpu.concatenate %84, %68, %68 in 1 : vector<8x224xf32>, vector<8x32xf32>, vector<8x32xf32> -> vector<8x288xf32>
    %c3_i32 = arith.constant 3 : i32
    %c0_35 = arith.constant 0 : index
    %c0_36 = arith.constant 0 : index
    %86 = vector.load %arg3[%c0_35, %c0_36] : memref<288x36xf32, #tpu.memory_space<vmem>>, vector<288x36xf32>
    %cst_37 = arith.constant dense<0.000000e+00> : vector<8x36xf32>
    %87 = tpu.matmul %85, %86, %cst_37 {dimension_numbers = #tpu.dot_dimension_numbers<[1], [0], [0], [1], [0, 0, 1, 1], [], []>} : vector<8x288xf32>, vector<288x36xf32>, vector<8x36xf32> -> vector<8x36xf32>
    %88 = arith.addf %87, %9 : vector<8x36xf32>
    %89 = vector.extract_strided_slice %88 {offsets = [0, 0], sizes = [8, 32], strides = [1, 1]} : vector<8x36xf32> to vector<8x32xf32>
    %cst_38 = arith.constant 0.000000e+00 : f32
    %90 = vector.broadcast %cst_38 : f32 to vector<8x32xf32>
    %91 = arith.maximumf %89, %90 : vector<8x32xf32>
    %92 = vector.extract_strided_slice %88 {offsets = [0, 32], sizes = [8, 4], strides = [1, 1]} : vector<8x36xf32> to vector<8x4xf32>
    %93 = math.tanh %92 : vector<8x4xf32>
    %cst_39 = arith.constant dense<0.000000e+00> : vector<8x5xf32>
    %94 = tpu.matmul %93, %12, %cst_39 {dimension_numbers = #tpu.dot_dimension_numbers<[1], [0], [0], [1], [0, 0, 1, 1], [], []>} : vector<8x4xf32>, vector<4x5xf32>, vector<8x5xf32> -> vector<8x5xf32>
    %95 = vector.broadcast %13 : vector<1x5xf32> to vector<8x5xf32>
    %96 = arith.addf %94, %95 : vector<8x5xf32>
    %97 = arith.negf %96 : vector<8x5xf32>
    %98 = math.exp %97 : vector<8x5xf32>
    %cst_40 = arith.constant 1.000000e+00 : f32
    %99 = vector.broadcast %cst_40 : f32 to vector<8x5xf32>
    %100 = arith.addf %99, %98 : vector<8x5xf32>
    %101 = arith.divf %99, %100 : vector<8x5xf32>
    %102 = arith.select %16, %101, %96 : vector<8x5xi1>, vector<8x5xf32>
    %103 = arith.index_cast %c3_i32 : i32 to index
    %c0_41 = arith.constant 0 : index
    %c0_42 = arith.constant 0 : index
    %104 = vector.load %arg6[%103, %c0_41, %c0_42] : memref<10x8x5xf32, #tpu.memory_space<vmem>>, vector<1x8x5xf32>
    %105 = vector.shape_cast %104 : vector<1x8x5xf32> to vector<8x5xf32>
    %106 = vector.shape_cast %102 : vector<8x5xf32> to vector<1x8x5xf32>
    tpu.vector_store %arg6[%103, %c0_41, %c0_42], %106 {strides = array<i32>} : memref<10x8x5xf32, #tpu.memory_space<vmem>>, vector<1x8x5xf32>,
    %107 = vector.extract_strided_slice %85 {offsets = [0, 32], sizes = [8, 224], strides = [1, 1]} : vector<8x288xf32> to vector<8x224xf32>
    %108 = tpu.concatenate %107, %91, %91 in 1 : vector<8x224xf32>, vector<8x32xf32>, vector<8x32xf32> -> vector<8x288xf32>
    %c4_i32_43 = arith.constant 4 : i32
    %c0_44 = arith.constant 0 : index
    %c0_45 = arith.constant 0 : index
    %109 = vector.load %arg3[%c0_44, %c0_45] : memref<288x36xf32, #tpu.memory_space<vmem>>, vector<288x36xf32>
    %cst_46 = arith.constant dense<0.000000e+00> : vector<8x36xf32>
    %110 = tpu.matmul %108, %109, %cst_46 {dimension_numbers = #tpu.dot_dimension_numbers<[1], [0], [0], [1], [0, 0, 1, 1], [], []>} : vector<8x288xf32>, vector<288x36xf32>, vector<8x36xf32> -> vector<8x36xf32>
    %111 = arith.addf %110, %9 : vector<8x36xf32>
    %112 = vector.extract_strided_slice %111 {offsets = [0, 0], sizes = [8, 32], strides = [1, 1]} : vector<8x36xf32> to vector<8x32xf32>
    %cst_47 = arith.constant 0.000000e+00 : f32
    %113 = vector.broadcast %cst_47 : f32 to vector<8x32xf32>
    %114 = arith.maximumf %112, %113 : vector<8x32xf32>
    %115 = vector.extract_strided_slice %111 {offsets = [0, 32], sizes = [8, 4], strides = [1, 1]} : vector<8x36xf32> to vector<8x4xf32>
    %116 = math.tanh %115 : vector<8x4xf32>
    %cst_48 = arith.constant dense<0.000000e+00> : vector<8x5xf32>
    %117 = tpu.matmul %116, %12, %cst_48 {dimension_numbers = #tpu.dot_dimension_numbers<[1], [0], [0], [1], [0, 0, 1, 1], [], []>} : vector<8x4xf32>, vector<4x5xf32>, vector<8x5xf32> -> vector<8x5xf32>
    %118 = vector.broadcast %13 : vector<1x5xf32> to vector<8x5xf32>
    %119 = arith.addf %117, %118 : vector<8x5xf32>
    %120 = arith.negf %119 : vector<8x5xf32>
    %121 = math.exp %120 : vector<8x5xf32>
    %cst_49 = arith.constant 1.000000e+00 : f32
    %122 = vector.broadcast %cst_49 : f32 to vector<8x5xf32>
    %123 = arith.addf %122, %121 : vector<8x5xf32>
    %124 = arith.divf %122, %123 : vector<8x5xf32>
    %125 = arith.select %16, %124, %119 : vector<8x5xi1>, vector<8x5xf32>
    %126 = arith.index_cast %c4_i32_43 : i32 to index
    %c0_50 = arith.constant 0 : index
    %c0_51 = arith.constant 0 : index
    %127 = vector.load %arg6[%126, %c0_50, %c0_51] : memref<10x8x5xf32, #tpu.memory_space<vmem>>, vector<1x8x5xf32>
    %128 = vector.shape_cast %127 : vector<1x8x5xf32> to vector<8x5xf32>
    %129 = vector.shape_cast %125 : vector<8x5xf32> to vector<1x8x5xf32>
    tpu.vector_store %arg6[%126, %c0_50, %c0_51], %129 {strides = array<i32>} : memref<10x8x5xf32, #tpu.memory_space<vmem>>, vector<1x8x5xf32>,
    %130 = vector.extract_strided_slice %108 {offsets = [0, 32], sizes = [8, 224], strides = [1, 1]} : vector<8x288xf32> to vector<8x224xf32>
    %131 = tpu.concatenate %130, %114, %114 in 1 : vector<8x224xf32>, vector<8x32xf32>, vector<8x32xf32> -> vector<8x288xf32>
    %c5_i32 = arith.constant 5 : i32
    %c0_52 = arith.constant 0 : index
    %c0_53 = arith.constant 0 : index
    %132 = vector.load %arg3[%c0_52, %c0_53] : memref<288x36xf32, #tpu.memory_space<vmem>>, vector<288x36xf32>
    %cst_54 = arith.constant dense<0.000000e+00> : vector<8x36xf32>
    %133 = tpu.matmul %131, %132, %cst_54 {dimension_numbers = #tpu.dot_dimension_numbers<[1], [0], [0], [1], [0, 0, 1, 1], [], []>} : vector<8x288xf32>, vector<288x36xf32>, vector<8x36xf32> -> vector<8x36xf32>
    %134 = arith.addf %133, %9 : vector<8x36xf32>
    %135 = vector.extract_strided_slice %134 {offsets = [0, 0], sizes = [8, 32], strides = [1, 1]} : vector<8x36xf32> to vector<8x32xf32>
    %cst_55 = arith.constant 0.000000e+00 : f32
    %136 = vector.broadcast %cst_55 : f32 to vector<8x32xf32>
    %137 = arith.maximumf %135, %136 : vector<8x32xf32>
    %138 = vector.extract_strided_slice %134 {offsets = [0, 32], sizes = [8, 4], strides = [1, 1]} : vector<8x36xf32> to vector<8x4xf32>
    %139 = math.tanh %138 : vector<8x4xf32>
    %cst_56 = arith.constant dense<0.000000e+00> : vector<8x5xf32>
    %140 = tpu.matmul %139, %12, %cst_56 {dimension_numbers = #tpu.dot_dimension_numbers<[1], [0], [0], [1], [0, 0, 1, 1], [], []>} : vector<8x4xf32>, vector<4x5xf32>, vector<8x5xf32> -> vector<8x5xf32>
    %141 = vector.broadcast %13 : vector<1x5xf32> to vector<8x5xf32>
    %142 = arith.addf %140, %141 : vector<8x5xf32>
    %143 = arith.negf %142 : vector<8x5xf32>
    %144 = math.exp %143 : vector<8x5xf32>
    %cst_57 = arith.constant 1.000000e+00 : f32
    %145 = vector.broadcast %cst_57 : f32 to vector<8x5xf32>
    %146 = arith.addf %145, %144 : vector<8x5xf32>
    %147 = arith.divf %145, %146 : vector<8x5xf32>
    %148 = arith.select %16, %147, %142 : vector<8x5xi1>, vector<8x5xf32>
    %149 = arith.index_cast %c5_i32 : i32 to index
    %c0_58 = arith.constant 0 : index
    %c0_59 = arith.constant 0 : index
    %150 = vector.load %arg6[%149, %c0_58, %c0_59] : memref<10x8x5xf32, #tpu.memory_space<vmem>>, vector<1x8x5xf32>
    %151 = vector.shape_cast %150 : vector<1x8x5xf32> to vector<8x5xf32>
    %152 = vector.shape_cast %148 : vector<8x5xf32> to vector<1x8x5xf32>
    tpu.vector_store %arg6[%149, %c0_58, %c0_59], %152 {strides = array<i32>} : memref<10x8x5xf32, #tpu.memory_space<vmem>>, vector<1x8x5xf32>,
    %153 = vector.extract_strided_slice %131 {offsets = [0, 32], sizes = [8, 224], strides = [1, 1]} : vector<8x288xf32> to vector<8x224xf32>
    %154 = tpu.concatenate %153, %137, %137 in 1 : vector<8x224xf32>, vector<8x32xf32>, vector<8x32xf32> -> vector<8x288xf32>
    %c6_i32 = arith.constant 6 : i32
    %c0_60 = arith.constant 0 : index
    %c0_61 = arith.constant 0 : index
    %155 = vector.load %arg3[%c0_60, %c0_61] : memref<288x36xf32, #tpu.memory_space<vmem>>, vector<288x36xf32>
    %cst_62 = arith.constant dense<0.000000e+00> : vector<8x36xf32>
    %156 = tpu.matmul %154, %155, %cst_62 {dimension_numbers = #tpu.dot_dimension_numbers<[1], [0], [0], [1], [0, 0, 1, 1], [], []>} : vector<8x288xf32>, vector<288x36xf32>, vector<8x36xf32> -> vector<8x36xf32>
    %157 = arith.addf %156, %9 : vector<8x36xf32>
    %158 = vector.extract_strided_slice %157 {offsets = [0, 0], sizes = [8, 32], strides = [1, 1]} : vector<8x36xf32> to vector<8x32xf32>
    %cst_63 = arith.constant 0.000000e+00 : f32
    %159 = vector.broadcast %cst_63 : f32 to vector<8x32xf32>
    %160 = arith.maximumf %158, %159 : vector<8x32xf32>
    %161 = vector.extract_strided_slice %157 {offsets = [0, 32], sizes = [8, 4], strides = [1, 1]} : vector<8x36xf32> to vector<8x4xf32>
    %162 = math.tanh %161 : vector<8x4xf32>
    %cst_64 = arith.constant dense<0.000000e+00> : vector<8x5xf32>
    %163 = tpu.matmul %162, %12, %cst_64 {dimension_numbers = #tpu.dot_dimension_numbers<[1], [0], [0], [1], [0, 0, 1, 1], [], []>} : vector<8x4xf32>, vector<4x5xf32>, vector<8x5xf32> -> vector<8x5xf32>
    %164 = vector.broadcast %13 : vector<1x5xf32> to vector<8x5xf32>
    %165 = arith.addf %163, %164 : vector<8x5xf32>
    %166 = arith.negf %165 : vector<8x5xf32>
    %167 = math.exp %166 : vector<8x5xf32>
    %cst_65 = arith.constant 1.000000e+00 : f32
    %168 = vector.broadcast %cst_65 : f32 to vector<8x5xf32>
    %169 = arith.addf %168, %167 : vector<8x5xf32>
    %170 = arith.divf %168, %169 : vector<8x5xf32>
    %171 = arith.select %16, %170, %165 : vector<8x5xi1>, vector<8x5xf32>
    %172 = arith.index_cast %c6_i32 : i32 to index
    %c0_66 = arith.constant 0 : index
    %c0_67 = arith.constant 0 : index
    %173 = vector.load %arg6[%172, %c0_66, %c0_67] : memref<10x8x5xf32, #tpu.memory_space<vmem>>, vector<1x8x5xf32>
    %174 = vector.shape_cast %173 : vector<1x8x5xf32> to vector<8x5xf32>
    %175 = vector.shape_cast %171 : vector<8x5xf32> to vector<1x8x5xf32>
    tpu.vector_store %arg6[%172, %c0_66, %c0_67], %175 {strides = array<i32>} : memref<10x8x5xf32, #tpu.memory_space<vmem>>, vector<1x8x5xf32>,
    %176 = vector.extract_strided_slice %154 {offsets = [0, 32], sizes = [8, 224], strides = [1, 1]} : vector<8x288xf32> to vector<8x224xf32>
    %177 = tpu.concatenate %176, %160, %160 in 1 : vector<8x224xf32>, vector<8x32xf32>, vector<8x32xf32> -> vector<8x288xf32>
    %c7_i32 = arith.constant 7 : i32
    %c0_68 = arith.constant 0 : index
    %c0_69 = arith.constant 0 : index
    %178 = vector.load %arg3[%c0_68, %c0_69] : memref<288x36xf32, #tpu.memory_space<vmem>>, vector<288x36xf32>
    %cst_70 = arith.constant dense<0.000000e+00> : vector<8x36xf32>
    %179 = tpu.matmul %177, %178, %cst_70 {dimension_numbers = #tpu.dot_dimension_numbers<[1], [0], [0], [1], [0, 0, 1, 1], [], []>} : vector<8x288xf32>, vector<288x36xf32>, vector<8x36xf32> -> vector<8x36xf32>
    %180 = arith.addf %179, %9 : vector<8x36xf32>
    %181 = vector.extract_strided_slice %180 {offsets = [0, 0], sizes = [8, 32], strides = [1, 1]} : vector<8x36xf32> to vector<8x32xf32>
    %cst_71 = arith.constant 0.000000e+00 : f32
    %182 = vector.broadcast %cst_71 : f32 to vector<8x32xf32>
    %183 = arith.maximumf %181, %182 : vector<8x32xf32>
    %184 = vector.extract_strided_slice %180 {offsets = [0, 32], sizes = [8, 4], strides = [1, 1]} : vector<8x36xf32> to vector<8x4xf32>
    %185 = math.tanh %184 : vector<8x4xf32>
    %cst_72 = arith.constant dense<0.000000e+00> : vector<8x5xf32>
    %186 = tpu.matmul %185, %12, %cst_72 {dimension_numbers = #tpu.dot_dimension_numbers<[1], [0], [0], [1], [0, 0, 1, 1], [], []>} : vector<8x4xf32>, vector<4x5xf32>, vector<8x5xf32> -> vector<8x5xf32>
    %187 = vector.broadcast %13 : vector<1x5xf32> to vector<8x5xf32>
    %188 = arith.addf %186, %187 : vector<8x5xf32>
    %189 = arith.negf %188 : vector<8x5xf32>
    %190 = math.exp %189 : vector<8x5xf32>
    %cst_73 = arith.constant 1.000000e+00 : f32
    %191 = vector.broadcast %cst_73 : f32 to vector<8x5xf32>
    %192 = arith.addf %191, %190 : vector<8x5xf32>
    %193 = arith.divf %191, %192 : vector<8x5xf32>
    %194 = arith.select %16, %193, %188 : vector<8x5xi1>, vector<8x5xf32>
    %195 = arith.index_cast %c7_i32 : i32 to index
    %c0_74 = arith.constant 0 : index
    %c0_75 = arith.constant 0 : index
    %196 = vector.load %arg6[%195, %c0_74, %c0_75] : memref<10x8x5xf32, #tpu.memory_space<vmem>>, vector<1x8x5xf32>
    %197 = vector.shape_cast %196 : vector<1x8x5xf32> to vector<8x5xf32>
    %198 = vector.shape_cast %194 : vector<8x5xf32> to vector<1x8x5xf32>
    tpu.vector_store %arg6[%195, %c0_74, %c0_75], %198 {strides = array<i32>} : memref<10x8x5xf32, #tpu.memory_space<vmem>>, vector<1x8x5xf32>,
    %199 = vector.extract_strided_slice %177 {offsets = [0, 32], sizes = [8, 224], strides = [1, 1]} : vector<8x288xf32> to vector<8x224xf32>
    %200 = tpu.concatenate %199, %183, %183 in 1 : vector<8x224xf32>, vector<8x32xf32>, vector<8x32xf32> -> vector<8x288xf32>
    %c8_i32 = arith.constant 8 : i32
    %c0_76 = arith.constant 0 : index
    %c0_77 = arith.constant 0 : index
    %201 = vector.load %arg3[%c0_76, %c0_77] : memref<288x36xf32, #tpu.memory_space<vmem>>, vector<288x36xf32>
    %cst_78 = arith.constant dense<0.000000e+00> : vector<8x36xf32>
    %202 = tpu.matmul %200, %201, %cst_78 {dimension_numbers = #tpu.dot_dimension_numbers<[1], [0], [0], [1], [0, 0, 1, 1], [], []>} : vector<8x288xf32>, vector<288x36xf32>, vector<8x36xf32> -> vector<8x36xf32>
    %203 = arith.addf %202, %9 : vector<8x36xf32>
    %204 = vector.extract_strided_slice %203 {offsets = [0, 0], sizes = [8, 32], strides = [1, 1]} : vector<8x36xf32> to vector<8x32xf32>
    %cst_79 = arith.constant 0.000000e+00 : f32
    %205 = vector.broadcast %cst_79 : f32 to vector<8x32xf32>
    %206 = arith.maximumf %204, %205 : vector<8x32xf32>
    %207 = vector.extract_strided_slice %203 {offsets = [0, 32], sizes = [8, 4], strides = [1, 1]} : vector<8x36xf32> to vector<8x4xf32>
    %208 = math.tanh %207 : vector<8x4xf32>
    %cst_80 = arith.constant dense<0.000000e+00> : vector<8x5xf32>
    %209 = tpu.matmul %208, %12, %cst_80 {dimension_numbers = #tpu.dot_dimension_numbers<[1], [0], [0], [1], [0, 0, 1, 1], [], []>} : vector<8x4xf32>, vector<4x5xf32>, vector<8x5xf32> -> vector<8x5xf32>
    %210 = vector.broadcast %13 : vector<1x5xf32> to vector<8x5xf32>
    %211 = arith.addf %209, %210 : vector<8x5xf32>
    %212 = arith.negf %211 : vector<8x5xf32>
    %213 = math.exp %212 : vector<8x5xf32>
    %cst_81 = arith.constant 1.000000e+00 : f32
    %214 = vector.broadcast %cst_81 : f32 to vector<8x5xf32>
    %215 = arith.addf %214, %213 : vector<8x5xf32>
    %216 = arith.divf %214, %215 : vector<8x5xf32>
    %217 = arith.select %16, %216, %211 : vector<8x5xi1>, vector<8x5xf32>
    %218 = arith.index_cast %c8_i32 : i32 to index
    %c0_82 = arith.constant 0 : index
    %c0_83 = arith.constant 0 : index
    %219 = vector.load %arg6[%218, %c0_82, %c0_83] : memref<10x8x5xf32, #tpu.memory_space<vmem>>, vector<1x8x5xf32>
    %220 = vector.shape_cast %219 : vector<1x8x5xf32> to vector<8x5xf32>
    %221 = vector.shape_cast %217 : vector<8x5xf32> to vector<1x8x5xf32>
    tpu.vector_store %arg6[%218, %c0_82, %c0_83], %221 {strides = array<i32>} : memref<10x8x5xf32, #tpu.memory_space<vmem>>, vector<1x8x5xf32>,
    %222 = vector.extract_strided_slice %200 {offsets = [0, 32], sizes = [8, 224], strides = [1, 1]} : vector<8x288xf32> to vector<8x224xf32>
    %223 = tpu.concatenate %222, %206, %206 in 1 : vector<8x224xf32>, vector<8x32xf32>, vector<8x32xf32> -> vector<8x288xf32>
    %c9_i32 = arith.constant 9 : i32
    %c0_84 = arith.constant 0 : index
    %c0_85 = arith.constant 0 : index
    %224 = vector.load %arg3[%c0_84, %c0_85] : memref<288x36xf32, #tpu.memory_space<vmem>>, vector<288x36xf32>
    %cst_86 = arith.constant dense<0.000000e+00> : vector<8x36xf32>
    %225 = tpu.matmul %223, %224, %cst_86 {dimension_numbers = #tpu.dot_dimension_numbers<[1], [0], [0], [1], [0, 0, 1, 1], [], []>} : vector<8x288xf32>, vector<288x36xf32>, vector<8x36xf32> -> vector<8x36xf32>
    %226 = arith.addf %225, %9 : vector<8x36xf32>
    %227 = vector.extract_strided_slice %226 {offsets = [0, 0], sizes = [8, 32], strides = [1, 1]} : vector<8x36xf32> to vector<8x32xf32>
    %cst_87 = arith.constant 0.000000e+00 : f32
    %228 = vector.broadcast %cst_87 : f32 to vector<8x32xf32>
    %229 = arith.maximumf %227, %228 : vector<8x32xf32>
    %230 = vector.extract_strided_slice %226 {offsets = [0, 32], sizes = [8, 4], strides = [1, 1]} : vector<8x36xf32> to vector<8x4xf32>
    %231 = math.tanh %230 : vector<8x4xf32>
    %cst_88 = arith.constant dense<0.000000e+00> : vector<8x5xf32>
    %232 = tpu.matmul %231, %12, %cst_88 {dimension_numbers = #tpu.dot_dimension_numbers<[1], [0], [0], [1], [0, 0, 1, 1], [], []>} : vector<8x4xf32>, vector<4x5xf32>, vector<8x5xf32> -> vector<8x5xf32>
    %233 = vector.broadcast %13 : vector<1x5xf32> to vector<8x5xf32>
    %234 = arith.addf %232, %233 : vector<8x5xf32>
    %235 = arith.negf %234 : vector<8x5xf32>
    %236 = math.exp %235 : vector<8x5xf32>
    %cst_89 = arith.constant 1.000000e+00 : f32
    %237 = vector.broadcast %cst_89 : f32 to vector<8x5xf32>
    %238 = arith.addf %237, %236 : vector<8x5xf32>
    %239 = arith.divf %237, %238 : vector<8x5xf32>
    %240 = arith.select %16, %239, %234 : vector<8x5xi1>, vector<8x5xf32>
    %241 = arith.index_cast %c9_i32 : i32 to index
    %c0_90 = arith.constant 0 : index
    %c0_91 = arith.constant 0 : index
    %242 = vector.load %arg6[%241, %c0_90, %c0_91] : memref<10x8x5xf32, #tpu.memory_space<vmem>>, vector<1x8x5xf32>
    %243 = vector.shape_cast %242 : vector<1x8x5xf32> to vector<8x5xf32>
    %244 = vector.shape_cast %240 : vector<8x5xf32> to vector<1x8x5xf32>
    tpu.vector_store %arg6[%241, %c0_90, %c0_91], %244 {strides = array<i32>} : memref<10x8x5xf32, #tpu.memory_space<vmem>>, vector<1x8x5xf32>,
    %245 = vector.extract_strided_slice %223 {offsets = [0, 32], sizes = [8, 224], strides = [1, 1]} : vector<8x288xf32> to vector<8x224xf32>
    %246 = tpu.concatenate %245, %229, %229 in 1 : vector<8x224xf32>, vector<8x32xf32>, vector<8x32xf32> -> vector<8x288xf32>
    %c10_i32 = arith.constant 10 : i32
    return
  }
}

</mosaic_0001>

<llo_original>
// kernel: tpu_custom_call.1
$region0: #{tpu_custom_call.1}
  #allocation0 [shape = 'u32[]', space=smem, size = 0x4, offset = 0x4, fixed_abs, tag = 'smem constant byte address 0x4 - core index']
  #allocation1 [shape = 'u32[144,128]{1,0:T(1,128)}', space=vmem, size = 0x12000, scoped, tag = 'internal scratch']
  %s0 = inlined_call_operand.vmem [shape: f32[8,16], index: 0, kind: input, shape index: {}]
  %s1 = inlined_call_operand.vmem [shape: f32[16,68], index: 1, kind: input, shape index: {}]
  %s2 = inlined_call_operand.vmem [shape: f32[1,68], index: 2, kind: input, shape index: {}]
  %s3 = inlined_call_operand.vmem [shape: f32[288,36], index: 3, kind: input, shape index: {}]
  %s4 = inlined_call_operand.vmem [shape: f32[4,5], index: 4, kind: input, shape index: {}]
  %s5 = inlined_call_operand.vmem [shape: f32[1,5], index: 5, kind: input, shape index: {}]
  %s6 = inlined_call_operand.vmem [shape: f32[10,8,5], index: 6, kind: output, shape index: {}]
  %s7 = sld [smem:[#allocation0]]
  $region34: #{tpu_custom_call.1} parent=0
    _
  %s9 = ssub.s32 1, %s7
  %s10 = scalar_select 0, %s9, %s7
  // Predicated region
  $region2: #{tpu_custom_call.1} parent=0 // pred_check
    _
  $region3: #{tpu_custom_call.1} parent=0 // pred_check_branch
    %12 = sbr.rel (0) target = $region5
  $region4: #{tpu_custom_call.1} parent=0 // pred_region
    _
  $region5: #{tpu_custom_call.1} parent=0 // pred_fallthru
    _
  // Predicated region
  $region6: #{tpu_custom_call.1} parent=0 // pred_check
    _
  $region7: #{tpu_custom_call.1} parent=0 // pred_check_branch
    %14 = sbr.rel (0) target = $region9
  $region8: #{tpu_custom_call.1} parent=0 // pred_region
    _
  $region9: #{tpu_custom_call.1} parent=0 // pred_fallthru
    _
  // Predicated region
  $region10: #{tpu_custom_call.1} parent=0 // pred_check
    _
  $region11: #{tpu_custom_call.1} parent=0 // pred_check_branch
    %16 = sbr.rel (0) target = $region13
  $region12: #{tpu_custom_call.1} parent=0 // pred_region
    _
  $region13: #{tpu_custom_call.1} parent=0 // pred_fallthru
    _
  // Predicated region
  $region14: #{tpu_custom_call.1} parent=0 // pred_check
    _
  $region15: #{tpu_custom_call.1} parent=0 // pred_check_branch
    %18 = sbr.rel (0) target = $region17
  $region16: #{tpu_custom_call.1} parent=0 // pred_region
    _
  $region17: #{tpu_custom_call.1} parent=0 // pred_fallthru
    _
  // Predicated region
  $region18: #{tpu_custom_call.1} parent=0 // pred_check
    _
  $region19: #{tpu_custom_call.1} parent=0 // pred_check_branch
    %20 = sbr.rel (0) target = $region21
  $region20: #{tpu_custom_call.1} parent=0 // pred_region
    _
  $region21: #{tpu_custom_call.1} parent=0 // pred_fallthru
    _
  // Predicated region
  $region22: #{tpu_custom_call.1} parent=0 // pred_check
    _
  $region23: #{tpu_custom_call.1} parent=0 // pred_check_branch
    %22 = sbr.rel (0) target = $region25
  $region24: #{tpu_custom_call.1} parent=0 // pred_region
    _
  $region25: #{tpu_custom_call.1} parent=0 // pred_fallthru
    _
  %v23 = vld [vmem:[%s0] sm:$0xff]
  %v24 = vld [vmem:[%s1] sm:$0xff]
  %v25 = vld [vmem:[%s1 + $0x8] sm:$0xff]
  %v26 = vld [vmem:[%s2] sm:$0x1]
  %v28 = vlaneseq
  %v29 = vshrl.u32 %v28, 7
  %v30 = vsub.s32 0, %v29
  %v31 = vrot.slane %v26, %v30
  %vm33 = vcmask 130048
  %v35 = vsel %vm33, %v23, 0
  %37 = vmatprep.subr.mxu0 0.0
  %38 = vmatpush1.msra.mxu0 %v24
  %39 = vmatprep.subr.mxu0 0.0
  %40 = vmatpush1.msra.mxu0 %v25
  %41 = vmatprep.subr.mxu0 0.0
  %42 = vmatpush1.msra.mxu0 0.0
  %43 = vmatprep.subr.mxu0 0.0
  %44 = vmatpush1.msra.mxu0 0.0
  %45 = vmatprep.subr.mxu0 0.0
  %46 = vmatpush1.msra.mxu0 0.0
  %47 = vmatprep.subr.mxu0 0.0
  %48 = vmatpush1.msra.mxu0 0.0
  %49 = vmatprep.subr.mxu0 0.0
  %50 = vmatpush1.msra.mxu0 0.0
  %51 = vmatprep.subr.mxu0 0.0
  %52 = vmatpush1.msra.mxu0 0.0
  %53 = vmatprep.subr.mxu0 0.0
  %54 = vmatpush1.msra.mxu0 0.0
  %55 = vmatprep.subr.mxu0 0.0
  %56 = vmatpush1.msra.mxu0 0.0
  %57 = vmatprep.subr.mxu0 0.0
  %58 = vmatpush1.msra.mxu0 0.0
  %59 = vmatprep.subr.mxu0 0.0
  %60 = vmatpush1.msra.mxu0 0.0
  %61 = vmatprep.subr.mxu0 0.0
  %62 = vmatpush1.msra.mxu0 0.0
  %63 = vmatprep.subr.mxu0 0.0
  %64 = vmatpush1.msra.mxu0 0.0
  %65 = vmatprep.subr.mxu0 0.0
  %66 = vmatpush1.msra.mxu0 0.0
  %67 = vmatprep.subr.mxu0 0.0
  %68 = vmatpush1.msra.mxu0 0.0
  %69 = vmatprep.subr.mxu0 0.0
  %70 = vmatpush1.msra.mxu0 0.0
  %71 = vmatprep.subr.mxu0 0.0
  %72 = vmatpush1.msra.mxu0 0.0
  %73 = vmatprep.subr.mxu0 0.0
  %74 = vmatpush1.msra.mxu0 0.0
  %75 = vmatprep.subr.mxu0 0.0
  %76 = vmatpush1.msra.mxu0 0.0
  %77 = vmatprep.subr.mxu0 0.0
  %78 = vmatpush1.msra.mxu0 0.0
  %79 = vmatprep.subr.mxu0 0.0
  %80 = vmatpush1.msra.mxu0 0.0
  %81 = vmatprep.subr.mxu0 0.0
  %82 = vmatpush1.msra.mxu0 0.0
  %83 = vmatprep.subr.mxu0 0.0
  %84 = vmatpush1.msra.mxu0 0.0
  %85 = vmatprep.subr.mxu0 0.0
  %86 = vmatpush1.msra.mxu0 0.0
  %87 = vmatprep.subr.mxu0 0.0
  %88 = vmatpush1.msra.mxu0 0.0
  %89 = vmatprep.subr.mxu0 0.0
  %90 = vmatpush1.msra.mxu0 0.0
  %91 = vmatprep.subr.mxu0 0.0
  %92 = vmatpush1.msra.mxu0 0.0
  %93 = vmatprep.subr.mxu0 0.0
  %94 = vmatpush1.msra.mxu0 0.0
  %95 = vmatprep.subr.mxu0 0.0
  %96 = vmatpush1.msra.mxu0 0.0
  %97 = vmatprep.subr.mxu0 0.0
  %98 = vmatpush1.msra.mxu0 0.0
  %99 = vmatprep.subr.mxu0 0.0
  %100 = vmatpush1.msra.mxu0 0.0
  %101 = vmatprep.mubr.f32.mxu0 0.0
  %102 = vmatmul.mubr.f32.gmra.mrb[0].mxu0 %v35
  %v103 = vpop.f32.mrb[0].mxu0
  %v104 = vadd.f32 %v31, %v103
  %v105 = vpop.f32.mrb[0].mxu0
  %106 = vdwg.mxu0
  %v107 = vmax.f32 %v104, 0.0
  %v108 = vld [vmem:[%s4] sm:$0xf]
  %v109 = vld [vmem:[%s5] sm:$0x1]
  %v110 = vlaneseq
  %v111 = vand.u32 %v110, 127
  %vm112 = vcmp.eq.s32.totalorder %v111, 4
  %v113 = vld [vmem:[%s3] sm:$0xff]
  %v114 = vld [vmem:[%s3 + $0x8] sm:$0xff]
  %v115 = vld [vmem:[%s3 + $0x10] sm:$0xff]
  %v116 = vld [vmem:[%s3 + $0x18] sm:$0xff]
  %v117 = vld [vmem:[%s3 + $0x20] sm:$0xff]
  %v118 = vld [vmem:[%s3 + $0x28] sm:$0xff]
  %v119 = vld [vmem:[%s3 + $0x30] sm:$0xff]
  %v120 = vld [vmem:[%s3 + $0x38] sm:$0xff]
  %v121 = vld [vmem:[%s3 + $0x40] sm:$0xff]
  %v122 = vld [vmem:[%s3 + $0x48] sm:$0xff]
  %v123 = vld [vmem:[%s3 + $0x50] sm:$0xff]
  %v124 = vld [vmem:[%s3 + $0x58] sm:$0xff]
  %v125 = vld [vmem:[%s3 + $0x60] sm:$0xff]
  %v126 = vld [vmem:[%s3 + $0x68] sm:$0xff]
  %v127 = vld [vmem:[%s3 + $0x70] sm:$0xff]
  %v128 = vld [vmem:[%s3 + $0x78] sm:$0xff]
  %v129 = vld [vmem:[%s3 + $0x80] sm:$0xff]
  %v130 = vld [vmem:[%s3 + $0x88] sm:$0xff]
  %v131 = vld [vmem:[%s3 + $0x90] sm:$0xff]
  %v132 = vld [vmem:[%s3 + $0x98] sm:$0xff]
  %v133 = vld [vmem:[%s3 + $0xa0] sm:$0xff]
  %v134 = vld [vmem:[%s3 + $0xa8] sm:$0xff]
  %v135 = vld [vmem:[%s3 + $0xb0] sm:$0xff]
  %v136 = vld [vmem:[%s3 + $0xb8] sm:$0xff]
  %v137 = vld [vmem:[%s3 + $0xc0] sm:$0xff]
  %v138 = vld [vmem:[%s3 + $0xc8] sm:$0xff]
  %v139 = vld [vmem:[%s3 + $0xd0] sm:$0xff]
  %v140 = vld [vmem:[%s3 + $0xd8] sm:$0xff]
  %v141 = vld [vmem:[%s3 + $0xe0] sm:$0xff]
  %v142 = vld [vmem:[%s3 + $0xe8] sm:$0xff]
  %v143 = vld [vmem:[%s3 + $0xf0] sm:$0xff]
  %v144 = vld [vmem:[%s3 + $0xf8] sm:$0xff]
  %v145 = vld [vmem:[%s3 + $0x100] sm:$0xff]
  %v146 = vld [vmem:[%s3 + $0x108] sm:$0xff]
  %v147 = vld [vmem:[%s3 + $0x110] sm:$0xff]
  %v148 = vld [vmem:[%s3 + $0x118] sm:$0xff]
  %150 = vrot.lane.b32.xlu0 %v104, 96
  %v151 = vpop.permute.xlu0 %150
  %vm153 = vcmask 261120
  %v155 = vsel %vm153, %v107, 0
  %157 = vmatprep.subr.mxu0 0.0
  %158 = vmatpush1.msra.mxu0 %v113
  %159 = vmatprep.subr.mxu0 0.0
  %160 = vmatpush1.msra.mxu0 %v114
  %161 = vmatprep.subr.mxu0 0.0
  %162 = vmatpush1.msra.mxu0 %v115
  %163 = vmatprep.subr.mxu0 0.0
  %164 = vmatpush1.msra.mxu0 %v116
  %165 = vmatprep.subr.mxu0 0.0
  %166 = vmatpush1.msra.mxu0 %v117
  %167 = vmatprep.subr.mxu0 0.0
  %168 = vmatpush1.msra.mxu0 %v118
  %169 = vmatprep.subr.mxu0 0.0
  %170 = vmatpush1.msra.mxu0 %v119
  %171 = vmatprep.subr.mxu0 0.0
  %172 = vmatpush1.msra.mxu0 %v120
  %173 = vmatprep.subr.mxu0 0.0
  %174 = vmatpush1.msra.mxu0 %v121
  %175 = vmatprep.subr.mxu0 0.0
  %176 = vmatpush1.msra.mxu0 %v122
  %177 = vmatprep.subr.mxu0 0.0
  %178 = vmatpush1.msra.mxu0 %v123
  %179 = vmatprep.subr.mxu0 0.0
  %180 = vmatpush1.msra.mxu0 %v124
  %181 = vmatprep.subr.mxu0 0.0
  %182 = vmatpush1.msra.mxu0 %v125
  %183 = vmatprep.subr.mxu0 0.0
  %184 = vmatpush1.msra.mxu0 %v126
  %185 = vmatprep.subr.mxu0 0.0
  %186 = vmatpush1.msra.mxu0 %v127
  %187 = vmatprep.subr.mxu0 0.0
  %188 = vmatpush1.msra.mxu0 %v128
  %189 = vmatprep.subr.mxu0 0.0
  %190 = vmatpush1.msra.mxu0 %v129
  %191 = vmatprep.subr.mxu0 0.0
  %192 = vmatpush1.msra.mxu0 %v130
  %193 = vmatprep.subr.mxu0 0.0
  %194 = vmatpush1.msra.mxu0 %v131
  %195 = vmatprep.subr.mxu0 0.0
  %196 = vmatpush1.msra.mxu0 %v132
  %197 = vmatprep.subr.mxu0 0.0
  %198 = vmatpush1.msra.mxu0 %v133
  %199 = vmatprep.subr.mxu0 0.0
  %200 = vmatpush1.msra.mxu0 %v134
  %201 = vmatprep.subr.mxu0 0.0
  %202 = vmatpush1.msra.mxu0 %v135
  %203 = vmatprep.subr.mxu0 0.0
  %204 = vmatpush1.msra.mxu0 %v136
  %205 = vmatprep.subr.mxu0 0.0
  %206 = vmatpush1.msra.mxu0 %v137
  %207 = vmatprep.subr.mxu0 0.0
  %208 = vmatpush1.msra.mxu0 %v138
  %209 = vmatprep.subr.mxu0 0.0
  %210 = vmatpush1.msra.mxu0 %v139
  %211 = vmatprep.subr.mxu0 0.0
  %212 = vmatpush1.msra.mxu0 %v140
  %213 = vmatprep.subr.mxu0 0.0
  %214 = vmatpush1.msra.mxu0 %v141
  %215 = vmatprep.subr.mxu0 0.0
  %216 = vmatpush1.msra.mxu0 %v142
  %217 = vmatprep.subr.mxu0 0.0
  %218 = vmatpush1.msra.mxu0 %v143
  %219 = vmatprep.subr.mxu0 0.0
  %220 = vmatpush1.msra.mxu0 %v144
  %221 = vmatprep.mubr.f32.mxu0 0.0
  %222 = vmatmul.mubr.f32.gmra.mrb[0].mxu0 0.0
  %v223 = vpop.f32.mrb[0].mxu0
  %v224 = vadd.f32 %v151, %v223
  %v225 = vpop.f32.mrb[0].mxu0
  %226 = vdwg.mxu0
  %227 = vmatprep.subr.mxu0 0.0
  %228 = vmatpush1.msra.mxu0 %v145
  %229 = vmatprep.subr.mxu0 0.0
  %230 = vmatpush1.msra.mxu0 %v146
  %231 = vmatprep.subr.mxu0 0.0
  %232 = vmatpush1.msra.mxu0 %v147
  %233 = vmatprep.subr.mxu0 0.0
  %234 = vmatpush1.msra.mxu0 %v148
  %235 = vmatprep.subr.mxu0 0.0
  %236 = vmatpush1.msra.mxu0 0.0
  %237 = vmatprep.subr.mxu0 0.0
  %238 = vmatpush1.msra.mxu0 0.0
  %239 = vmatprep.subr.mxu0 0.0
  %240 = vmatpush1.msra.mxu0 0.0
  %241 = vmatprep.subr.mxu0 0.0
  %242 = vmatpush1.msra.mxu0 0.0
  %243 = vmatprep.subr.mxu0 0.0
  %244 = vmatpush1.msra.mxu0 0.0
  %245 = vmatprep.subr.mxu0 0.0
  %246 = vmatpush1.msra.mxu0 0.0
  %247 = vmatprep.subr.mxu0 0.0
  %248 = vmatpush1.msra.mxu0 0.0
  %249 = vmatprep.subr.mxu0 0.0
  %250 = vmatpush1.msra.mxu0 0.0
  %251 = vmatprep.subr.mxu0 0.0
  %252 = vmatpush1.msra.mxu0 0.0
  %253 = vmatprep.subr.mxu0 0.0
  %254 = vmatpush1.msra.mxu0 0.0
  %255 = vmatprep.subr.mxu0 0.0
  %256 = vmatpush1.msra.mxu0 0.0
  %257 = vmatprep.subr.mxu0 0.0
  %258 = vmatpush1.msra.mxu0 0.0
  %259 = vmatprep.subr.mxu0 0.0
  %260 = vmatpush1.msra.mxu0 0.0
  %261 = vmatprep.subr.mxu0 0.0
  %262 = vmatpush1.msra.mxu0 0.0
  %263 = vmatprep.subr.mxu0 0.0
  %264 = vmatpush1.msra.mxu0 0.0
  %265 = vmatprep.subr.mxu0 0.0
  %266 = vmatpush1.msra.mxu0 0.0
  %267 = vmatprep.subr.mxu0 0.0
  %268 = vmatpush1.msra.mxu0 0.0
  %269 = vmatprep.subr.mxu0 0.0
  %270 = vmatpush1.msra.mxu0 0.0
  %271 = vmatprep.subr.mxu0 0.0
  %272 = vmatpush1.msra.mxu0 0.0
  %273 = vmatprep.subr.mxu0 0.0
  %274 = vmatpush1.msra.mxu0 0.0
  %275 = vmatprep.subr.mxu0 0.0
  %276 = vmatpush1.msra.mxu0 0.0
  %277 = vmatprep.subr.mxu0 0.0
  %278 = vmatpush1.msra.mxu0 0.0
  %279 = vmatprep.subr.mxu0 0.0
  %280 = vmatpush1.msra.mxu0 0.0
  %281 = vmatprep.subr.mxu0 0.0
  %282 = vmatpush1.msra.mxu0 0.0
  %283 = vmatprep.subr.mxu0 0.0
  %284 = vmatpush1.msra.mxu0 0.0
  %285 = vmatprep.subr.mxu0 0.0
  %286 = vmatpush1.msra.mxu0 0.0
  %287 = vmatprep.subr.mxu0 0.0
  %288 = vmatpush1.msra.mxu0 0.0
  %289 = vmatprep.subr.mxu0 0.0
  %290 = vmatpush1.msra.mxu0 0.0
  %291 = vmatprep.mubr.f32.mxu0 0.0
  %292 = vmatmul.mubr.f32.gmra.mrb[0].mxu0 %v155
  %v293 = vpop.f32.mrb[0].mxu0
  %v294 = vadd.f32 %v224, %v293
  %v295 = vpop.f32.mrb[0].mxu0
  %296 = vdwg.mxu0
  %v297 = vmax.f32 %v294, 0.0
  %v298 = vtanh.pop %v294
  %v300 = vlaneseq
  %v301 = vshrl.u32 %v300, 7
  %v302 = vsub.s32 0, %v301
  %v303 = vrot.slane %v109, %v302
  %306 = vrot.lane.b32.xlu0 %v298, 96
  %v307 = vpop.permute.xlu0 %306
  %vm308 = vcmask 31744
  %v309 = vsel %vm308, %v307, 0
  %vm311 = vcmask 1043456
  %v313 = vsel %vm311, %v108, 0
  %315 = vmatprep.subr.mxu0 0.0
  %316 = vmatpush1.msra.mxu0 %v313
  %317 = vmatprep.subr.mxu0 0.0
  %318 = vmatpush1.msra.mxu0 0.0
  %319 = vmatprep.subr.mxu0 0.0
  %320 = vmatpush1.msra.mxu0 0.0
  %321 = vmatprep.subr.mxu0 0.0
  %322 = vmatpush1.msra.mxu0 0.0
  %323 = vmatprep.subr.mxu0 0.0
  %324 = vmatpush1.msra.mxu0 0.0
  %325 = vmatprep.subr.mxu0 0.0
  %326 = vmatpush1.msra.mxu0 0.0
  %327 = vmatprep.subr.mxu0 0.0
  %328 = vmatpush1.msra.mxu0 0.0
  %329 = vmatprep.subr.mxu0 0.0
  %330 = vmatpush1.msra.mxu0 0.0
  %331 = vmatprep.subr.mxu0 0.0
  %332 = vmatpush1.msra.mxu0 0.0
  %333 = vmatprep.subr.mxu0 0.0
  %334 = vmatpush1.msra.mxu0 0.0
  %335 = vmatprep.subr.mxu0 0.0
  %336 = vmatpush1.msra.mxu0 0.0
  %337 = vmatprep.subr.mxu0 0.0
  %338 = vmatpush1.msra.mxu0 0.0
  %339 = vmatprep.subr.mxu0 0.0
  %340 = vmatpush1.msra.mxu0 0.0
  %341 = vmatprep.subr.mxu0 0.0
  %342 = vmatpush1.msra.mxu0 0.0
  %343 = vmatprep.subr.mxu0 0.0
  %344 = vmatpush1.msra.mxu0 0.0
  %345 = vmatprep.subr.mxu0 0.0
  %346 = vmatpush1.msra.mxu0 0.0
  %347 = vmatprep.subr.mxu0 0.0
  %348 = vmatpush1.msra.mxu0 0.0
  %349 = vmatprep.subr.mxu0 0.0
  %350 = vmatpush1.msra.mxu0 0.0
  %351 = vmatprep.subr.mxu0 0.0
  %352 = vmatpush1.msra.mxu0 0.0
  %353 = vmatprep.subr.mxu0 0.0
  %354 = vmatpush1.msra.mxu0 0.0
  %355 = vmatprep.subr.mxu0 0.0
  %356 = vmatpush1.msra.mxu0 0.0
  %357 = vmatprep.subr.mxu0 0.0
  %358 = vmatpush1.msra.mxu0 0.0
  %359 = vmatprep.subr.mxu0 0.0
  %360 = vmatpush1.msra.mxu0 0.0
  %361 = vmatprep.subr.mxu0 0.0
  %362 = vmatpush1.msra.mxu0 0.0
  %363 = vmatprep.subr.mxu0 0.0
  %364 = vmatpush1.msra.mxu0 0.0
  %365 = vmatprep.subr.mxu0 0.0
  %366 = vmatpush1.msra.mxu0 0.0
  %367 = vmatprep.subr.mxu0 0.0
  %368 = vmatpush1.msra.mxu0 0.0
  %369 = vmatprep.subr.mxu0 0.0
  %370 = vmatpush1.msra.mxu0 0.0
  %371 = vmatprep.subr.mxu0 0.0
  %372 = vmatpush1.msra.mxu0 0.0
  %373 = vmatprep.subr.mxu0 0.0
  %374 = vmatpush1.msra.mxu0 0.0
  %375 = vmatprep.subr.mxu0 0.0
  %376 = vmatpush1.msra.mxu0 0.0
  %377 = vmatprep.subr.mxu0 0.0
  %378 = vmatpush1.msra.mxu0 0.0
  %379 = vmatprep.mubr.f32.mxu0 0.0
  %380 = vmatmul.mubr.f32.gmra.mrb[0].mxu0 %v309
  %v381 = vpop.f32.mrb[0].mxu0
  %v382 = vadd.f32 %v303, %v381
  %v383 = vpop.f32.mrb[0].mxu0
  %384 = vdwg.mxu0
  %v385 = vxor.u32 %v382, 2147483648
  %v386 = vmul.f32 %v385, 1.442695
  %v387 = vpow.pop %v386
  %v388 = vadd.f32 %v387, 1.0
  %v389 = vrcp.pop %v388
  %v390 = vmul.f32 1.0, %v389
  %v391 = vsel %vm112, %v390, %v382
  %vm392 = vcmask 39936
  %393 = vst.msk [vmem:[%s6] sm:$0xff] %vm392, %v391
  %395 = vrot.lane.b32.xlu0 0.0, 96
  %v396 = vpop.permute.xlu0 %395
  %vm397 = vcmask 785408
  %400 = vrot.lane.b32.xlu0 %v297, 96
  %v401 = vpop.permute.xlu0 %400
  %v403 = vsel %vm397, %v396, %v401
  %v404 = vld [vmem:[%s3] sm:$0xff]
  %v405 = vld [vmem:[%s3 + $0x8] sm:$0xff]
  %v406 = vld [vmem:[%s3 + $0x10] sm:$0xff]
  %v407 = vld [vmem:[%s3 + $0x18] sm:$0xff]
  %v408 = vld [vmem:[%s3 + $0x20] sm:$0xff]
  %v409 = vld [vmem:[%s3 + $0x28] sm:$0xff]
  %v410 = vld [vmem:[%s3 + $0x30] sm:$0xff]
  %v411 = vld [vmem:[%s3 + $0x38] sm:$0xff]
  %v412 = vld [vmem:[%s3 + $0x40] sm:$0xff]
  %v413 = vld [vmem:[%s3 + $0x48] sm:$0xff]
  %v414 = vld [vmem:[%s3 + $0x50] sm:$0xff]
  %v415 = vld [vmem:[%s3 + $0x58] sm:$0xff]
  %v416 = vld [vmem:[%s3 + $0x60] sm:$0xff]
  %v417 = vld [vmem:[%s3 + $0x68] sm:$0xff]
  %v418 = vld [vmem:[%s3 + $0x70] sm:$0xff]
  %v419 = vld [vmem:[%s3 + $0x78] sm:$0xff]
  %v420 = vld [vmem:[%s3 + $0x80] sm:$0xff]
  %v421 = vld [vmem:[%s3 + $0x88] sm:$0xff]
  %v422 = vld [vmem:[%s3 + $0x90] sm:$0xff]
  %v423 = vld [vmem:[%s3 + $0x98] sm:$0xff]
  %v424 = vld [vmem:[%s3 + $0xa0] sm:$0xff]
  %v425 = vld [vmem:[%s3 + $0xa8] sm:$0xff]
  %v426 = vld [vmem:[%s3 + $0xb0] sm:$0xff]
  %v427 = vld [vmem:[%s3 + $0xb8] sm:$0xff]
  %v428 = vld [vmem:[%s3 + $0xc0] sm:$0xff]
  %v429 = vld [vmem:[%s3 + $0xc8] sm:$0xff]
  %v430 = vld [vmem:[%s3 + $0xd0] sm:$0xff]
  %v431 = vld [vmem:[%s3 + $0xd8] sm:$0xff]
  %v432 = vld [vmem:[%s3 + $0xe0] sm:$0xff]
  %v433 = vld [vmem:[%s3 + $0xe8] sm:$0xff]
  %v434 = vld [vmem:[%s3 + $0xf0] sm:$0xff]
  %v435 = vld [vmem:[%s3 + $0xf8] sm:$0xff]
  %v436 = vld [vmem:[%s3 + $0x100] sm:$0xff]
  %v437 = vld [vmem:[%s3 + $0x108] sm:$0xff]
  %v438 = vld [vmem:[%s3 + $0x110] sm:$0xff]
  %v439 = vld [vmem:[%s3 + $0x118] sm:$0xff]
  %v440 = vsel %vm153, %v297, 0
  %442 = vmatprep.subr.mxu0 0.0
  %443 = vmatpush1.msra.mxu0 %v404
  %444 = vmatprep.subr.mxu0 0.0
  %445 = vmatpush1.msra.mxu0 %v405
  %446 = vmatprep.subr.mxu0 0.0
  %447 = vmatpush1.msra.mxu0 %v406
  %448 = vmatprep.subr.mxu0 0.0
  %449 = vmatpush1.msra.mxu0 %v407
  %450 = vmatprep.subr.mxu0 0.0
  %451 = vmatpush1.msra.mxu0 %v408
  %452 = vmatprep.subr.mxu0 0.0
  %453 = vmatpush1.msra.mxu0 %v409
  %454 = vmatprep.subr.mxu0 0.0
  %455 = vmatpush1.msra.mxu0 %v410
  %456 = vmatprep.subr.mxu0 0.0
  %457 = vmatpush1.msra.mxu0 %v411
  %458 = vmatprep.subr.mxu0 0.0
  %459 = vmatpush1.msra.mxu0 %v412
  %460 = vmatprep.subr.mxu0 0.0
  %461 = vmatpush1.msra.mxu0 %v413
  %462 = vmatprep.subr.mxu0 0.0
  %463 = vmatpush1.msra.mxu0 %v414
  %464 = vmatprep.subr.mxu0 0.0
  %465 = vmatpush1.msra.mxu0 %v415
  %466 = vmatprep.subr.mxu0 0.0
  %467 = vmatpush1.msra.mxu0 %v416
  %468 = vmatprep.subr.mxu0 0.0
  %469 = vmatpush1.msra.mxu0 %v417
  %470 = vmatprep.subr.mxu0 0.0
  %471 = vmatpush1.msra.mxu0 %v418
  %472 = vmatprep.subr.mxu0 0.0
  %473 = vmatpush1.msra.mxu0 %v419
  %474 = vmatprep.subr.mxu0 0.0
  %475 = vmatpush1.msra.mxu0 %v420
  %476 = vmatprep.subr.mxu0 0.0
  %477 = vmatpush1.msra.mxu0 %v421
  %478 = vmatprep.subr.mxu0 0.0
  %479 = vmatpush1.msra.mxu0 %v422
  %480 = vmatprep.subr.mxu0 0.0
  %481 = vmatpush1.msra.mxu0 %v423
  %482 = vmatprep.subr.mxu0 0.0
  %483 = vmatpush1.msra.mxu0 %v424
  %484 = vmatprep.subr.mxu0 0.0
  %485 = vmatpush1.msra.mxu0 %v425
  %486 = vmatprep.subr.mxu0 0.0
  %487 = vmatpush1.msra.mxu0 %v426
  %488 = vmatprep.subr.mxu0 0.0
  %489 = vmatpush1.msra.mxu0 %v427
  %490 = vmatprep.subr.mxu0 0.0
  %491 = vmatpush1.msra.mxu0 %v428
  %492 = vmatprep.subr.mxu0 0.0
  %493 = vmatpush1.msra.mxu0 %v429
  %494 = vmatprep.subr.mxu0 0.0
  %495 = vmatpush1.msra.mxu0 %v430
  %496 = vmatprep.subr.mxu0 0.0
  %497 = vmatpush1.msra.mxu0 %v431
  %498 = vmatprep.subr.mxu0 0.0
  %499 = vmatpush1.msra.mxu0 %v432
  %500 = vmatprep.subr.mxu0 0.0
  %501 = vmatpush1.msra.mxu0 %v433
  %502 = vmatprep.subr.mxu0 0.0
  %503 = vmatpush1.msra.mxu0 %v434
  %504 = vmatprep.subr.mxu0 0.0
  %505 = vmatpush1.msra.mxu0 %v435
  %506 = vmatprep.mubr.f32.mxu0 %v403
  %507 = vmatmul.mubr.f32.gmra.mrb[0].mxu0 %v396
  %v508 = vpop.f32.mrb[0].mxu0
  %v509 = vadd.f32 %v151, %v508
  %v510 = vpop.f32.mrb[0].mxu0
  %511 = vdwg.mxu0
  %512 = vmatprep.subr.mxu0 0.0
  %513 = vmatpush1.msra.mxu0 %v436
  %514 = vmatprep.subr.mxu0 0.0
  %515 = vmatpush1.msra.mxu0 %v437
  %516 = vmatprep.subr.mxu0 0.0
  %517 = vmatpush1.msra.mxu0 %v438
  %518 = vmatprep.subr.mxu0 0.0
  %519 = vmatpush1.msra.mxu0 %v439
  %520 = vmatprep.subr.mxu0 0.0
  %521 = vmatpush1.msra.mxu0 0.0
  %522 = vmatprep.subr.mxu0 0.0
  %523 = vmatpush1.msra.mxu0 0.0
  %524 = vmatprep.subr.mxu0 0.0
  %525 = vmatpush1.msra.mxu0 0.0
  %526 = vmatprep.subr.mxu0 0.0
  %527 = vmatpush1.msra.mxu0 0.0
  %528 = vmatprep.subr.mxu0 0.0
  %529 = vmatpush1.msra.mxu0 0.0
  %530 = vmatprep.subr.mxu0 0.0
  %531 = vmatpush1.msra.mxu0 0.0
  %532 = vmatprep.subr.mxu0 0.0
  %533 = vmatpush1.msra.mxu0 0.0
  %534 = vmatprep.subr.mxu0 0.0
  %535 = vmatpush1.msra.mxu0 0.0
  %536 = vmatprep.subr.mxu0 0.0
  %537 = vmatpush1.msra.mxu0 0.0
  %538 = vmatprep.subr.mxu0 0.0
  %539 = vmatpush1.msra.mxu0 0.0
  %540 = vmatprep.subr.mxu0 0.0
  %541 = vmatpush1.msra.mxu0 0.0
  %542 = vmatprep.subr.mxu0 0.0
  %543 = vmatpush1.msra.mxu0 0.0
  %544 = vmatprep.subr.mxu0 0.0
  %545 = vmatpush1.msra.mxu0 0.0
  %546 = vmatprep.subr.mxu0 0.0
  %547 = vmatpush1.msra.mxu0 0.0
  %548 = vmatprep.subr.mxu0 0.0
  %549 = vmatpush1.msra.mxu0 0.0
  %550 = vmatprep.subr.mxu0 0.0
  %551 = vmatpush1.msra.mxu0 0.0
  %552 = vmatprep.subr.mxu0 0.0
  %553 = vmatpush1.msra.mxu0 0.0
  %554 = vmatprep.subr.mxu0 0.0
  %555 = vmatpush1.msra.mxu0 0.0
  %556 = vmatprep.subr.mxu0 0.0
  %557 = vmatpush1.msra.mxu0 0.0
  %558 = vmatprep.subr.mxu0 0.0
  %559 = vmatpush1.msra.mxu0 0.0
  %560 = vmatprep.subr.mxu0 0.0
  %561 = vmatpush1.msra.mxu0 0.0
  %562 = vmatprep.subr.mxu0 0.0
  %563 = vmatpush1.msra.mxu0 0.0
  %564 = vmatprep.subr.mxu0 0.0
  %565 = vmatpush1.msra.mxu0 0.0
  %566 = vmatprep.subr.mxu0 0.0
  %567 = vmatpush1.msra.mxu0 0.0
  %568 = vmatprep.subr.mxu0 0.0
  %569 = vmatpush1.msra.mxu0 0.0
  %570 = vmatprep.subr.mxu0 0.0
  %571 = vmatpush1.msra.mxu0 0.0
  %572 = vmatprep.subr.mxu0 0.0
  %573 = vmatpush1.msra.mxu0 0.0
  %574 = vmatprep.subr.mxu0 0.0
  %575 = vmatpush1.msra.mxu0 0.0
  %576 = vmatprep.mubr.f32.mxu0 0.0
  %577 = vmatmul.mubr.f32.gmra.mrb[0].mxu0 %v440
  %v578 = vpop.f32.mrb[0].mxu0
  %v579 = vadd.f32 %v509, %v578
  %v580 = vpop.f32.mrb[0].mxu0
  %581 = vdwg.mxu0
  %v582 = vmax.f32 %v579, 0.0
  %v583 = vtanh.pop %v579
  %585 = vrot.lane.b32.xlu0 %v583, 96
  %v586 = vpop.permute.xlu0 %585
  %v587 = vsel %vm308, %v586, 0
  %589 = vmatprep.subr.mxu0 0.0
  %590 = vmatpush1.msra.mxu0 %v313
  %591 = vmatprep.subr.mxu0 0.0
  %592 = vmatpush1.msra.mxu0 0.0
  %593 = vmatprep.subr.mxu0 0.0
  %594 = vmatpush1.msra.mxu0 0.0
  %595 = vmatprep.subr.mxu0 0.0
  %596 = vmatpush1.msra.mxu0 0.0
  %597 = vmatprep.subr.mxu0 0.0
  %598 = vmatpush1.msra.mxu0 0.0
  %599 = vmatprep.subr.mxu0 0.0
  %600 = vmatpush1.msra.mxu0 0.0
  %601 = vmatprep.subr.mxu0 0.0
  %602 = vmatpush1.msra.mxu0 0.0
  %603 = vmatprep.subr.mxu0 0.0
  %604 = vmatpush1.msra.mxu0 0.0
  %605 = vmatprep.subr.mxu0 0.0
  %606 = vmatpush1.msra.mxu0 0.0
  %607 = vmatprep.subr.mxu0 0.0
  %608 = vmatpush1.msra.mxu0 0.0
  %609 = vmatprep.subr.mxu0 0.0
  %610 = vmatpush1.msra.mxu0 0.0
  %611 = vmatprep.subr.mxu0 0.0
  %612 = vmatpush1.msra.mxu0 0.0
  %613 = vmatprep.subr.mxu0 0.0
  %614 = vmatpush1.msra.mxu0 0.0
  %615 = vmatprep.subr.mxu0 0.0
  %616 = vmatpush1.msra.mxu0 0.0
  %617 = vmatprep.subr.mxu0 0.0
  %618 = vmatpush1.msra.mxu0 0.0
  %619 = vmatprep.subr.mxu0 0.0
  %620 = vmatpush1.msra.mxu0 0.0
  %621 = vmatprep.subr.mxu0 0.0
  %622 = vmatpush1.msra.mxu0 0.0
  %623 = vmatprep.subr.mxu0 0.0
  %624 = vmatpush1.msra.mxu0 0.0
  %625 = vmatprep.subr.mxu0 0.0
  %626 = vmatpush1.msra.mxu0 0.0
  %627 = vmatprep.subr.mxu0 0.0
  %628 = vmatpush1.msra.mxu0 0.0
  %629 = vmatprep.subr.mxu0 0.0
  %630 = vmatpush1.msra.mxu0 0.0
  %631 = vmatprep.subr.mxu0 0.0
  %632 = vmatpush1.msra.mxu0 0.0
  %633 = vmatprep.subr.mxu0 0.0
  %634 = vmatpush1.msra.mxu0 0.0
  %635 = vmatprep.subr.mxu0 0.0
  %636 = vmatpush1.msra.mxu0 0.0
  %637 = vmatprep.subr.mxu0 0.0
  %638 = vmatpush1.msra.mxu0 0.0
  %639 = vmatprep.subr.mxu0 0.0
  %640 = vmatpush1.msra.mxu0 0.0
  %641 = vmatprep.subr.mxu0 0.0
  %642 = vmatpush1.msra.mxu0 0.0
  %643 = vmatprep.subr.mxu0 0.0
  %644 = vmatpush1.msra.mxu0 0.0
  %645 = vmatprep.subr.mxu0 0.0
  %646 = vmatpush1.msra.mxu0 0.0
  %647 = vmatprep.subr.mxu0 0.0
  %648 = vmatpush1.msra.mxu0 0.0
  %649 = vmatprep.subr.mxu0 0.0
  %650 = vmatpush1.msra.mxu0 0.0
  %651 = vmatprep.subr.mxu0 0.0
  %652 = vmatpush1.msra.mxu0 0.0
  %653 = vmatprep.mubr.f32.mxu0 0.0
  %654 = vmatmul.mubr.f32.gmra.mrb[0].mxu0 %v587
  %v655 = vpop.f32.mrb[0].mxu0
  %v656 = vadd.f32 %v303, %v655
  %v657 = vpop.f32.mrb[0].mxu0
  %658 = vdwg.mxu0
  %v659 = vxor.u32 %v656, 2147483648
  %v660 = vmul.f32 %v659, 1.442695
  %v661 = vpow.pop %v660
  %v662 = vadd.f32 %v661, 1.0
  %v663 = vrcp.pop %v662
  %v664 = vmul.f32 1.0, %v663
  %v665 = vsel %vm112, %v664, %v656
  %s666 = scalar_lea.vmem %s6, 8
  %667 = vst.msk [vmem:[%s666] sm:$0xff] %vm392, %v665
  %669 = vrot.lane.b32.xlu0 %v396, 96
  %v670 = vpop.permute.xlu0 %669
  %671 = vrot.lane.b32.xlu0 %v403, 96
  %v672 = vpop.permute.xlu0 %671
  %v673 = vsel %vm397, %v670, %v672
  %677 = vrot.lane.b32.xlu0 %v582, 96
  %v678 = vpop.permute.xlu0 %677
  %v680 = vsel %vm397, %v672, %v678
  %v681 = vld [vmem:[%s3] sm:$0xff]
  %v682 = vld [vmem:[%s3 + $0x8] sm:$0xff]
  %v683 = vld [vmem:[%s3 + $0x10] sm:$0xff]
  %v684 = vld [vmem:[%s3 + $0x18] sm:$0xff]
  %v685 = vld [vmem:[%s3 + $0x20] sm:$0xff]
  %v686 = vld [vmem:[%s3 + $0x28] sm:$0xff]
  %v687 = vld [vmem:[%s3 + $0x30] sm:$0xff]
  %v688 = vld [vmem:[%s3 + $0x38] sm:$0xff]
  %v689 = vld [vmem:[%s3 + $0x40] sm:$0xff]
  %v690 = vld [vmem:[%s3 + $0x48] sm:$0xff]
  %v691 = vld [vmem:[%s3 + $0x50] sm:$0xff]
  %v692 = vld [vmem:[%s3 + $0x58] sm:$0xff]
  %v693 = vld [vmem:[%s3 + $0x60] sm:$0xff]
  %v694 = vld [vmem:[%s3 + $0x68] sm:$0xff]
  %v695 = vld [vmem:[%s3 + $0x70] sm:$0xff]
  %v696 = vld [vmem:[%s3 + $0x78] sm:$0xff]
  %v697 = vld [vmem:[%s3 + $0x80] sm:$0xff]
  %v698 = vld [vmem:[%s3 + $0x88] sm:$0xff]
  %v699 = vld [vmem:[%s3 + $0x90] sm:$0xff]
  %v700 = vld [vmem:[%s3 + $0x98] sm:$0xff]
  %v701 = vld [vmem:[%s3 + $0xa0] sm:$0xff]
  %v702 = vld [vmem:[%s3 + $0xa8] sm:$0xff]
  %v703 = vld [vmem:[%s3 + $0xb0] sm:$0xff]
  %v704 = vld [vmem:[%s3 + $0xb8] sm:$0xff]
  %v705 = vld [vmem:[%s3 + $0xc0] sm:$0xff]
  %v706 = vld [vmem:[%s3 + $0xc8] sm:$0xff]
  %v707 = vld [vmem:[%s3 + $0xd0] sm:$0xff]
  %v708 = vld [vmem:[%s3 + $0xd8] sm:$0xff]
  %v709 = vld [vmem:[%s3 + $0xe0] sm:$0xff]
  %v710 = vld [vmem:[%s3 + $0xe8] sm:$0xff]
  %v711 = vld [vmem:[%s3 + $0xf0] sm:$0xff]
  %v712 = vld [vmem:[%s3 + $0xf8] sm:$0xff]
  %v713 = vld [vmem:[%s3 + $0x100] sm:$0xff]
  %v714 = vld [vmem:[%s3 + $0x108] sm:$0xff]
  %v715 = vld [vmem:[%s3 + $0x110] sm:$0xff]
  %v716 = vld [vmem:[%s3 + $0x118] sm:$0xff]
  %v717 = vsel %vm153, %v582, 0
  %719 = vmatprep.subr.mxu0 0.0
  %720 = vmatpush1.msra.mxu0 %v681
  %721 = vmatprep.subr.mxu0 0.0
  %722 = vmatpush1.msra.mxu0 %v682
  %723 = vmatprep.subr.mxu0 0.0
  %724 = vmatpush1.msra.mxu0 %v683
  %725 = vmatprep.subr.mxu0 0.0
  %726 = vmatpush1.msra.mxu0 %v684
  %727 = vmatprep.subr.mxu0 0.0
  %728 = vmatpush1.msra.mxu0 %v685
  %729 = vmatprep.subr.mxu0 0.0
  %730 = vmatpush1.msra.mxu0 %v686
  %731 = vmatprep.subr.mxu0 0.0
  %732 = vmatpush1.msra.mxu0 %v687
  %733 = vmatprep.subr.mxu0 0.0
  %734 = vmatpush1.msra.mxu0 %v688
  %735 = vmatprep.subr.mxu0 0.0
  %736 = vmatpush1.msra.mxu0 %v689
  %737 = vmatprep.subr.mxu0 0.0
  %738 = vmatpush1.msra.mxu0 %v690
  %739 = vmatprep.subr.mxu0 0.0
  %740 = vmatpush1.msra.mxu0 %v691
  %741 = vmatprep.subr.mxu0 0.0
  %742 = vmatpush1.msra.mxu0 %v692
  %743 = vmatprep.subr.mxu0 0.0
  %744 = vmatpush1.msra.mxu0 %v693
  %745 = vmatprep.subr.mxu0 0.0
  %746 = vmatpush1.msra.mxu0 %v694
  %747 = vmatprep.subr.mxu0 0.0
  %748 = vmatpush1.msra.mxu0 %v695
  %749 = vmatprep.subr.mxu0 0.0
  %750 = vmatpush1.msra.mxu0 %v696
  %751 = vmatprep.subr.mxu0 0.0
  %752 = vmatpush1.msra.mxu0 %v697
  %753 = vmatprep.subr.mxu0 0.0
  %754 = vmatpush1.msra.mxu0 %v698
  %755 = vmatprep.subr.mxu0 0.0
  %756 = vmatpush1.msra.mxu0 %v699
  %757 = vmatprep.subr.mxu0 0.0
  %758 = vmatpush1.msra.mxu0 %v700
  %759 = vmatprep.subr.mxu0 0.0
  %760 = vmatpush1.msra.mxu0 %v701
  %761 = vmatprep.subr.mxu0 0.0
  %762 = vmatpush1.msra.mxu0 %v702
  %763 = vmatprep.subr.mxu0 0.0
  %764 = vmatpush1.msra.mxu0 %v703
  %765 = vmatprep.subr.mxu0 0.0
  %766 = vmatpush1.msra.mxu0 %v704
  %767 = vmatprep.subr.mxu0 0.0
  %768 = vmatpush1.msra.mxu0 %v705
  %769 = vmatprep.subr.mxu0 0.0
  %770 = vmatpush1.msra.mxu0 %v706
  %771 = vmatprep.subr.mxu0 0.0
  %772 = vmatpush1.msra.mxu0 %v707
  %773 = vmatprep.subr.mxu0 0.0
  %774 = vmatpush1.msra.mxu0 %v708
  %775 = vmatprep.subr.mxu0 0.0
  %776 = vmatpush1.msra.mxu0 %v709
  %777 = vmatprep.subr.mxu0 0.0
  %778 = vmatpush1.msra.mxu0 %v710
  %779 = vmatprep.subr.mxu0 0.0
  %780 = vmatpush1.msra.mxu0 %v711
  %781 = vmatprep.subr.mxu0 0.0
  %782 = vmatpush1.msra.mxu0 %v712
  %783 = vmatprep.mubr.f32.mxu0 %v680
  %784 = vmatmul.mubr.f32.gmra.mrb[0].mxu0 %v673
  %v785 = vpop.f32.mrb[0].mxu0
  %v786 = vadd.f32 %v151, %v785
  %v787 = vpop.f32.mrb[0].mxu0
  %788 = vdwg.mxu0
  %789 = vmatprep.subr.mxu0 0.0
  %790 = vmatpush1.msra.mxu0 %v713
  %791 = vmatprep.subr.mxu0 0.0
  %792 = vmatpush1.msra.mxu0 %v714
  %793 = vmatprep.subr.mxu0 0.0
  %794 = vmatpush1.msra.mxu0 %v715
  %795 = vmatprep.subr.mxu0 0.0
  %796 = vmatpush1.msra.mxu0 %v716
  %797 = vmatprep.subr.mxu0 0.0
  %798 = vmatpush1.msra.mxu0 0.0
  %799 = vmatprep.subr.mxu0 0.0
  %800 = vmatpush1.msra.mxu0 0.0
  %801 = vmatprep.subr.mxu0 0.0
  %802 = vmatpush1.msra.mxu0 0.0
  %803 = vmatprep.subr.mxu0 0.0
  %804 = vmatpush1.msra.mxu0 0.0
  %805 = vmatprep.subr.mxu0 0.0
  %806 = vmatpush1.msra.mxu0 0.0
  %807 = vmatprep.subr.mxu0 0.0
  %808 = vmatpush1.msra.mxu0 0.0
  %809 = vmatprep.subr.mxu0 0.0
  %810 = vmatpush1.msra.mxu0 0.0
  %811 = vmatprep.subr.mxu0 0.0
  %812 = vmatpush1.msra.mxu0 0.0
  %813 = vmatprep.subr.mxu0 0.0
  %814 = vmatpush1.msra.mxu0 0.0
  %815 = vmatprep.subr.mxu0 0.0
  %816 = vmatpush1.msra.mxu0 0.0
  %817 = vmatprep.subr.mxu0 0.0
  %818 = vmatpush1.msra.mxu0 0.0
  %819 = vmatprep.subr.mxu0 0.0
  %820 = vmatpush1.msra.mxu0 0.0
  %821 = vmatprep.subr.mxu0 0.0
  %822 = vmatpush1.msra.mxu0 0.0
  %823 = vmatprep.subr.mxu0 0.0
  %824 = vmatpush1.msra.mxu0 0.0
  %825 = vmatprep.subr.mxu0 0.0
  %826 = vmatpush1.msra.mxu0 0.0
  %827 = vmatprep.subr.mxu0 0.0
  %828 = vmatpush1.msra.mxu0 0.0
  %829 = vmatprep.subr.mxu0 0.0
  %830 = vmatpush1.msra.mxu0 0.0
  %831 = vmatprep.subr.mxu0 0.0
  %832 = vmatpush1.msra.mxu0 0.0
  %833 = vmatprep.subr.mxu0 0.0
  %834 = vmatpush1.msra.mxu0 0.0
  %835 = vmatprep.subr.mxu0 0.0
  %836 = vmatpush1.msra.mxu0 0.0
  %837 = vmatprep.subr.mxu0 0.0
  %838 = vmatpush1.msra.mxu0 0.0
  %839 = vmatprep.subr.mxu0 0.0
  %840 = vmatpush1.msra.mxu0 0.0
  %841 = vmatprep.subr.mxu0 0.0
  %842 = vmatpush1.msra.mxu0 0.0
  %843 = vmatprep.subr.mxu0 0.0
  %844 = vmatpush1.msra.mxu0 0.0
  %845 = vmatprep.subr.mxu0 0.0
  %846 = vmatpush1.msra.mxu0 0.0
  %847 = vmatprep.subr.mxu0 0.0
  %848 = vmatpush1.msra.mxu0 0.0
  %849 = vmatprep.subr.mxu0 0.0
  %850 = vmatpush1.msra.mxu0 0.0
  %851 = vmatprep.subr.mxu0 0.0
  %852 = vmatpush1.msra.mxu0 0.0
  %853 = vmatprep.mubr.f32.mxu0 0.0
  %854 = vmatmul.mubr.f32.gmra.mrb[0].mxu0 %v717
  %v855 = vpop.f32.mrb[0].mxu0
  %v856 = vadd.f32 %v786, %v855
  %v857 = vpop.f32.mrb[0].mxu0
  %858 = vdwg.mxu0
  %v859 = vmax.f32 %v856, 0.0
  %v860 = vtanh.pop %v856
  %862 = vrot.lane.b32.xlu0 %v860, 96
  %v863 = vpop.permute.xlu0 %862
  %v864 = vsel %vm308, %v863, 0
  %866 = vmatprep.subr.mxu0 0.0
  %867 = vmatpush1.msra.mxu0 %v313
  %868 = vmatprep.subr.mxu0 0.0
  %869 = vmatpush1.msra.mxu0 0.0
  %870 = vmatprep.subr.mxu0 0.0
  %871 = vmatpush1.msra.mxu0 0.0
  %872 = vmatprep.subr.mxu0 0.0
  %873 = vmatpush1.msra.mxu0 0.0
  %874 = vmatprep.subr.mxu0 0.0
  %875 = vmatpush1.msra.mxu0 0.0
  %876 = vmatprep.subr.mxu0 0.0
  %877 = vmatpush1.msra.mxu0 0.0
  %878 = vmatprep.subr.mxu0 0.0
  %879 = vmatpush1.msra.mxu0 0.0
  %880 = vmatprep.subr.mxu0 0.0
  %881 = vmatpush1.msra.mxu0 0.0
  %882 = vmatprep.subr.mxu0 0.0
  %883 = vmatpush1.msra.mxu0 0.0
  %884 = vmatprep.subr.mxu0 0.0
  %885 = vmatpush1.msra.mxu0 0.0
  %886 = vmatprep.subr.mxu0 0.0
  %887 = vmatpush1.msra.mxu0 0.0
  %888 = vmatprep.subr.mxu0 0.0
  %889 = vmatpush1.msra.mxu0 0.0
  %890 = vmatprep.subr.mxu0 0.0
  %891 = vmatpush1.msra.mxu0 0.0
  %892 = vmatprep.subr.mxu0 0.0
  %893 = vmatpush1.msra.mxu0 0.0
  %894 = vmatprep.subr.mxu0 0.0
  %895 = vmatpush1.msra.mxu0 0.0
  %896 = vmatprep.subr.mxu0 0.0
  %897 = vmatpush1.msra.mxu0 0.0
  %898 = vmatprep.subr.mxu0 0.0
  %899 = vmatpush1.msra.mxu0 0.0
  %900 = vmatprep.subr.mxu0 0.0
  %901 = vmatpush1.msra.mxu0 0.0
  %902 = vmatprep.subr.mxu0 0.0
  %903 = vmatpush1.msra.mxu0 0.0
  %904 = vmatprep.subr.mxu0 0.0
  %905 = vmatpush1.msra.mxu0 0.0
  %906 = vmatprep.subr.mxu0 0.0
  %907 = vmatpush1.msra.mxu0 0.0
  %908 = vmatprep.subr.mxu0 0.0
  %909 = vmatpush1.msra.mxu0 0.0
  %910 = vmatprep.subr.mxu0 0.0
  %911 = vmatpush1.msra.mxu0 0.0
  %912 = vmatprep.subr.mxu0 0.0
  %913 = vmatpush1.msra.mxu0 0.0
  %914 = vmatprep.subr.mxu0 0.0
  %915 = vmatpush1.msra.mxu0 0.0
  %916 = vmatprep.subr.mxu0 0.0
  %917 = vmatpush1.msra.mxu0 0.0
  %918 = vmatprep.subr.mxu0 0.0
  %919 = vmatpush1.msra.mxu0 0.0
  %920 = vmatprep.subr.mxu0 0.0
  %921 = vmatpush1.msra.mxu0 0.0
  %922 = vmatprep.subr.mxu0 0.0
  %923 = vmatpush1.msra.mxu0 0.0
  %924 = vmatprep.subr.mxu0 0.0
  %925 = vmatpush1.msra.mxu0 0.0
  %926 = vmatprep.subr.mxu0 0.0
  %927 = vmatpush1.msra.mxu0 0.0
  %928 = vmatprep.subr.mxu0 0.0
  %929 = vmatpush1.msra.mxu0 0.0
  %930 = vmatprep.mubr.f32.mxu0 0.0
  %931 = vmatmul.mubr.f32.gmra.mrb[0].mxu0 %v864
  %v932 = vpop.f32.mrb[0].mxu0
  %v933 = vadd.f32 %v303, %v932
  %v934 = vpop.f32.mrb[0].mxu0
  %935 = vdwg.mxu0
  %v936 = vxor.u32 %v933, 2147483648
  %v937 = vmul.f32 %v936, 1.442695
  %v938 = vpow.pop %v937
  %v939 = vadd.f32 %v938, 1.0
  %v940 = vrcp.pop %v939
  %v941 = vmul.f32 1.0, %v940
  %v942 = vsel %vm112, %v941, %v933
  %s943 = scalar_lea.vmem %s6, 16
  %944 = vst.msk [vmem:[%s943] sm:$0xff] %vm392, %v942
  %946 = vrot.lane.b32.xlu0 %v673, 96
  %v947 = vpop.permute.xlu0 %946
  %948 = vrot.lane.b32.xlu0 %v680, 96
  %v949 = vpop.permute.xlu0 %948
  %v950 = vsel %vm397, %v947, %v949
  %954 = vrot.lane.b32.xlu0 %v859, 96
  %v955 = vpop.permute.xlu0 %954
  %v957 = vsel %vm397, %v949, %v955
  %v958 = vld [vmem:[%s3] sm:$0xff]
  %v959 = vld [vmem:[%s3 + $0x8] sm:$0xff]
  %v960 = vld [vmem:[%s3 + $0x10] sm:$0xff]
  %v961 = vld [vmem:[%s3 + $0x18] sm:$0xff]
  %v962 = vld [vmem:[%s3 + $0x20] sm:$0xff]
  %v963 = vld [vmem:[%s3 + $0x28] sm:$0xff]
  %v964 = vld [vmem:[%s3 + $0x30] sm:$0xff]
  %v965 = vld [vmem:[%s3 + $0x38] sm:$0xff]
  %v966 = vld [vmem:[%s3 + $0x40] sm:$0xff]
  %v967 = vld [vmem:[%s3 + $0x48] sm:$0xff]
  %v968 = vld [vmem:[%s3 + $0x50] sm:$0xff]
  %v969 = vld [vmem:[%s3 + $0x58] sm:$0xff]
  %v970 = vld [vmem:[%s3 + $0x60] sm:$0xff]
  %v971 = vld [vmem:[%s3 + $0x68] sm:$0xff]
  %v972 = vld [vmem:[%s3 + $0x70] sm:$0xff]
  %v973 = vld [vmem:[%s3 + $0x78] sm:$0xff]
  %v974 = vld [vmem:[%s3 + $0x80] sm:$0xff]
  %v975 = vld [vmem:[%s3 + $0x88] sm:$0xff]
  %v976 = vld [vmem:[%s3 + $0x90] sm:$0xff]
  %v977 = vld [vmem:[%s3 + $0x98] sm:$0xff]
  %v978 = vld [vmem:[%s3 + $0xa0] sm:$0xff]
  %v979 = vld [vmem:[%s3 + $0xa8] sm:$0xff]
  %v980 = vld [vmem:[%s3 + $0xb0] sm:$0xff]
  %v981 = vld [vmem:[%s3 + $0xb8] sm:$0xff]
  %v982 = vld [vmem:[%s3 + $0xc0] sm:$0xff]
  %v983 = vld [vmem:[%s3 + $0xc8] sm:$0xff]
  %v984 = vld [vmem:[%s3 + $0xd0] sm:$0xff]
  %v985 = vld [vmem:[%s3 + $0xd8] sm:$0xff]
  %v986 = vld [vmem:[%s3 + $0xe0] sm:$0xff]
  %v987 = vld [vmem:[%s3 + $0xe8] sm:$0xff]
  %v988 = vld [vmem:[%s3 + $0xf0] sm:$0xff]
  %v989 = vld [vmem:[%s3 + $0xf8] sm:$0xff]
  %v990 = vld [vmem:[%s3 + $0x100] sm:$0xff]
  %v991 = vld [vmem:[%s3 + $0x108] sm:$0xff]
  %v992 = vld [vmem:[%s3 + $0x110] sm:$0xff]
  %v993 = vld [vmem:[%s3 + $0x118] sm:$0xff]
  %v994 = vsel %vm153, %v859, 0
  %996 = vmatprep.subr.mxu0 0.0
  %997 = vmatpush1.msra.mxu0 %v958
  %998 = vmatprep.subr.mxu0 0.0
  %999 = vmatpush1.msra.mxu0 %v959
  %1000 = vmatprep.subr.mxu0 0.0
  %1001 = vmatpush1.msra.mxu0 %v960
  %1002 = vmatprep.subr.mxu0 0.0
  %1003 = vmatpush1.msra.mxu0 %v961
  %1004 = vmatprep.subr.mxu0 0.0
  %1005 = vmatpush1.msra.mxu0 %v962
  %1006 = vmatprep.subr.mxu0 0.0
  %1007 = vmatpush1.msra.mxu0 %v963
  %1008 = vmatprep.subr.mxu0 0.0
  %1009 = vmatpush1.msra.mxu0 %v964
  %1010 = vmatprep.subr.mxu0 0.0
  %1011 = vmatpush1.msra.mxu0 %v965
  %1012 = vmatprep.subr.mxu0 0.0
  %1013 = vmatpush1.msra.mxu0 %v966
  %1014 = vmatprep.subr.mxu0 0.0
  %1015 = vmatpush1.msra.mxu0 %v967
  %1016 = vmatprep.subr.mxu0 0.0
  %1017 = vmatpush1.msra.mxu0 %v968
  %1018 = vmatprep.subr.mxu0 0.0
  %1019 = vmatpush1.msra.mxu0 %v969
  %1020 = vmatprep.subr.mxu0 0.0
  %1021 = vmatpush1.msra.mxu0 %v970
  %1022 = vmatprep.subr.mxu0 0.0
  %1023 = vmatpush1.msra.mxu0 %v971
  %1024 = vmatprep.subr.mxu0 0.0
  %1025 = vmatpush1.msra.mxu0 %v972
  %1026 = vmatprep.subr.mxu0 0.0
  %1027 = vmatpush1.msra.mxu0 %v973
  %1028 = vmatprep.subr.mxu0 0.0
  %1029 = vmatpush1.msra.mxu0 %v974
  %1030 = vmatprep.subr.mxu0 0.0
  %1031 = vmatpush1.msra.mxu0 %v975
  %1032 = vmatprep.subr.mxu0 0.0
  %1033 = vmatpush1.msra.mxu0 %v976
  %1034 = vmatprep.subr.mxu0 0.0
  %1035 = vmatpush1.msra.mxu0 %v977
  %1036 = vmatprep.subr.mxu0 0.0
  %1037 = vmatpush1.msra.mxu0 %v978
  %1038 = vmatprep.subr.mxu0 0.0
  %1039 = vmatpush1.msra.mxu0 %v979
  %1040 = vmatprep.subr.mxu0 0.0
  %1041 = vmatpush1.msra.mxu0 %v980
  %1042 = vmatprep.subr.mxu0 0.0
  %1043 = vmatpush1.msra.mxu0 %v981
  %1044 = vmatprep.subr.mxu0 0.0
  %1045 = vmatpush1.msra.mxu0 %v982
  %1046 = vmatprep.subr.mxu0 0.0
  %1047 = vmatpush1.msra.mxu0 %v983
  %1048 = vmatprep.subr.mxu0 0.0
  %1049 = vmatpush1.msra.mxu0 %v984
  %1050 = vmatprep.subr.mxu0 0.0
  %1051 = vmatpush1.msra.mxu0 %v985
  %1052 = vmatprep.subr.mxu0 0.0
  %1053 = vmatpush1.msra.mxu0 %v986
  %1054 = vmatprep.subr.mxu0 0.0
  %1055 = vmatpush1.msra.mxu0 %v987
  %1056 = vmatprep.subr.mxu0 0.0
  %1057 = vmatpush1.msra.mxu0 %v988
  %1058 = vmatprep.subr.mxu0 0.0
  %1059 = vmatpush1.msra.mxu0 %v989
  %1060 = vmatprep.mubr.f32.mxu0 %v957
  %1061 = vmatmul.mubr.f32.gmra.mrb[0].mxu0 %v950
  %v1062 = vpop.f32.mrb[0].mxu0
  %v1063 = vadd.f32 %v151, %v1062
  %v1064 = vpop.f32.mrb[0].mxu0
  %1065 = vdwg.mxu0
  %1066 = vmatprep.subr.mxu0 0.0
  %1067 = vmatpush1.msra.mxu0 %v990
  %1068 = vmatprep.subr.mxu0 0.0
  %1069 = vmatpush1.msra.mxu0 %v991
  %1070 = vmatprep.subr.mxu0 0.0
  %1071 = vmatpush1.msra.mxu0 %v992
  %1072 = vmatprep.subr.mxu0 0.0
  %1073 = vmatpush1.msra.mxu0 %v993
  %1074 = vmatprep.subr.mxu0 0.0
  %1075 = vmatpush1.msra.mxu0 0.0
  %1076 = vmatprep.subr.mxu0 0.0
  %1077 = vmatpush1.msra.mxu0 0.0
  %1078 = vmatprep.subr.mxu0 0.0
  %1079 = vmatpush1.msra.mxu0 0.0
  %1080 = vmatprep.subr.mxu0 0.0
  %1081 = vmatpush1.msra.mxu0 0.0
  %1082 = vmatprep.subr.mxu0 0.0
  %1083 = vmatpush1.msra.mxu0 0.0
  %1084 = vmatprep.subr.mxu0 0.0
  %1085 = vmatpush1.msra.mxu0 0.0
  %1086 = vmatprep.subr.mxu0 0.0
  %1087 = vmatpush1.msra.mxu0 0.0
  %1088 = vmatprep.subr.mxu0 0.0
  %1089 = vmatpush1.msra.mxu0 0.0
  %1090 = vmatprep.subr.mxu0 0.0
  %1091 = vmatpush1.msra.mxu0 0.0
  %1092 = vmatprep.subr.mxu0 0.0
  %1093 = vmatpush1.msra.mxu0 0.0
  %1094 = vmatprep.subr.mxu0 0.0
  %1095 = vmatpush1.msra.mxu0 0.0
  %1096 = vmatprep.subr.mxu0 0.0
  %1097 = vmatpush1.msra.mxu0 0.0
  %1098 = vmatprep.subr.mxu0 0.0
  %1099 = vmatpush1.msra.mxu0 0.0
  %1100 = vmatprep.subr.mxu0 0.0
  %1101 = vmatpush1.msra.mxu0 0.0
  %1102 = vmatprep.subr.mxu0 0.0
  %1103 = vmatpush1.msra.mxu0 0.0
  %1104 = vmatprep.subr.mxu0 0.0
  %1105 = vmatpush1.msra.mxu0 0.0
  %1106 = vmatprep.subr.mxu0 0.0
  %1107 = vmatpush1.msra.mxu0 0.0
  %1108 = vmatprep.subr.mxu0 0.0
  %1109 = vmatpush1.msra.mxu0 0.0
  %1110 = vmatprep.subr.mxu0 0.0
  %1111 = vmatpush1.msra.mxu0 0.0
  %1112 = vmatprep.subr.mxu0 0.0
  %1113 = vmatpush1.msra.mxu0 0.0
  %1114 = vmatprep.subr.mxu0 0.0
  %1115 = vmatpush1.msra.mxu0 0.0
  %1116 = vmatprep.subr.mxu0 0.0
  %1117 = vmatpush1.msra.mxu0 0.0
  %1118 = vmatprep.subr.mxu0 0.0
  %1119 = vmatpush1.msra.mxu0 0.0
  %1120 = vmatprep.subr.mxu0 0.0
  %1121 = vmatpush1.msra.mxu0 0.0
  %1122 = vmatprep.subr.mxu0 0.0
  %1123 = vmatpush1.msra.mxu0 0.0
  %1124 = vmatprep.subr.mxu0 0.0
  %1125 = vmatpush1.msra.mxu0 0.0
  %1126 = vmatprep.subr.mxu0 0.0
  %1127 = vmatpush1.msra.mxu0 0.0
  %1128 = vmatprep.subr.mxu0 0.0
  %1129 = vmatpush1.msra.mxu0 0.0
  %1130 = vmatprep.mubr.f32.mxu0 0.0
  %1131 = vmatmul.mubr.f32.gmra.mrb[0].mxu0 %v994
  %v1132 = vpop.f32.mrb[0].mxu0
  %v1133 = vadd.f32 %v1063, %v1132
  %v1134 = vpop.f32.mrb[0].mxu0
  %1135 = vdwg.mxu0
  %v1136 = vmax.f32 %v1133, 0.0
  %v1137 = vtanh.pop %v1133
  %1139 = vrot.lane.b32.xlu0 %v1137, 96
  %v1140 = vpop.permute.xlu0 %1139
  %v1141 = vsel %vm308, %v1140, 0
  %1143 = vmatprep.subr.mxu0 0.0
  %1144 = vmatpush1.msra.mxu0 %v313
  %1145 = vmatprep.subr.mxu0 0.0
  %1146 = vmatpush1.msra.mxu0 0.0
  %1147 = vmatprep.subr.mxu0 0.0
  %1148 = vmatpush1.msra.mxu0 0.0
  %1149 = vmatprep.subr.mxu0 0.0
  %1150 = vmatpush1.msra.mxu0 0.0
  %1151 = vmatprep.subr.mxu0 0.0
  %1152 = vmatpush1.msra.mxu0 0.0
  %1153 = vmatprep.subr.mxu0 0.0
  %1154 = vmatpush1.msra.mxu0 0.0
  %1155 = vmatprep.subr.mxu0 0.0
  %1156 = vmatpush1.msra.mxu0 0.0
  %1157 = vmatprep.subr.mxu0 0.0
  %1158 = vmatpush1.msra.mxu0 0.0
  %1159 = vmatprep.subr.mxu0 0.0
  %1160 = vmatpush1.msra.mxu0 0.0
  %1161 = vmatprep.subr.mxu0 0.0
  %1162 = vmatpush1.msra.mxu0 0.0
  %1163 = vmatprep.subr.mxu0 0.0
  %1164 = vmatpush1.msra.mxu0 0.0
  %1165 = vmatprep.subr.mxu0 0.0
  %1166 = vmatpush1.msra.mxu0 0.0
  %1167 = vmatprep.subr.mxu0 0.0
  %1168 = vmatpush1.msra.mxu0 0.0
  %1169 = vmatprep.subr.mxu0 0.0
  %1170 = vmatpush1.msra.mxu0 0.0
  %1171 = vmatprep.subr.mxu0 0.0
  %1172 = vmatpush1.msra.mxu0 0.0
  %1173 = vmatprep.subr.mxu0 0.0
  %1174 = vmatpush1.msra.mxu0 0.0
  %1175 = vmatprep.subr.mxu0 0.0
  %1176 = vmatpush1.msra.mxu0 0.0
  %1177 = vmatprep.subr.mxu0 0.0
  %1178 = vmatpush1.msra.mxu0 0.0
  %1179 = vmatprep.subr.mxu0 0.0
  %1180 = vmatpush1.msra.mxu0 0.0
  %1181 = vmatprep.subr.mxu0 0.0
  %1182 = vmatpush1.msra.mxu0 0.0
  %1183 = vmatprep.subr.mxu0 0.0
  %1184 = vmatpush1.msra.mxu0 0.0
  %1185 = vmatprep.subr.mxu0 0.0
  %1186 = vmatpush1.msra.mxu0 0.0
  %1187 = vmatprep.subr.mxu0 0.0
  %1188 = vmatpush1.msra.mxu0 0.0
  %1189 = vmatprep.subr.mxu0 0.0
  %1190 = vmatpush1.msra.mxu0 0.0
  %1191 = vmatprep.subr.mxu0 0.0
  %1192 = vmatpush1.msra.mxu0 0.0
  %1193 = vmatprep.subr.mxu0 0.0
  %1194 = vmatpush1.msra.mxu0 0.0
  %1195 = vmatprep.subr.mxu0 0.0
  %1196 = vmatpush1.msra.mxu0 0.0
  %1197 = vmatprep.subr.mxu0 0.0
  %1198 = vmatpush1.msra.mxu0 0.0
  %1199 = vmatprep.subr.mxu0 0.0
  %1200 = vmatpush1.msra.mxu0 0.0
  %1201 = vmatprep.subr.mxu0 0.0
  %1202 = vmatpush1.msra.mxu0 0.0
  %1203 = vmatprep.subr.mxu0 0.0
  %1204 = vmatpush1.msra.mxu0 0.0
  %1205 = vmatprep.subr.mxu0 0.0
  %1206 = vmatpush1.msra.mxu0 0.0
  %1207 = vmatprep.mubr.f32.mxu0 0.0
  %1208 = vmatmul.mubr.f32.gmra.mrb[0].mxu0 %v1141
  %v1209 = vpop.f32.mrb[0].mxu0
  %v1210 = vadd.f32 %v303, %v1209
  %v1211 = vpop.f32.mrb[0].mxu0
  %1212 = vdwg.mxu0
  %v1213 = vxor.u32 %v1210, 2147483648
  %v1214 = vmul.f32 %v1213, 1.442695
  %v1215 = vpow.pop %v1214
  %v1216 = vadd.f32 %v1215, 1.0
  %v1217 = vrcp.pop %v1216
  %v1218 = vmul.f32 1.0, %v1217
  %v1219 = vsel %vm112, %v1218, %v1210
  %s1220 = scalar_lea.vmem %s6, 24
  %1221 = vst.msk [vmem:[%s1220] sm:$0xff] %vm392, %v1219
  %1223 = vrot.lane.b32.xlu0 %v950, 96
  %v1224 = vpop.permute.xlu0 %1223
  %1225 = vrot.lane.b32.xlu0 %v957, 96
  %v1226 = vpop.permute.xlu0 %1225
  %v1227 = vsel %vm397, %v1224, %v1226
  %1231 = vrot.lane.b32.xlu0 %v1136, 96
  %v1232 = vpop.permute.xlu0 %1231
  %v1234 = vsel %vm397, %v1226, %v1232
  %v1235 = vld [vmem:[%s3] sm:$0xff]
  %v1236 = vld [vmem:[%s3 + $0x8] sm:$0xff]
  %v1237 = vld [vmem:[%s3 + $0x10] sm:$0xff]
  %v1238 = vld [vmem:[%s3 + $0x18] sm:$0xff]
  %v1239 = vld [vmem:[%s3 + $0x20] sm:$0xff]
  %v1240 = vld [vmem:[%s3 + $0x28] sm:$0xff]
  %v1241 = vld [vmem:[%s3 + $0x30] sm:$0xff]
  %v1242 = vld [vmem:[%s3 + $0x38] sm:$0xff]
  %v1243 = vld [vmem:[%s3 + $0x40] sm:$0xff]
  %v1244 = vld [vmem:[%s3 + $0x48] sm:$0xff]
  %v1245 = vld [vmem:[%s3 + $0x50] sm:$0xff]
  %v1246 = vld [vmem:[%s3 + $0x58] sm:$0xff]
  %v1247 = vld [vmem:[%s3 + $0x60] sm:$0xff]
  %v1248 = vld [vmem:[%s3 + $0x68] sm:$0xff]
  %v1249 = vld [vmem:[%s3 + $0x70] sm:$0xff]
  %v1250 = vld [vmem:[%s3 + $0x78] sm:$0xff]
  %v1251 = vld [vmem:[%s3 + $0x80] sm:$0xff]
  %v1252 = vld [vmem:[%s3 + $0x88] sm:$0xff]
  %v1253 = vld [vmem:[%s3 + $0x90] sm:$0xff]
  %v1254 = vld [vmem:[%s3 + $0x98] sm:$0xff]
  %v1255 = vld [vmem:[%s3 + $0xa0] sm:$0xff]
  %v1256 = vld [vmem:[%s3 + $0xa8] sm:$0xff]
  %v1257 = vld [vmem:[%s3 + $0xb0] sm:$0xff]
  %v1258 = vld [vmem:[%s3 + $0xb8] sm:$0xff]
  %v1259 = vld [vmem:[%s3 + $0xc0] sm:$0xff]
  %v1260 = vld [vmem:[%s3 + $0xc8] sm:$0xff]
  %v1261 = vld [vmem:[%s3 + $0xd0] sm:$0xff]
  %v1262 = vld [vmem:[%s3 + $0xd8] sm:$0xff]
  %v1263 = vld [vmem:[%s3 + $0xe0] sm:$0xff]
  %v1264 = vld [vmem:[%s3 + $0xe8] sm:$0xff]
  %v1265 = vld [vmem:[%s3 + $0xf0] sm:$0xff]
  %v1266 = vld [vmem:[%s3 + $0xf8] sm:$0xff]
  %v1267 = vld [vmem:[%s3 + $0x100] sm:$0xff]
  %v1268 = vld [vmem:[%s3 + $0x108] sm:$0xff]
  %v1269 = vld [vmem:[%s3 + $0x110] sm:$0xff]
  %v1270 = vld [vmem:[%s3 + $0x118] sm:$0xff]
  %v1271 = vsel %vm153, %v1136, 0
  %1273 = vmatprep.subr.mxu0 0.0
  %1274 = vmatpush1.msra.mxu0 %v1235
  %1275 = vmatprep.subr.mxu0 0.0
  %1276 = vmatpush1.msra.mxu0 %v1236
  %1277 = vmatprep.subr.mxu0 0.0
  %1278 = vmatpush1.msra.mxu0 %v1237
  %1279 = vmatprep.subr.mxu0 0.0
  %1280 = vmatpush1.msra.mxu0 %v1238
  %1281 = vmatprep.subr.mxu0 0.0
  %1282 = vmatpush1.msra.mxu0 %v1239
  %1283 = vmatprep.subr.mxu0 0.0
  %1284 = vmatpush1.msra.mxu0 %v1240
  %1285 = vmatprep.subr.mxu0 0.0
  %1286 = vmatpush1.msra.mxu0 %v1241
  %1287 = vmatprep.subr.mxu0 0.0
  %1288 = vmatpush1.msra.mxu0 %v1242
  %1289 = vmatprep.subr.mxu0 0.0
  %1290 = vmatpush1.msra.mxu0 %v1243
  %1291 = vmatprep.subr.mxu0 0.0
  %1292 = vmatpush1.msra.mxu0 %v1244
  %1293 = vmatprep.subr.mxu0 0.0
  %1294 = vmatpush1.msra.mxu0 %v1245
  %1295 = vmatprep.subr.mxu0 0.0
  %1296 = vmatpush1.msra.mxu0 %v1246
  %1297 = vmatprep.subr.mxu0 0.0
  %1298 = vmatpush1.msra.mxu0 %v1247
  %1299 = vmatprep.subr.mxu0 0.0
  %1300 = vmatpush1.msra.mxu0 %v1248
  %1301 = vmatprep.subr.mxu0 0.0
  %1302 = vmatpush1.msra.mxu0 %v1249
  %1303 = vmatprep.subr.mxu0 0.0
  %1304 = vmatpush1.msra.mxu0 %v1250
  %1305 = vmatprep.subr.mxu0 0.0
  %1306 = vmatpush1.msra.mxu0 %v1251
  %1307 = vmatprep.subr.mxu0 0.0
  %1308 = vmatpush1.msra.mxu0 %v1252
  %1309 = vmatprep.subr.mxu0 0.0
  %1310 = vmatpush1.msra.mxu0 %v1253
  %1311 = vmatprep.subr.mxu0 0.0
  %1312 = vmatpush1.msra.mxu0 %v1254
  %1313 = vmatprep.subr.mxu0 0.0
  %1314 = vmatpush1.msra.mxu0 %v1255
  %1315 = vmatprep.subr.mxu0 0.0
  %1316 = vmatpush1.msra.mxu0 %v1256
  %1317 = vmatprep.subr.mxu0 0.0
  %1318 = vmatpush1.msra.mxu0 %v1257
  %1319 = vmatprep.subr.mxu0 0.0
  %1320 = vmatpush1.msra.mxu0 %v1258
  %1321 = vmatprep.subr.mxu0 0.0
  %1322 = vmatpush1.msra.mxu0 %v1259
  %1323 = vmatprep.subr.mxu0 0.0
  %1324 = vmatpush1.msra.mxu0 %v1260
  %1325 = vmatprep.subr.mxu0 0.0
  %1326 = vmatpush1.msra.mxu0 %v1261
  %1327 = vmatprep.subr.mxu0 0.0
  %1328 = vmatpush1.msra.mxu0 %v1262
  %1329 = vmatprep.subr.mxu0 0.0
  %1330 = vmatpush1.msra.mxu0 %v1263
  %1331 = vmatprep.subr.mxu0 0.0
  %1332 = vmatpush1.msra.mxu0 %v1264
  %1333 = vmatprep.subr.mxu0 0.0
  %1334 = vmatpush1.msra.mxu0 %v1265
  %1335 = vmatprep.subr.mxu0 0.0
  %1336 = vmatpush1.msra.mxu0 %v1266
  %1337 = vmatprep.mubr.f32.mxu0 %v1234
  %1338 = vmatmul.mubr.f32.gmra.mrb[0].mxu0 %v1227
  %v1339 = vpop.f32.mrb[0].mxu0
  %v1340 = vadd.f32 %v151, %v1339
  %v1341 = vpop.f32.mrb[0].mxu0
  %1342 = vdwg.mxu0
  %1343 = vmatprep.subr.mxu0 0.0
  %1344 = vmatpush1.msra.mxu0 %v1267
  %1345 = vmatprep.subr.mxu0 0.0
  %1346 = vmatpush1.msra.mxu0 %v1268
  %1347 = vmatprep.subr.mxu0 0.0
  %1348 = vmatpush1.msra.mxu0 %v1269
  %1349 = vmatprep.subr.mxu0 0.0
  %1350 = vmatpush1.msra.mxu0 %v1270
  %1351 = vmatprep.subr.mxu0 0.0
  %1352 = vmatpush1.msra.mxu0 0.0
  %1353 = vmatprep.subr.mxu0 0.0
  %1354 = vmatpush1.msra.mxu0 0.0
  %1355 = vmatprep.subr.mxu0 0.0
  %1356 = vmatpush1.msra.mxu0 0.0
  %1357 = vmatprep.subr.mxu0 0.0
  %1358 = vmatpush1.msra.mxu0 0.0
  %1359 = vmatprep.subr.mxu0 0.0
  %1360 = vmatpush1.msra.mxu0 0.0
  %1361 = vmatprep.subr.mxu0 0.0
  %1362 = vmatpush1.msra.mxu0 0.0
  %1363 = vmatprep.subr.mxu0 0.0
  %1364 = vmatpush1.msra.mxu0 0.0
  %1365 = vmatprep.subr.mxu0 0.0
  %1366 = vmatpush1.msra.mxu0 0.0
  %1367 = vmatprep.subr.mxu0 0.0
  %1368 = vmatpush1.msra.mxu0 0.0
  %1369 = vmatprep.subr.mxu0 0.0
  %1370 = vmatpush1.msra.mxu0 0.0
  %1371 = vmatprep.subr.mxu0 0.0
  %1372 = vmatpush1.msra.mxu0 0.0
  %1373 = vmatprep.subr.mxu0 0.0
  %1374 = vmatpush1.msra.mxu0 0.0
  %1375 = vmatprep.subr.mxu0 0.0
  %1376 = vmatpush1.msra.mxu0 0.0
  %1377 = vmatprep.subr.mxu0 0.0
  %1378 = vmatpush1.msra.mxu0 0.0
  %1379 = vmatprep.subr.mxu0 0.0
  %1380 = vmatpush1.msra.mxu0 0.0
  %1381 = vmatprep.subr.mxu0 0.0
  %1382 = vmatpush1.msra.mxu0 0.0
  %1383 = vmatprep.subr.mxu0 0.0
  %1384 = vmatpush1.msra.mxu0 0.0
  %1385 = vmatprep.subr.mxu0 0.0
  %1386 = vmatpush1.msra.mxu0 0.0
  %1387 = vmatprep.subr.mxu0 0.0
  %1388 = vmatpush1.msra.mxu0 0.0
  %1389 = vmatprep.subr.mxu0 0.0
  %1390 = vmatpush1.msra.mxu0 0.0
  %1391 = vmatprep.subr.mxu0 0.0
  %1392 = vmatpush1.msra.mxu0 0.0
  %1393 = vmatprep.subr.mxu0 0.0
  %1394 = vmatpush1.msra.mxu0 0.0
  %1395 = vmatprep.subr.mxu0 0.0
  %1396 = vmatpush1.msra.mxu0 0.0
  %1397 = vmatprep.subr.mxu0 0.0
  %1398 = vmatpush1.msra.mxu0 0.0
  %1399 = vmatprep.subr.mxu0 0.0
  %1400 = vmatpush1.msra.mxu0 0.0
  %1401 = vmatprep.subr.mxu0 0.0
  %1402 = vmatpush1.msra.mxu0 0.0
  %1403 = vmatprep.subr.mxu0 0.0
  %1404 = vmatpush1.msra.mxu0 0.0
  %1405 = vmatprep.subr.mxu0 0.0
  %1406 = vmatpush1.msra.mxu0 0.0
  %1407 = vmatprep.mubr.f32.mxu0 0.0
  %1408 = vmatmul.mubr.f32.gmra.mrb[0].mxu0 %v1271
  %v1409 = vpop.f32.mrb[0].mxu0
  %v1410 = vadd.f32 %v1340, %v1409
  %v1411 = vpop.f32.mrb[0].mxu0
  %1412 = vdwg.mxu0
  %v1413 = vmax.f32 %v1410, 0.0
  %v1414 = vtanh.pop %v1410
  %1416 = vrot.lane.b32.xlu0 %v1414, 96
  %v1417 = vpop.permute.xlu0 %1416
  %v1418 = vsel %vm308, %v1417, 0
  %1420 = vmatprep.subr.mxu0 0.0
  %1421 = vmatpush1.msra.mxu0 %v313
  %1422 = vmatprep.subr.mxu0 0.0
  %1423 = vmatpush1.msra.mxu0 0.0
  %1424 = vmatprep.subr.mxu0 0.0
  %1425 = vmatpush1.msra.mxu0 0.0
  %1426 = vmatprep.subr.mxu0 0.0
  %1427 = vmatpush1.msra.mxu0 0.0
  %1428 = vmatprep.subr.mxu0 0.0
  %1429 = vmatpush1.msra.mxu0 0.0
  %1430 = vmatprep.subr.mxu0 0.0
  %1431 = vmatpush1.msra.mxu0 0.0
  %1432 = vmatprep.subr.mxu0 0.0
  %1433 = vmatpush1.msra.mxu0 0.0
  %1434 = vmatprep.subr.mxu0 0.0
  %1435 = vmatpush1.msra.mxu0 0.0
  %1436 = vmatprep.subr.mxu0 0.0
  %1437 = vmatpush1.msra.mxu0 0.0
  %1438 = vmatprep.subr.mxu0 0.0
  %1439 = vmatpush1.msra.mxu0 0.0
  %1440 = vmatprep.subr.mxu0 0.0
  %1441 = vmatpush1.msra.mxu0 0.0
  %1442 = vmatprep.subr.mxu0 0.0
  %1443 = vmatpush1.msra.mxu0 0.0
  %1444 = vmatprep.subr.mxu0 0.0
  %1445 = vmatpush1.msra.mxu0 0.0
  %1446 = vmatprep.subr.mxu0 0.0
  %1447 = vmatpush1.msra.mxu0 0.0
  %1448 = vmatprep.subr.mxu0 0.0
  %1449 = vmatpush1.msra.mxu0 0.0
  %1450 = vmatprep.subr.mxu0 0.0
  %1451 = vmatpush1.msra.mxu0 0.0
  %1452 = vmatprep.subr.mxu0 0.0
  %1453 = vmatpush1.msra.mxu0 0.0
  %1454 = vmatprep.subr.mxu0 0.0
  %1455 = vmatpush1.msra.mxu0 0.0
  %1456 = vmatprep.subr.mxu0 0.0
  %1457 = vmatpush1.msra.mxu0 0.0
  %1458 = vmatprep.subr.mxu0 0.0
  %1459 = vmatpush1.msra.mxu0 0.0
  %1460 = vmatprep.subr.mxu0 0.0
  %1461 = vmatpush1.msra.mxu0 0.0
  %1462 = vmatprep.subr.mxu0 0.0
  %1463 = vmatpush1.msra.mxu0 0.0
  %1464 = vmatprep.subr.mxu0 0.0
  %1465 = vmatpush1.msra.mxu0 0.0
  %1466 = vmatprep.subr.mxu0 0.0
  %1467 = vmatpush1.msra.mxu0 0.0
  %1468 = vmatprep.subr.mxu0 0.0
  %1469 = vmatpush1.msra.mxu0 0.0
  %1470 = vmatprep.subr.mxu0 0.0
  %1471 = vmatpush1.msra.mxu0 0.0
  %1472 = vmatprep.subr.mxu0 0.0
  %1473 = vmatpush1.msra.mxu0 0.0
  %1474 = vmatprep.subr.mxu0 0.0
  %1475 = vmatpush1.msra.mxu0 0.0
  %1476 = vmatprep.subr.mxu0 0.0
  %1477 = vmatpush1.msra.mxu0 0.0
  %1478 = vmatprep.subr.mxu0 0.0
  %1479 = vmatpush1.msra.mxu0 0.0
  %1480 = vmatprep.subr.mxu0 0.0
  %1481 = vmatpush1.msra.mxu0 0.0
  %1482 = vmatprep.subr.mxu0 0.0
  %1483 = vmatpush1.msra.mxu0 0.0
  %1484 = vmatprep.mubr.f32.mxu0 0.0
  %1485 = vmatmul.mubr.f32.gmra.mrb[0].mxu0 %v1418
  %v1486 = vpop.f32.mrb[0].mxu0
  %v1487 = vadd.f32 %v303, %v1486
  %v1488 = vpop.f32.mrb[0].mxu0
  %1489 = vdwg.mxu0
  %v1490 = vxor.u32 %v1487, 2147483648
  %v1491 = vmul.f32 %v1490, 1.442695
  %v1492 = vpow.pop %v1491
  %v1493 = vadd.f32 %v1492, 1.0
  %v1494 = vrcp.pop %v1493
  %v1495 = vmul.f32 1.0, %v1494
  %v1496 = vsel %vm112, %v1495, %v1487
  %s1497 = scalar_lea.vmem %s6, 32
  %1498 = vst.msk [vmem:[%s1497] sm:$0xff] %vm392, %v1496
  %1500 = vrot.lane.b32.xlu0 %v1227, 96
  %v1501 = vpop.permute.xlu0 %1500
  %1502 = vrot.lane.b32.xlu0 %v1234, 96
  %v1503 = vpop.permute.xlu0 %1502
  %v1504 = vsel %vm397, %v1501, %v1503
  %1508 = vrot.lane.b32.xlu0 %v1413, 96
  %v1509 = vpop.permute.xlu0 %1508
  %v1511 = vsel %vm397, %v1503, %v1509
  %v1512 = vld [vmem:[%s3] sm:$0xff]
  %v1513 = vld [vmem:[%s3 + $0x8] sm:$0xff]
  %v1514 = vld [vmem:[%s3 + $0x10] sm:$0xff]
  %v1515 = vld [vmem:[%s3 + $0x18] sm:$0xff]
  %v1516 = vld [vmem:[%s3 + $0x20] sm:$0xff]
  %v1517 = vld [vmem:[%s3 + $0x28] sm:$0xff]
  %v1518 = vld [vmem:[%s3 + $0x30] sm:$0xff]
  %v1519 = vld [vmem:[%s3 + $0x38] sm:$0xff]
  %v1520 = vld [vmem:[%s3 + $0x40] sm:$0xff]
  %v1521 = vld [vmem:[%s3 + $0x48] sm:$0xff]
  %v1522 = vld [vmem:[%s3 + $0x50] sm:$0xff]
  %v1523 = vld [vmem:[%s3 + $0x58] sm:$0xff]
  %v1524 = vld [vmem:[%s3 + $0x60] sm:$0xff]
  %v1525 = vld [vmem:[%s3 + $0x68] sm:$0xff]
  %v1526 = vld [vmem:[%s3 + $0x70] sm:$0xff]
  %v1527 = vld [vmem:[%s3 + $0x78] sm:$0xff]
  %v1528 = vld [vmem:[%s3 + $0x80] sm:$0xff]
  %v1529 = vld [vmem:[%s3 + $0x88] sm:$0xff]
  %v1530 = vld [vmem:[%s3 + $0x90] sm:$0xff]
  %v1531 = vld [vmem:[%s3 + $0x98] sm:$0xff]
  %v1532 = vld [vmem:[%s3 + $0xa0] sm:$0xff]
  %v1533 = vld [vmem:[%s3 + $0xa8] sm:$0xff]
  %v1534 = vld [vmem:[%s3 + $0xb0] sm:$0xff]
  %v1535 = vld [vmem:[%s3 + $0xb8] sm:$0xff]
  %v1536 = vld [vmem:[%s3 + $0xc0] sm:$0xff]
  %v1537 = vld [vmem:[%s3 + $0xc8] sm:$0xff]
  %v1538 = vld [vmem:[%s3 + $0xd0] sm:$0xff]
  %v1539 = vld [vmem:[%s3 + $0xd8] sm:$0xff]
  %v1540 = vld [vmem:[%s3 + $0xe0] sm:$0xff]
  %v1541 = vld [vmem:[%s3 + $0xe8] sm:$0xff]
  %v1542 = vld [vmem:[%s3 + $0xf0] sm:$0xff]
  %v1543 = vld [vmem:[%s3 + $0xf8] sm:$0xff]
  %v1544 = vld [vmem:[%s3 + $0x100] sm:$0xff]
  %v1545 = vld [vmem:[%s3 + $0x108] sm:$0xff]
  %v1546 = vld [vmem:[%s3 + $0x110] sm:$0xff]
  %v1547 = vld [vmem:[%s3 + $0x118] sm:$0xff]
  %v1548 = vsel %vm153, %v1413, 0
  %1550 = vmatprep.subr.mxu0 0.0
  %1551 = vmatpush1.msra.mxu0 %v1512
  %1552 = vmatprep.subr.mxu0 0.0
  %1553 = vmatpush1.msra.mxu0 %v1513
  %1554 = vmatprep.subr.mxu0 0.0
  %1555 = vmatpush1.msra.mxu0 %v1514
  %1556 = vmatprep.subr.mxu0 0.0
  %1557 = vmatpush1.msra.mxu0 %v1515
  %1558 = vmatprep.subr.mxu0 0.0
  %1559 = vmatpush1.msra.mxu0 %v1516
  %1560 = vmatprep.subr.mxu0 0.0
  %1561 = vmatpush1.msra.mxu0 %v1517
  %1562 = vmatprep.subr.mxu0 0.0
  %1563 = vmatpush1.msra.mxu0 %v1518
  %1564 = vmatprep.subr.mxu0 0.0
  %1565 = vmatpush1.msra.mxu0 %v1519
  %1566 = vmatprep.subr.mxu0 0.0
  %1567 = vmatpush1.msra.mxu0 %v1520
  %1568 = vmatprep.subr.mxu0 0.0
  %1569 = vmatpush1.msra.mxu0 %v1521
  %1570 = vmatprep.subr.mxu0 0.0
  %1571 = vmatpush1.msra.mxu0 %v1522
  %1572 = vmatprep.subr.mxu0 0.0
  %1573 = vmatpush1.msra.mxu0 %v1523
  %1574 = vmatprep.subr.mxu0 0.0
  %1575 = vmatpush1.msra.mxu0 %v1524
  %1576 = vmatprep.subr.mxu0 0.0
  %1577 = vmatpush1.msra.mxu0 %v1525
  %1578 = vmatprep.subr.mxu0 0.0
  %1579 = vmatpush1.msra.mxu0 %v1526
  %1580 = vmatprep.subr.mxu0 0.0
  %1581 = vmatpush1.msra.mxu0 %v1527
  %1582 = vmatprep.subr.mxu0 0.0
  %1583 = vmatpush1.msra.mxu0 %v1528
  %1584 = vmatprep.subr.mxu0 0.0
  %1585 = vmatpush1.msra.mxu0 %v1529
  %1586 = vmatprep.subr.mxu0 0.0
  %1587 = vmatpush1.msra.mxu0 %v1530
  %1588 = vmatprep.subr.mxu0 0.0
  %1589 = vmatpush1.msra.mxu0 %v1531
  %1590 = vmatprep.subr.mxu0 0.0
  %1591 = vmatpush1.msra.mxu0 %v1532
  %1592 = vmatprep.subr.mxu0 0.0
  %1593 = vmatpush1.msra.mxu0 %v1533
  %1594 = vmatprep.subr.mxu0 0.0
  %1595 = vmatpush1.msra.mxu0 %v1534
  %1596 = vmatprep.subr.mxu0 0.0
  %1597 = vmatpush1.msra.mxu0 %v1535
  %1598 = vmatprep.subr.mxu0 0.0
  %1599 = vmatpush1.msra.mxu0 %v1536
  %1600 = vmatprep.subr.mxu0 0.0
  %1601 = vmatpush1.msra.mxu0 %v1537
  %1602 = vmatprep.subr.mxu0 0.0
  %1603 = vmatpush1.msra.mxu0 %v1538
  %1604 = vmatprep.subr.mxu0 0.0
  %1605 = vmatpush1.msra.mxu0 %v1539
  %1606 = vmatprep.subr.mxu0 0.0
  %1607 = vmatpush1.msra.mxu0 %v1540
  %1608 = vmatprep.subr.mxu0 0.0
  %1609 = vmatpush1.msra.mxu0 %v1541
  %1610 = vmatprep.subr.mxu0 0.0
  %1611 = vmatpush1.msra.mxu0 %v1542
  %1612 = vmatprep.subr.mxu0 0.0
  %1613 = vmatpush1.msra.mxu0 %v1543
  %1614 = vmatprep.mubr.f32.mxu0 %v1511
  %1615 = vmatmul.mubr.f32.gmra.mrb[0].mxu0 %v1504
  %v1616 = vpop.f32.mrb[0].mxu0
  %v1617 = vadd.f32 %v151, %v1616
  %v1618 = vpop.f32.mrb[0].mxu0
  %1619 = vdwg.mxu0
  %1620 = vmatprep.subr.mxu0 0.0
  %1621 = vmatpush1.msra.mxu0 %v1544
  %1622 = vmatprep.subr.mxu0 0.0
  %1623 = vmatpush1.msra.mxu0 %v1545
  %1624 = vmatprep.subr.mxu0 0.0
  %1625 = vmatpush1.msra.mxu0 %v1546
  %1626 = vmatprep.subr.mxu0 0.0
  %1627 = vmatpush1.msra.mxu0 %v1547
  %1628 = vmatprep.subr.mxu0 0.0
  %1629 = vmatpush1.msra.mxu0 0.0
  %1630 = vmatprep.subr.mxu0 0.0
  %1631 = vmatpush1.msra.mxu0 0.0
  %1632 = vmatprep.subr.mxu0 0.0
  %1633 = vmatpush1.msra.mxu0 0.0
  %1634 = vmatprep.subr.mxu0 0.0
  %1635 = vmatpush1.msra.mxu0 0.0
  %1636 = vmatprep.subr.mxu0 0.0
  %1637 = vmatpush1.msra.mxu0 0.0
  %1638 = vmatprep.subr.mxu0 0.0
  %1639 = vmatpush1.msra.mxu0 0.0
  %1640 = vmatprep.subr.mxu0 0.0
  %1641 = vmatpush1.msra.mxu0 0.0
  %1642 = vmatprep.subr.mxu0 0.0
  %1643 = vmatpush1.msra.mxu0 0.0
  %1644 = vmatprep.subr.mxu0 0.0
  %1645 = vmatpush1.msra.mxu0 0.0
  %1646 = vmatprep.subr.mxu0 0.0
  %1647 = vmatpush1.msra.mxu0 0.0
  %1648 = vmatprep.subr.mxu0 0.0
  %1649 = vmatpush1.msra.mxu0 0.0
  %1650 = vmatprep.subr.mxu0 0.0
  %1651 = vmatpush1.msra.mxu0 0.0
  %1652 = vmatprep.subr.mxu0 0.0
  %1653 = vmatpush1.msra.mxu0 0.0
  %1654 = vmatprep.subr.mxu0 0.0
  %1655 = vmatpush1.msra.mxu0 0.0
  %1656 = vmatprep.subr.mxu0 0.0
  %1657 = vmatpush1.msra.mxu0 0.0
  %1658 = vmatprep.subr.mxu0 0.0
  %1659 = vmatpush1.msra.mxu0 0.0
  %1660 = vmatprep.subr.mxu0 0.0
  %1661 = vmatpush1.msra.mxu0 0.0
  %1662 = vmatprep.subr.mxu0 0.0
  %1663 = vmatpush1.msra.mxu0 0.0
  %1664 = vmatprep.subr.mxu0 0.0
  %1665 = vmatpush1.msra.mxu0 0.0
  %1666 = vmatprep.subr.mxu0 0.0
  %1667 = vmatpush1.msra.mxu0 0.0
  %1668 = vmatprep.subr.mxu0 0.0
  %1669 = vmatpush1.msra.mxu0 0.0
  %1670 = vmatprep.subr.mxu0 0.0
  %1671 = vmatpush1.msra.mxu0 0.0
  %1672 = vmatprep.subr.mxu0 0.0
  %1673 = vmatpush1.msra.mxu0 0.0
  %1674 = vmatprep.subr.mxu0 0.0
  %1675 = vmatpush1.msra.mxu0 0.0
  %1676 = vmatprep.subr.mxu0 0.0
  %1677 = vmatpush1.msra.mxu0 0.0
  %1678 = vmatprep.subr.mxu0 0.0
  %1679 = vmatpush1.msra.mxu0 0.0
  %1680 = vmatprep.subr.mxu0 0.0
  %1681 = vmatpush1.msra.mxu0 0.0
  %1682 = vmatprep.subr.mxu0 0.0
  %1683 = vmatpush1.msra.mxu0 0.0
  %1684 = vmatprep.mubr.f32.mxu0 0.0
  %1685 = vmatmul.mubr.f32.gmra.mrb[0].mxu0 %v1548
  %v1686 = vpop.f32.mrb[0].mxu0
  %v1687 = vadd.f32 %v1617, %v1686
  %v1688 = vpop.f32.mrb[0].mxu0
  %1689 = vdwg.mxu0
  %v1690 = vmax.f32 %v1687, 0.0
  %v1691 = vtanh.pop %v1687
  %1693 = vrot.lane.b32.xlu0 %v1691, 96
  %v1694 = vpop.permute.xlu0 %1693
  %v1695 = vsel %vm308, %v1694, 0
  %1697 = vmatprep.subr.mxu0 0.0
  %1698 = vmatpush1.msra.mxu0 %v313
  %1699 = vmatprep.subr.mxu0 0.0
  %1700 = vmatpush1.msra.mxu0 0.0
  %1701 = vmatprep.subr.mxu0 0.0
  %1702 = vmatpush1.msra.mxu0 0.0
  %1703 = vmatprep.subr.mxu0 0.0
  %1704 = vmatpush1.msra.mxu0 0.0
  %1705 = vmatprep.subr.mxu0 0.0
  %1706 = vmatpush1.msra.mxu0 0.0
  %1707 = vmatprep.subr.mxu0 0.0
  %1708 = vmatpush1.msra.mxu0 0.0
  %1709 = vmatprep.subr.mxu0 0.0
  %1710 = vmatpush1.msra.mxu0 0.0
  %1711 = vmatprep.subr.mxu0 0.0
  %1712 = vmatpush1.msra.mxu0 0.0
  %1713 = vmatprep.subr.mxu0 0.0
  %1714 = vmatpush1.msra.mxu0 0.0
  %1715 = vmatprep.subr.mxu0 0.0
  %1716 = vmatpush1.msra.mxu0 0.0
  %1717 = vmatprep.subr.mxu0 0.0
  %1718 = vmatpush1.msra.mxu0 0.0
  %1719 = vmatprep.subr.mxu0 0.0
  %1720 = vmatpush1.msra.mxu0 0.0
  %1721 = vmatprep.subr.mxu0 0.0
  %1722 = vmatpush1.msra.mxu0 0.0
  %1723 = vmatprep.subr.mxu0 0.0
  %1724 = vmatpush1.msra.mxu0 0.0
  %1725 = vmatprep.subr.mxu0 0.0
  %1726 = vmatpush1.msra.mxu0 0.0
  %1727 = vmatprep.subr.mxu0 0.0
  %1728 = vmatpush1.msra.mxu0 0.0
  %1729 = vmatprep.subr.mxu0 0.0
  %1730 = vmatpush1.msra.mxu0 0.0
  %1731 = vmatprep.subr.mxu0 0.0
  %1732 = vmatpush1.msra.mxu0 0.0
  %1733 = vmatprep.subr.mxu0 0.0
  %1734 = vmatpush1.msra.mxu0 0.0
  %1735 = vmatprep.subr.mxu0 0.0
  %1736 = vmatpush1.msra.mxu0 0.0
  %1737 = vmatprep.subr.mxu0 0.0
  %1738 = vmatpush1.msra.mxu0 0.0
  %1739 = vmatprep.subr.mxu0 0.0
  %1740 = vmatpush1.msra.mxu0 0.0
  %1741 = vmatprep.subr.mxu0 0.0
  %1742 = vmatpush1.msra.mxu0 0.0
  %1743 = vmatprep.subr.mxu0 0.0
  %1744 = vmatpush1.msra.mxu0 0.0
  %1745 = vmatprep.subr.mxu0 0.0
  %1746 = vmatpush1.msra.mxu0 0.0
  %1747 = vmatprep.subr.mxu0 0.0
  %1748 = vmatpush1.msra.mxu0 0.0
  %1749 = vmatprep.subr.mxu0 0.0
  %1750 = vmatpush1.msra.mxu0 0.0
  %1751 = vmatprep.subr.mxu0 0.0
  %1752 = vmatpush1.msra.mxu0 0.0
  %1753 = vmatprep.subr.mxu0 0.0
  %1754 = vmatpush1.msra.mxu0 0.0
  %1755 = vmatprep.subr.mxu0 0.0
  %1756 = vmatpush1.msra.mxu0 0.0
  %1757 = vmatprep.subr.mxu0 0.0
  %1758 = vmatpush1.msra.mxu0 0.0
  %1759 = vmatprep.subr.mxu0 0.0
  %1760 = vmatpush1.msra.mxu0 0.0
  %1761 = vmatprep.mubr.f32.mxu0 0.0
  %1762 = vmatmul.mubr.f32.gmra.mrb[0].mxu0 %v1695
  %v1763 = vpop.f32.mrb[0].mxu0
  %v1764 = vadd.f32 %v303, %v1763
  %v1765 = vpop.f32.mrb[0].mxu0
  %1766 = vdwg.mxu0
  %v1767 = vxor.u32 %v1764, 2147483648
  %v1768 = vmul.f32 %v1767, 1.442695
  %v1769 = vpow.pop %v1768
  %v1770 = vadd.f32 %v1769, 1.0
  %v1771 = vrcp.pop %v1770
  %v1772 = vmul.f32 1.0, %v1771
  %v1773 = vsel %vm112, %v1772, %v1764
  %s1774 = scalar_lea.vmem %s6, 40
  %1775 = vst.msk [vmem:[%s1774] sm:$0xff] %vm392, %v1773
  %1777 = vrot.lane.b32.xlu0 %v1504, 96
  %v1778 = vpop.permute.xlu0 %1777
  %1779 = vrot.lane.b32.xlu0 %v1511, 96
  %v1780 = vpop.permute.xlu0 %1779
  %v1781 = vsel %vm397, %v1778, %v1780
  %1785 = vrot.lane.b32.xlu0 %v1690, 96
  %v1786 = vpop.permute.xlu0 %1785
  %v1788 = vsel %vm397, %v1780, %v1786
  %v1789 = vld [vmem:[%s3] sm:$0xff]
  %v1790 = vld [vmem:[%s3 + $0x8] sm:$0xff]
  %v1791 = vld [vmem:[%s3 + $0x10] sm:$0xff]
  %v1792 = vld [vmem:[%s3 + $0x18] sm:$0xff]
  %v1793 = vld [vmem:[%s3 + $0x20] sm:$0xff]
  %v1794 = vld [vmem:[%s3 + $0x28] sm:$0xff]
  %v1795 = vld [vmem:[%s3 + $0x30] sm:$0xff]
  %v1796 = vld [vmem:[%s3 + $0x38] sm:$0xff]
  %v1797 = vld [vmem:[%s3 + $0x40] sm:$0xff]
  %v1798 = vld [vmem:[%s3 + $0x48] sm:$0xff]
  %v1799 = vld [vmem:[%s3 + $0x50] sm:$0xff]
  %v1800 = vld [vmem:[%s3 + $0x58] sm:$0xff]
  %v1801 = vld [vmem:[%s3 + $0x60] sm:$0xff]
  %v1802 = vld [vmem:[%s3 + $0x68] sm:$0xff]
  %v1803 = vld [vmem:[%s3 + $0x70] sm:$0xff]
  %v1804 = vld [vmem:[%s3 + $0x78] sm:$0xff]
  %v1805 = vld [vmem:[%s3 + $0x80] sm:$0xff]
  %v1806 = vld [vmem:[%s3 + $0x88] sm:$0xff]
  %v1807 = vld [vmem:[%s3 + $0x90] sm:$0xff]
  %v1808 = vld [vmem:[%s3 + $0x98] sm:$0xff]
  %v1809 = vld [vmem:[%s3 + $0xa0] sm:$0xff]
  %v1810 = vld [vmem:[%s3 + $0xa8] sm:$0xff]
  %v1811 = vld [vmem:[%s3 + $0xb0] sm:$0xff]
  %v1812 = vld [vmem:[%s3 + $0xb8] sm:$0xff]
  %v1813 = vld [vmem:[%s3 + $0xc0] sm:$0xff]
  %v1814 = vld [vmem:[%s3 + $0xc8] sm:$0xff]
  %v1815 = vld [vmem:[%s3 + $0xd0] sm:$0xff]
  %v1816 = vld [vmem:[%s3 + $0xd8] sm:$0xff]
  %v1817 = vld [vmem:[%s3 + $0xe0] sm:$0xff]
  %v1818 = vld [vmem:[%s3 + $0xe8] sm:$0xff]
  %v1819 = vld [vmem:[%s3 + $0xf0] sm:$0xff]
  %v1820 = vld [vmem:[%s3 + $0xf8] sm:$0xff]
  %v1821 = vld [vmem:[%s3 + $0x100] sm:$0xff]
  %v1822 = vld [vmem:[%s3 + $0x108] sm:$0xff]
  %v1823 = vld [vmem:[%s3 + $0x110] sm:$0xff]
  %v1824 = vld [vmem:[%s3 + $0x118] sm:$0xff]
  %v1825 = vsel %vm153, %v1690, 0
  %1827 = vmatprep.subr.mxu0 0.0
  %1828 = vmatpush1.msra.mxu0 %v1789
  %1829 = vmatprep.subr.mxu0 0.0
  %1830 = vmatpush1.msra.mxu0 %v1790
  %1831 = vmatprep.subr.mxu0 0.0
  %1832 = vmatpush1.msra.mxu0 %v1791
  %1833 = vmatprep.subr.mxu0 0.0
  %1834 = vmatpush1.msra.mxu0 %v1792
  %1835 = vmatprep.subr.mxu0 0.0
  %1836 = vmatpush1.msra.mxu0 %v1793
  %1837 = vmatprep.subr.mxu0 0.0
  %1838 = vmatpush1.msra.mxu0 %v1794
  %1839 = vmatprep.subr.mxu0 0.0
  %1840 = vmatpush1.msra.mxu0 %v1795
  %1841 = vmatprep.subr.mxu0 0.0
  %1842 = vmatpush1.msra.mxu0 %v1796
  %1843 = vmatprep.subr.mxu0 0.0
  %1844 = vmatpush1.msra.mxu0 %v1797
  %1845 = vmatprep.subr.mxu0 0.0
  %1846 = vmatpush1.msra.mxu0 %v1798
  %1847 = vmatprep.subr.mxu0 0.0
  %1848 = vmatpush1.msra.mxu0 %v1799
  %1849 = vmatprep.subr.mxu0 0.0
  %1850 = vmatpush1.msra.mxu0 %v1800
  %1851 = vmatprep.subr.mxu0 0.0
  %1852 = vmatpush1.msra.mxu0 %v1801
  %1853 = vmatprep.subr.mxu0 0.0
  %1854 = vmatpush1.msra.mxu0 %v1802
  %1855 = vmatprep.subr.mxu0 0.0
  %1856 = vmatpush1.msra.mxu0 %v1803
  %1857 = vmatprep.subr.mxu0 0.0
  %1858 = vmatpush1.msra.mxu0 %v1804
  %1859 = vmatprep.subr.mxu0 0.0
  %1860 = vmatpush1.msra.mxu0 %v1805
  %1861 = vmatprep.subr.mxu0 0.0
  %1862 = vmatpush1.msra.mxu0 %v1806
  %1863 = vmatprep.subr.mxu0 0.0
  %1864 = vmatpush1.msra.mxu0 %v1807
  %1865 = vmatprep.subr.mxu0 0.0
  %1866 = vmatpush1.msra.mxu0 %v1808
  %1867 = vmatprep.subr.mxu0 0.0
  %1868 = vmatpush1.msra.mxu0 %v1809
  %1869 = vmatprep.subr.mxu0 0.0
  %1870 = vmatpush1.msra.mxu0 %v1810
  %1871 = vmatprep.subr.mxu0 0.0
  %1872 = vmatpush1.msra.mxu0 %v1811
  %1873 = vmatprep.subr.mxu0 0.0
  %1874 = vmatpush1.msra.mxu0 %v1812
  %1875 = vmatprep.subr.mxu0 0.0
  %1876 = vmatpush1.msra.mxu0 %v1813
  %1877 = vmatprep.subr.mxu0 0.0
  %1878 = vmatpush1.msra.mxu0 %v1814
  %1879 = vmatprep.subr.mxu0 0.0
  %1880 = vmatpush1.msra.mxu0 %v1815
  %1881 = vmatprep.subr.mxu0 0.0
  %1882 = vmatpush1.msra.mxu0 %v1816
  %1883 = vmatprep.subr.mxu0 0.0
  %1884 = vmatpush1.msra.mxu0 %v1817
  %1885 = vmatprep.subr.mxu0 0.0
  %1886 = vmatpush1.msra.mxu0 %v1818
  %1887 = vmatprep.subr.mxu0 0.0
  %1888 = vmatpush1.msra.mxu0 %v1819
  %1889 = vmatprep.subr.mxu0 0.0
  %1890 = vmatpush1.msra.mxu0 %v1820
  %1891 = vmatprep.mubr.f32.mxu0 %v1788
  %1892 = vmatmul.mubr.f32.gmra.mrb[0].mxu0 %v1781
  %v1893 = vpop.f32.mrb[0].mxu0
  %v1894 = vadd.f32 %v151, %v1893
  %v1895 = vpop.f32.mrb[0].mxu0
  %1896 = vdwg.mxu0
  %1897 = vmatprep.subr.mxu0 0.0
  %1898 = vmatpush1.msra.mxu0 %v1821
  %1899 = vmatprep.subr.mxu0 0.0
  %1900 = vmatpush1.msra.mxu0 %v1822
  %1901 = vmatprep.subr.mxu0 0.0
  %1902 = vmatpush1.msra.mxu0 %v1823
  %1903 = vmatprep.subr.mxu0 0.0
  %1904 = vmatpush1.msra.mxu0 %v1824
  %1905 = vmatprep.subr.mxu0 0.0
  %1906 = vmatpush1.msra.mxu0 0.0
  %1907 = vmatprep.subr.mxu0 0.0
  %1908 = vmatpush1.msra.mxu0 0.0
  %1909 = vmatprep.subr.mxu0 0.0
  %1910 = vmatpush1.msra.mxu0 0.0
  %1911 = vmatprep.subr.mxu0 0.0
  %1912 = vmatpush1.msra.mxu0 0.0
  %1913 = vmatprep.subr.mxu0 0.0
  %1914 = vmatpush1.msra.mxu0 0.0
  %1915 = vmatprep.subr.mxu0 0.0
  %1916 = vmatpush1.msra.mxu0 0.0
  %1917 = vmatprep.subr.mxu0 0.0
  %1918 = vmatpush1.msra.mxu0 0.0
  %1919 = vmatprep.subr.mxu0 0.0
  %1920 = vmatpush1.msra.mxu0 0.0
  %1921 = vmatprep.subr.mxu0 0.0
  %1922 = vmatpush1.msra.mxu0 0.0
  %1923 = vmatprep.subr.mxu0 0.0
  %1924 = vmatpush1.msra.mxu0 0.0
  %1925 = vmatprep.subr.mxu0 0.0
  %1926 = vmatpush1.msra.mxu0 0.0
  %1927 = vmatprep.subr.mxu0 0.0
  %1928 = vmatpush1.msra.mxu0 0.0
  %1929 = vmatprep.subr.mxu0 0.0
  %1930 = vmatpush1.msra.mxu0 0.0
  %1931 = vmatprep.subr.mxu0 0.0
  %1932 = vmatpush1.msra.mxu0 0.0
  %1933 = vmatprep.subr.mxu0 0.0
  %1934 = vmatpush1.msra.mxu0 0.0
  %1935 = vmatprep.subr.mxu0 0.0
  %1936 = vmatpush1.msra.mxu0 0.0
  %1937 = vmatprep.subr.mxu0 0.0
  %1938 = vmatpush1.msra.mxu0 0.0
  %1939 = vmatprep.subr.mxu0 0.0
  %1940 = vmatpush1.msra.mxu0 0.0
  %1941 = vmatprep.subr.mxu0 0.0
  %1942 = vmatpush1.msra.mxu0 0.0
  %1943 = vmatprep.subr.mxu0 0.0
  %1944 = vmatpush1.msra.mxu0 0.0
  %1945 = vmatprep.subr.mxu0 0.0
  %1946 = vmatpush1.msra.mxu0 0.0
  %1947 = vmatprep.subr.mxu0 0.0
  %1948 = vmatpush1.msra.mxu0 0.0
  %1949 = vmatprep.subr.mxu0 0.0
  %1950 = vmatpush1.msra.mxu0 0.0
  %1951 = vmatprep.subr.mxu0 0.0
  %1952 = vmatpush1.msra.mxu0 0.0
  %1953 = vmatprep.subr.mxu0 0.0
  %1954 = vmatpush1.msra.mxu0 0.0
  %1955 = vmatprep.subr.mxu0 0.0
  %1956 = vmatpush1.msra.mxu0 0.0
  %1957 = vmatprep.subr.mxu0 0.0
  %1958 = vmatpush1.msra.mxu0 0.0
  %1959 = vmatprep.subr.mxu0 0.0
  %1960 = vmatpush1.msra.mxu0 0.0
  %1961 = vmatprep.mubr.f32.mxu0 0.0
  %1962 = vmatmul.mubr.f32.gmra.mrb[0].mxu0 %v1825
  %v1963 = vpop.f32.mrb[0].mxu0
  %v1964 = vadd.f32 %v1894, %v1963
  %v1965 = vpop.f32.mrb[0].mxu0
  %1966 = vdwg.mxu0
  %v1967 = vmax.f32 %v1964, 0.0
  %v1968 = vtanh.pop %v1964
  %1970 = vrot.lane.b32.xlu0 %v1968, 96
  %v1971 = vpop.permute.xlu0 %1970
  %v1972 = vsel %vm308, %v1971, 0
  %1974 = vmatprep.subr.mxu0 0.0
  %1975 = vmatpush1.msra.mxu0 %v313
  %1976 = vmatprep.subr.mxu0 0.0
  %1977 = vmatpush1.msra.mxu0 0.0
  %1978 = vmatprep.subr.mxu0 0.0
  %1979 = vmatpush1.msra.mxu0 0.0
  %1980 = vmatprep.subr.mxu0 0.0
  %1981 = vmatpush1.msra.mxu0 0.0
  %1982 = vmatprep.subr.mxu0 0.0
  %1983 = vmatpush1.msra.mxu0 0.0
  %1984 = vmatprep.subr.mxu0 0.0
  %1985 = vmatpush1.msra.mxu0 0.0
  %1986 = vmatprep.subr.mxu0 0.0
  %1987 = vmatpush1.msra.mxu0 0.0
  %1988 = vmatprep.subr.mxu0 0.0
  %1989 = vmatpush1.msra.mxu0 0.0
  %1990 = vmatprep.subr.mxu0 0.0
  %1991 = vmatpush1.msra.mxu0 0.0
  %1992 = vmatprep.subr.mxu0 0.0
  %1993 = vmatpush1.msra.mxu0 0.0
  %1994 = vmatprep.subr.mxu0 0.0
  %1995 = vmatpush1.msra.mxu0 0.0
  %1996 = vmatprep.subr.mxu0 0.0
  %1997 = vmatpush1.msra.mxu0 0.0
  %1998 = vmatprep.subr.mxu0 0.0
  %1999 = vmatpush1.msra.mxu0 0.0
  %2000 = vmatprep.subr.mxu0 0.0
  %2001 = vmatpush1.msra.mxu0 0.0
  %2002 = vmatprep.subr.mxu0 0.0
  %2003 = vmatpush1.msra.mxu0 0.0
  %2004 = vmatprep.subr.mxu0 0.0
  %2005 = vmatpush1.msra.mxu0 0.0
  %2006 = vmatprep.subr.mxu0 0.0
  %2007 = vmatpush1.msra.mxu0 0.0
  %2008 = vmatprep.subr.mxu0 0.0
  %2009 = vmatpush1.msra.mxu0 0.0
  %2010 = vmatprep.subr.mxu0 0.0
  %2011 = vmatpush1.msra.mxu0 0.0
  %2012 = vmatprep.subr.mxu0 0.0
  %2013 = vmatpush1.msra.mxu0 0.0
  %2014 = vmatprep.subr.mxu0 0.0
  %2015 = vmatpush1.msra.mxu0 0.0
  %2016 = vmatprep.subr.mxu0 0.0
  %2017 = vmatpush1.msra.mxu0 0.0
  %2018 = vmatprep.subr.mxu0 0.0
  %2019 = vmatpush1.msra.mxu0 0.0
  %2020 = vmatprep.subr.mxu0 0.0
  %2021 = vmatpush1.msra.mxu0 0.0
  %2022 = vmatprep.subr.mxu0 0.0
  %2023 = vmatpush1.msra.mxu0 0.0
  %2024 = vmatprep.subr.mxu0 0.0
  %2025 = vmatpush1.msra.mxu0 0.0
  %2026 = vmatprep.subr.mxu0 0.0
  %2027 = vmatpush1.msra.mxu0 0.0
  %2028 = vmatprep.subr.mxu0 0.0
  %2029 = vmatpush1.msra.mxu0 0.0
  %2030 = vmatprep.subr.mxu0 0.0
  %2031 = vmatpush1.msra.mxu0 0.0
  %2032 = vmatprep.subr.mxu0 0.0
  %2033 = vmatpush1.msra.mxu0 0.0
  %2034 = vmatprep.subr.mxu0 0.0
  %2035 = vmatpush1.msra.mxu0 0.0
  %2036 = vmatprep.subr.mxu0 0.0
  %2037 = vmatpush1.msra.mxu0 0.0
  %2038 = vmatprep.mubr.f32.mxu0 0.0
  %2039 = vmatmul.mubr.f32.gmra.mrb[0].mxu0 %v1972
  %v2040 = vpop.f32.mrb[0].mxu0
  %v2041 = vadd.f32 %v303, %v2040
  %v2042 = vpop.f32.mrb[0].mxu0
  %2043 = vdwg.mxu0
  %v2044 = vxor.u32 %v2041, 2147483648
  %v2045 = vmul.f32 %v2044, 1.442695
  %v2046 = vpow.pop %v2045
  %v2047 = vadd.f32 %v2046, 1.0
  %v2048 = vrcp.pop %v2047
  %v2049 = vmul.f32 1.0, %v2048
  %v2050 = vsel %vm112, %v2049, %v2041
  %s2051 = scalar_lea.vmem %s6, 48
  %2052 = vst.msk [vmem:[%s2051] sm:$0xff] %vm392, %v2050
  %2054 = vrot.lane.b32.xlu0 %v1781, 96
  %v2055 = vpop.permute.xlu0 %2054
  %2056 = vrot.lane.b32.xlu0 %v1788, 96
  %v2057 = vpop.permute.xlu0 %2056
  %v2058 = vsel %vm397, %v2055, %v2057
  %2062 = vrot.lane.b32.xlu0 %v1967, 96
  %v2063 = vpop.permute.xlu0 %2062
  %v2065 = vsel %vm397, %v2057, %v2063
  %v2066 = vld [vmem:[%s3] sm:$0xff]
  %v2067 = vld [vmem:[%s3 + $0x8] sm:$0xff]
  %v2068 = vld [vmem:[%s3 + $0x10] sm:$0xff]
  %v2069 = vld [vmem:[%s3 + $0x18] sm:$0xff]
  %v2070 = vld [vmem:[%s3 + $0x20] sm:$0xff]
  %v2071 = vld [vmem:[%s3 + $0x28] sm:$0xff]
  %v2072 = vld [vmem:[%s3 + $0x30] sm:$0xff]
  %v2073 = vld [vmem:[%s3 + $0x38] sm:$0xff]
  %v2074 = vld [vmem:[%s3 + $0x40] sm:$0xff]
  %v2075 = vld [vmem:[%s3 + $0x48] sm:$0xff]
  %v2076 = vld [vmem:[%s3 + $0x50] sm:$0xff]
  %v2077 = vld [vmem:[%s3 + $0x58] sm:$0xff]
  %v2078 = vld [vmem:[%s3 + $0x60] sm:$0xff]
  %v2079 = vld [vmem:[%s3 + $0x68] sm:$0xff]
  %v2080 = vld [vmem:[%s3 + $0x70] sm:$0xff]
  %v2081 = vld [vmem:[%s3 + $0x78] sm:$0xff]
  %v2082 = vld [vmem:[%s3 + $0x80] sm:$0xff]
  %v2083 = vld [vmem:[%s3 + $0x88] sm:$0xff]
  %v2084 = vld [vmem:[%s3 + $0x90] sm:$0xff]
  %v2085 = vld [vmem:[%s3 + $0x98] sm:$0xff]
  %v2086 = vld [vmem:[%s3 + $0xa0] sm:$0xff]
  %v2087 = vld [vmem:[%s3 + $0xa8] sm:$0xff]
  %v2088 = vld [vmem:[%s3 + $0xb0] sm:$0xff]
  %v2089 = vld [vmem:[%s3 + $0xb8] sm:$0xff]
  %v2090 = vld [vmem:[%s3 + $0xc0] sm:$0xff]
  %v2091 = vld [vmem:[%s3 + $0xc8] sm:$0xff]
  %v2092 = vld [vmem:[%s3 + $0xd0] sm:$0xff]
  %v2093 = vld [vmem:[%s3 + $0xd8] sm:$0xff]
  %v2094 = vld [vmem:[%s3 + $0xe0] sm:$0xff]
  %v2095 = vld [vmem:[%s3 + $0xe8] sm:$0xff]
  %v2096 = vld [vmem:[%s3 + $0xf0] sm:$0xff]
  %v2097 = vld [vmem:[%s3 + $0xf8] sm:$0xff]
  %v2098 = vld [vmem:[%s3 + $0x100] sm:$0xff]
  %v2099 = vld [vmem:[%s3 + $0x108] sm:$0xff]
  %v2100 = vld [vmem:[%s3 + $0x110] sm:$0xff]
  %v2101 = vld [vmem:[%s3 + $0x118] sm:$0xff]
  %v2102 = vsel %vm153, %v1967, 0
  %2104 = vmatprep.subr.mxu0 0.0
  %2105 = vmatpush1.msra.mxu0 %v2066
  %2106 = vmatprep.subr.mxu0 0.0
  %2107 = vmatpush1.msra.mxu0 %v2067
  %2108 = vmatprep.subr.mxu0 0.0
  %2109 = vmatpush1.msra.mxu0 %v2068
  %2110 = vmatprep.subr.mxu0 0.0
  %2111 = vmatpush1.msra.mxu0 %v2069
  %2112 = vmatprep.subr.mxu0 0.0
  %2113 = vmatpush1.msra.mxu0 %v2070
  %2114 = vmatprep.subr.mxu0 0.0
  %2115 = vmatpush1.msra.mxu0 %v2071
  %2116 = vmatprep.subr.mxu0 0.0
  %2117 = vmatpush1.msra.mxu0 %v2072
  %2118 = vmatprep.subr.mxu0 0.0
  %2119 = vmatpush1.msra.mxu0 %v2073
  %2120 = vmatprep.subr.mxu0 0.0
  %2121 = vmatpush1.msra.mxu0 %v2074
  %2122 = vmatprep.subr.mxu0 0.0
  %2123 = vmatpush1.msra.mxu0 %v2075
  %2124 = vmatprep.subr.mxu0 0.0
  %2125 = vmatpush1.msra.mxu0 %v2076
  %2126 = vmatprep.subr.mxu0 0.0
  %2127 = vmatpush1.msra.mxu0 %v2077
  %2128 = vmatprep.subr.mxu0 0.0
  %2129 = vmatpush1.msra.mxu0 %v2078
  %2130 = vmatprep.subr.mxu0 0.0
  %2131 = vmatpush1.msra.mxu0 %v2079
  %2132 = vmatprep.subr.mxu0 0.0
  %2133 = vmatpush1.msra.mxu0 %v2080
  %2134 = vmatprep.subr.mxu0 0.0
  %2135 = vmatpush1.msra.mxu0 %v2081
  %2136 = vmatprep.subr.mxu0 0.0
  %2137 = vmatpush1.msra.mxu0 %v2082
  %2138 = vmatprep.subr.mxu0 0.0
  %2139 = vmatpush1.msra.mxu0 %v2083
  %2140 = vmatprep.subr.mxu0 0.0
  %2141 = vmatpush1.msra.mxu0 %v2084
  %2142 = vmatprep.subr.mxu0 0.0
  %2143 = vmatpush1.msra.mxu0 %v2085
  %2144 = vmatprep.subr.mxu0 0.0
  %2145 = vmatpush1.msra.mxu0 %v2086
  %2146 = vmatprep.subr.mxu0 0.0
  %2147 = vmatpush1.msra.mxu0 %v2087
  %2148 = vmatprep.subr.mxu0 0.0
  %2149 = vmatpush1.msra.mxu0 %v2088
  %2150 = vmatprep.subr.mxu0 0.0
  %2151 = vmatpush1.msra.mxu0 %v2089
  %2152 = vmatprep.subr.mxu0 0.0
  %2153 = vmatpush1.msra.mxu0 %v2090
  %2154 = vmatprep.subr.mxu0 0.0
  %2155 = vmatpush1.msra.mxu0 %v2091
  %2156 = vmatprep.subr.mxu0 0.0
  %2157 = vmatpush1.msra.mxu0 %v2092
  %2158 = vmatprep.subr.mxu0 0.0
  %2159 = vmatpush1.msra.mxu0 %v2093
  %2160 = vmatprep.subr.mxu0 0.0
  %2161 = vmatpush1.msra.mxu0 %v2094
  %2162 = vmatprep.subr.mxu0 0.0
  %2163 = vmatpush1.msra.mxu0 %v2095
  %2164 = vmatprep.subr.mxu0 0.0
  %2165 = vmatpush1.msra.mxu0 %v2096
  %2166 = vmatprep.subr.mxu0 0.0
  %2167 = vmatpush1.msra.mxu0 %v2097
  %2168 = vmatprep.mubr.f32.mxu0 %v2065
  %2169 = vmatmul.mubr.f32.gmra.mrb[0].mxu0 %v2058
  %v2170 = vpop.f32.mrb[0].mxu0
  %v2171 = vadd.f32 %v151, %v2170
  %v2172 = vpop.f32.mrb[0].mxu0
  %2173 = vdwg.mxu0
  %2174 = vmatprep.subr.mxu0 0.0
  %2175 = vmatpush1.msra.mxu0 %v2098
  %2176 = vmatprep.subr.mxu0 0.0
  %2177 = vmatpush1.msra.mxu0 %v2099
  %2178 = vmatprep.subr.mxu0 0.0
  %2179 = vmatpush1.msra.mxu0 %v2100
  %2180 = vmatprep.subr.mxu0 0.0
  %2181 = vmatpush1.msra.mxu0 %v2101
  %2182 = vmatprep.subr.mxu0 0.0
  %2183 = vmatpush1.msra.mxu0 0.0
  %2184 = vmatprep.subr.mxu0 0.0
  %2185 = vmatpush1.msra.mxu0 0.0
  %2186 = vmatprep.subr.mxu0 0.0
  %2187 = vmatpush1.msra.mxu0 0.0
  %2188 = vmatprep.subr.mxu0 0.0
  %2189 = vmatpush1.msra.mxu0 0.0
  %2190 = vmatprep.subr.mxu0 0.0
  %2191 = vmatpush1.msra.mxu0 0.0
  %2192 = vmatprep.subr.mxu0 0.0
  %2193 = vmatpush1.msra.mxu0 0.0
  %2194 = vmatprep.subr.mxu0 0.0
  %2195 = vmatpush1.msra.mxu0 0.0
  %2196 = vmatprep.subr.mxu0 0.0
  %2197 = vmatpush1.msra.mxu0 0.0
  %2198 = vmatprep.subr.mxu0 0.0
  %2199 = vmatpush1.msra.mxu0 0.0
  %2200 = vmatprep.subr.mxu0 0.0
  %2201 = vmatpush1.msra.mxu0 0.0
  %2202 = vmatprep.subr.mxu0 0.0
  %2203 = vmatpush1.msra.mxu0 0.0
  %2204 = vmatprep.subr.mxu0 0.0
  %2205 = vmatpush1.msra.mxu0 0.0
  %2206 = vmatprep.subr.mxu0 0.0
  %2207 = vmatpush1.msra.mxu0 0.0
  %2208 = vmatprep.subr.mxu0 0.0
  %2209 = vmatpush1.msra.mxu0 0.0
  %2210 = vmatprep.subr.mxu0 0.0
  %2211 = vmatpush1.msra.mxu0 0.0
  %2212 = vmatprep.subr.mxu0 0.0
  %2213 = vmatpush1.msra.mxu0 0.0
  %2214 = vmatprep.subr.mxu0 0.0
  %2215 = vmatpush1.msra.mxu0 0.0
  %2216 = vmatprep.subr.mxu0 0.0
  %2217 = vmatpush1.msra.mxu0 0.0
  %2218 = vmatprep.subr.mxu0 0.0
  %2219 = vmatpush1.msra.mxu0 0.0
  %2220 = vmatprep.subr.mxu0 0.0
  %2221 = vmatpush1.msra.mxu0 0.0
  %2222 = vmatprep.subr.mxu0 0.0
  %2223 = vmatpush1.msra.mxu0 0.0
  %2224 = vmatprep.subr.mxu0 0.0
  %2225 = vmatpush1.msra.mxu0 0.0
  %2226 = vmatprep.subr.mxu0 0.0
  %2227 = vmatpush1.msra.mxu0 0.0
  %2228 = vmatprep.subr.mxu0 0.0
  %2229 = vmatpush1.msra.mxu0 0.0
  %2230 = vmatprep.subr.mxu0 0.0
  %2231 = vmatpush1.msra.mxu0 0.0
  %2232 = vmatprep.subr.mxu0 0.0
  %2233 = vmatpush1.msra.mxu0 0.0
  %2234 = vmatprep.subr.mxu0 0.0
  %2235 = vmatpush1.msra.mxu0 0.0
  %2236 = vmatprep.subr.mxu0 0.0
  %2237 = vmatpush1.msra.mxu0 0.0
  %2238 = vmatprep.mubr.f32.mxu0 0.0
  %2239 = vmatmul.mubr.f32.gmra.mrb[0].mxu0 %v2102
  %v2240 = vpop.f32.mrb[0].mxu0
  %v2241 = vadd.f32 %v2171, %v2240
  %v2242 = vpop.f32.mrb[0].mxu0
  %2243 = vdwg.mxu0
  %v2244 = vmax.f32 %v2241, 0.0
  %v2245 = vtanh.pop %v2241
  %2247 = vrot.lane.b32.xlu0 %v2245, 96
  %v2248 = vpop.permute.xlu0 %2247
  %v2249 = vsel %vm308, %v2248, 0
  %2251 = vmatprep.subr.mxu0 0.0
  %2252 = vmatpush1.msra.mxu0 %v313
  %2253 = vmatprep.subr.mxu0 0.0
  %2254 = vmatpush1.msra.mxu0 0.0
  %2255 = vmatprep.subr.mxu0 0.0
  %2256 = vmatpush1.msra.mxu0 0.0
  %2257 = vmatprep.subr.mxu0 0.0
  %2258 = vmatpush1.msra.mxu0 0.0
  %2259 = vmatprep.subr.mxu0 0.0
  %2260 = vmatpush1.msra.mxu0 0.0
  %2261 = vmatprep.subr.mxu0 0.0
  %2262 = vmatpush1.msra.mxu0 0.0
  %2263 = vmatprep.subr.mxu0 0.0
  %2264 = vmatpush1.msra.mxu0 0.0
  %2265 = vmatprep.subr.mxu0 0.0
  %2266 = vmatpush1.msra.mxu0 0.0
  %2267 = vmatprep.subr.mxu0 0.0
  %2268 = vmatpush1.msra.mxu0 0.0
  %2269 = vmatprep.subr.mxu0 0.0
  %2270 = vmatpush1.msra.mxu0 0.0
  %2271 = vmatprep.subr.mxu0 0.0
  %2272 = vmatpush1.msra.mxu0 0.0
  %2273 = vmatprep.subr.mxu0 0.0
  %2274 = vmatpush1.msra.mxu0 0.0
  %2275 = vmatprep.subr.mxu0 0.0
  %2276 = vmatpush1.msra.mxu0 0.0
  %2277 = vmatprep.subr.mxu0 0.0
  %2278 = vmatpush1.msra.mxu0 0.0
  %2279 = vmatprep.subr.mxu0 0.0
  %2280 = vmatpush1.msra.mxu0 0.0
  %2281 = vmatprep.subr.mxu0 0.0
  %2282 = vmatpush1.msra.mxu0 0.0
  %2283 = vmatprep.subr.mxu0 0.0
  %2284 = vmatpush1.msra.mxu0 0.0
  %2285 = vmatprep.subr.mxu0 0.0
  %2286 = vmatpush1.msra.mxu0 0.0
  %2287 = vmatprep.subr.mxu0 0.0
  %2288 = vmatpush1.msra.mxu0 0.0
  %2289 = vmatprep.subr.mxu0 0.0
  %2290 = vmatpush1.msra.mxu0 0.0
  %2291 = vmatprep.subr.mxu0 0.0
  %2292 = vmatpush1.msra.mxu0 0.0
  %2293 = vmatprep.subr.mxu0 0.0
  %2294 = vmatpush1.msra.mxu0 0.0
  %2295 = vmatprep.subr.mxu0 0.0
  %2296 = vmatpush1.msra.mxu0 0.0
  %2297 = vmatprep.subr.mxu0 0.0
  %2298 = vmatpush1.msra.mxu0 0.0
  %2299 = vmatprep.subr.mxu0 0.0
  %2300 = vmatpush1.msra.mxu0 0.0
  %2301 = vmatprep.subr.mxu0 0.0
  %2302 = vmatpush1.msra.mxu0 0.0
  %2303 = vmatprep.subr.mxu0 0.0
  %2304 = vmatpush1.msra.mxu0 0.0
  %2305 = vmatprep.subr.mxu0 0.0
  %2306 = vmatpush1.msra.mxu0 0.0
  %2307 = vmatprep.subr.mxu0 0.0
  %2308 = vmatpush1.msra.mxu0 0.0
  %2309 = vmatprep.subr.mxu0 0.0
  %2310 = vmatpush1.msra.mxu0 0.0
  %2311 = vmatprep.subr.mxu0 0.0
  %2312 = vmatpush1.msra.mxu0 0.0
  %2313 = vmatprep.subr.mxu0 0.0
  %2314 = vmatpush1.msra.mxu0 0.0
  %2315 = vmatprep.mubr.f32.mxu0 0.0
  %2316 = vmatmul.mubr.f32.gmra.mrb[0].mxu0 %v2249
  %v2317 = vpop.f32.mrb[0].mxu0
  %v2318 = vadd.f32 %v303, %v2317
  %v2319 = vpop.f32.mrb[0].mxu0
  %2320 = vdwg.mxu0
  %v2321 = vxor.u32 %v2318, 2147483648
  %v2322 = vmul.f32 %v2321, 1.442695
  %v2323 = vpow.pop %v2322
  %v2324 = vadd.f32 %v2323, 1.0
  %v2325 = vrcp.pop %v2324
  %v2326 = vmul.f32 1.0, %v2325
  %v2327 = vsel %vm112, %v2326, %v2318
  %s2328 = scalar_lea.vmem %s6, 56
  %2329 = vst.msk [vmem:[%s2328] sm:$0xff] %vm392, %v2327
  %2331 = vrot.lane.b32.xlu0 %v2058, 96
  %v2332 = vpop.permute.xlu0 %2331
  %2333 = vrot.lane.b32.xlu0 %v2065, 96
  %v2334 = vpop.permute.xlu0 %2333
  %v2335 = vsel %vm397, %v2332, %v2334
  %2339 = vrot.lane.b32.xlu0 %v2244, 96
  %v2340 = vpop.permute.xlu0 %2339
  %v2342 = vsel %vm397, %v2334, %v2340
  %v2343 = vld [vmem:[%s3] sm:$0xff]
  %v2344 = vld [vmem:[%s3 + $0x8] sm:$0xff]
  %v2345 = vld [vmem:[%s3 + $0x10] sm:$0xff]
  %v2346 = vld [vmem:[%s3 + $0x18] sm:$0xff]
  %v2347 = vld [vmem:[%s3 + $0x20] sm:$0xff]
  %v2348 = vld [vmem:[%s3 + $0x28] sm:$0xff]
  %v2349 = vld [vmem:[%s3 + $0x30] sm:$0xff]
  %v2350 = vld [vmem:[%s3 + $0x38] sm:$0xff]
  %v2351 = vld [vmem:[%s3 + $0x40] sm:$0xff]
  %v2352 = vld [vmem:[%s3 + $0x48] sm:$0xff]
  %v2353 = vld [vmem:[%s3 + $0x50] sm:$0xff]
  %v2354 = vld [vmem:[%s3 + $0x58] sm:$0xff]
  %v2355 = vld [vmem:[%s3 + $0x60] sm:$0xff]
  %v2356 = vld [vmem:[%s3 + $0x68] sm:$0xff]
  %v2357 = vld [vmem:[%s3 + $0x70] sm:$0xff]
  %v2358 = vld [vmem:[%s3 + $0x78] sm:$0xff]
  %v2359 = vld [vmem:[%s3 + $0x80] sm:$0xff]
  %v2360 = vld [vmem:[%s3 + $0x88] sm:$0xff]
  %v2361 = vld [vmem:[%s3 + $0x90] sm:$0xff]
  %v2362 = vld [vmem:[%s3 + $0x98] sm:$0xff]
  %v2363 = vld [vmem:[%s3 + $0xa0] sm:$0xff]
  %v2364 = vld [vmem:[%s3 + $0xa8] sm:$0xff]
  %v2365 = vld [vmem:[%s3 + $0xb0] sm:$0xff]
  %v2366 = vld [vmem:[%s3 + $0xb8] sm:$0xff]
  %v2367 = vld [vmem:[%s3 + $0xc0] sm:$0xff]
  %v2368 = vld [vmem:[%s3 + $0xc8] sm:$0xff]
  %v2369 = vld [vmem:[%s3 + $0xd0] sm:$0xff]
  %v2370 = vld [vmem:[%s3 + $0xd8] sm:$0xff]
  %v2371 = vld [vmem:[%s3 + $0xe0] sm:$0xff]
  %v2372 = vld [vmem:[%s3 + $0xe8] sm:$0xff]
  %v2373 = vld [vmem:[%s3 + $0xf0] sm:$0xff]
  %v2374 = vld [vmem:[%s3 + $0xf8] sm:$0xff]
  %v2375 = vld [vmem:[%s3 + $0x100] sm:$0xff]
  %v2376 = vld [vmem:[%s3 + $0x108] sm:$0xff]
  %v2377 = vld [vmem:[%s3 + $0x110] sm:$0xff]
  %v2378 = vld [vmem:[%s3 + $0x118] sm:$0xff]
  %v2379 = vsel %vm153, %v2244, 0
  %2381 = vmatprep.subr.mxu0 0.0
  %2382 = vmatpush1.msra.mxu0 %v2343
  %2383 = vmatprep.subr.mxu0 0.0
  %2384 = vmatpush1.msra.mxu0 %v2344
  %2385 = vmatprep.subr.mxu0 0.0
  %2386 = vmatpush1.msra.mxu0 %v2345
  %2387 = vmatprep.subr.mxu0 0.0
  %2388 = vmatpush1.msra.mxu0 %v2346
  %2389 = vmatprep.subr.mxu0 0.0
  %2390 = vmatpush1.msra.mxu0 %v2347
  %2391 = vmatprep.subr.mxu0 0.0
  %2392 = vmatpush1.msra.mxu0 %v2348
  %2393 = vmatprep.subr.mxu0 0.0
  %2394 = vmatpush1.msra.mxu0 %v2349
  %2395 = vmatprep.subr.mxu0 0.0
  %2396 = vmatpush1.msra.mxu0 %v2350
  %2397 = vmatprep.subr.mxu0 0.0
  %2398 = vmatpush1.msra.mxu0 %v2351
  %2399 = vmatprep.subr.mxu0 0.0
  %2400 = vmatpush1.msra.mxu0 %v2352
  %2401 = vmatprep.subr.mxu0 0.0
  %2402 = vmatpush1.msra.mxu0 %v2353
  %2403 = vmatprep.subr.mxu0 0.0
  %2404 = vmatpush1.msra.mxu0 %v2354
  %2405 = vmatprep.subr.mxu0 0.0
  %2406 = vmatpush1.msra.mxu0 %v2355
  %2407 = vmatprep.subr.mxu0 0.0
  %2408 = vmatpush1.msra.mxu0 %v2356
  %2409 = vmatprep.subr.mxu0 0.0
  %2410 = vmatpush1.msra.mxu0 %v2357
  %2411 = vmatprep.subr.mxu0 0.0
  %2412 = vmatpush1.msra.mxu0 %v2358
  %2413 = vmatprep.subr.mxu0 0.0
  %2414 = vmatpush1.msra.mxu0 %v2359
  %2415 = vmatprep.subr.mxu0 0.0
  %2416 = vmatpush1.msra.mxu0 %v2360
  %2417 = vmatprep.subr.mxu0 0.0
  %2418 = vmatpush1.msra.mxu0 %v2361
  %2419 = vmatprep.subr.mxu0 0.0
  %2420 = vmatpush1.msra.mxu0 %v2362
  %2421 = vmatprep.subr.mxu0 0.0
  %2422 = vmatpush1.msra.mxu0 %v2363
  %2423 = vmatprep.subr.mxu0 0.0
  %2424 = vmatpush1.msra.mxu0 %v2364
  %2425 = vmatprep.subr.mxu0 0.0
  %2426 = vmatpush1.msra.mxu0 %v2365
  %2427 = vmatprep.subr.mxu0 0.0
  %2428 = vmatpush1.msra.mxu0 %v2366
  %2429 = vmatprep.subr.mxu0 0.0
  %2430 = vmatpush1.msra.mxu0 %v2367
  %2431 = vmatprep.subr.mxu0 0.0
  %2432 = vmatpush1.msra.mxu0 %v2368
  %2433 = vmatprep.subr.mxu0 0.0
  %2434 = vmatpush1.msra.mxu0 %v2369
  %2435 = vmatprep.subr.mxu0 0.0
  %2436 = vmatpush1.msra.mxu0 %v2370
  %2437 = vmatprep.subr.mxu0 0.0
  %2438 = vmatpush1.msra.mxu0 %v2371
  %2439 = vmatprep.subr.mxu0 0.0
  %2440 = vmatpush1.msra.mxu0 %v2372
  %2441 = vmatprep.subr.mxu0 0.0
  %2442 = vmatpush1.msra.mxu0 %v2373
  %2443 = vmatprep.subr.mxu0 0.0
  %2444 = vmatpush1.msra.mxu0 %v2374
  %2445 = vmatprep.mubr.f32.mxu0 %v2342
  %2446 = vmatmul.mubr.f32.gmra.mrb[0].mxu0 %v2335
  %v2447 = vpop.f32.mrb[0].mxu0
  %v2448 = vadd.f32 %v151, %v2447
  %v2449 = vpop.f32.mrb[0].mxu0
  %2450 = vdwg.mxu0
  %2451 = vmatprep.subr.mxu0 0.0
  %2452 = vmatpush1.msra.mxu0 %v2375
  %2453 = vmatprep.subr.mxu0 0.0
  %2454 = vmatpush1.msra.mxu0 %v2376
  %2455 = vmatprep.subr.mxu0 0.0
  %2456 = vmatpush1.msra.mxu0 %v2377
  %2457 = vmatprep.subr.mxu0 0.0
  %2458 = vmatpush1.msra.mxu0 %v2378
  %2459 = vmatprep.subr.mxu0 0.0
  %2460 = vmatpush1.msra.mxu0 0.0
  %2461 = vmatprep.subr.mxu0 0.0
  %2462 = vmatpush1.msra.mxu0 0.0
  %2463 = vmatprep.subr.mxu0 0.0
  %2464 = vmatpush1.msra.mxu0 0.0
  %2465 = vmatprep.subr.mxu0 0.0
  %2466 = vmatpush1.msra.mxu0 0.0
  %2467 = vmatprep.subr.mxu0 0.0
  %2468 = vmatpush1.msra.mxu0 0.0
  %2469 = vmatprep.subr.mxu0 0.0
  %2470 = vmatpush1.msra.mxu0 0.0
  %2471 = vmatprep.subr.mxu0 0.0
  %2472 = vmatpush1.msra.mxu0 0.0
  %2473 = vmatprep.subr.mxu0 0.0
  %2474 = vmatpush1.msra.mxu0 0.0
  %2475 = vmatprep.subr.mxu0 0.0
  %2476 = vmatpush1.msra.mxu0 0.0
  %2477 = vmatprep.subr.mxu0 0.0
  %2478 = vmatpush1.msra.mxu0 0.0
  %2479 = vmatprep.subr.mxu0 0.0
  %2480 = vmatpush1.msra.mxu0 0.0
  %2481 = vmatprep.subr.mxu0 0.0
  %2482 = vmatpush1.msra.mxu0 0.0
  %2483 = vmatprep.subr.mxu0 0.0
  %2484 = vmatpush1.msra.mxu0 0.0
  %2485 = vmatprep.subr.mxu0 0.0
  %2486 = vmatpush1.msra.mxu0 0.0
  %2487 = vmatprep.subr.mxu0 0.0
  %2488 = vmatpush1.msra.mxu0 0.0
  %2489 = vmatprep.subr.mxu0 0.0
  %2490 = vmatpush1.msra.mxu0 0.0
  %2491 = vmatprep.subr.mxu0 0.0
  %2492 = vmatpush1.msra.mxu0 0.0
  %2493 = vmatprep.subr.mxu0 0.0
  %2494 = vmatpush1.msra.mxu0 0.0
  %2495 = vmatprep.subr.mxu0 0.0
  %2496 = vmatpush1.msra.mxu0 0.0
  %2497 = vmatprep.subr.mxu0 0.0
  %2498 = vmatpush1.msra.mxu0 0.0
  %2499 = vmatprep.subr.mxu0 0.0
  %2500 = vmatpush1.msra.mxu0 0.0
  %2501 = vmatprep.subr.mxu0 0.0
  %2502 = vmatpush1.msra.mxu0 0.0
  %2503 = vmatprep.subr.mxu0 0.0
  %2504 = vmatpush1.msra.mxu0 0.0
  %2505 = vmatprep.subr.mxu0 0.0
  %2506 = vmatpush1.msra.mxu0 0.0
  %2507 = vmatprep.subr.mxu0 0.0
  %2508 = vmatpush1.msra.mxu0 0.0
  %2509 = vmatprep.subr.mxu0 0.0
  %2510 = vmatpush1.msra.mxu0 0.0
  %2511 = vmatprep.subr.mxu0 0.0
  %2512 = vmatpush1.msra.mxu0 0.0
  %2513 = vmatprep.subr.mxu0 0.0
  %2514 = vmatpush1.msra.mxu0 0.0
  %2515 = vmatprep.mubr.f32.mxu0 0.0
  %2516 = vmatmul.mubr.f32.gmra.mrb[0].mxu0 %v2379
  %v2517 = vpop.f32.mrb[0].mxu0
  %v2518 = vadd.f32 %v2448, %v2517
  %v2519 = vpop.f32.mrb[0].mxu0
  %2520 = vdwg.mxu0
  %v2521 = vmax.f32 %v2518, 0.0
  %v2522 = vtanh.pop %v2518
  %2524 = vrot.lane.b32.xlu0 %v2522, 96
  %v2525 = vpop.permute.xlu0 %2524
  %v2526 = vsel %vm308, %v2525, 0
  %2528 = vmatprep.subr.mxu0 0.0
  %2529 = vmatpush1.msra.mxu0 %v313
  %2530 = vmatprep.subr.mxu0 0.0
  %2531 = vmatpush1.msra.mxu0 0.0
  %2532 = vmatprep.subr.mxu0 0.0
  %2533 = vmatpush1.msra.mxu0 0.0
  %2534 = vmatprep.subr.mxu0 0.0
  %2535 = vmatpush1.msra.mxu0 0.0
  %2536 = vmatprep.subr.mxu0 0.0
  %2537 = vmatpush1.msra.mxu0 0.0
  %2538 = vmatprep.subr.mxu0 0.0
  %2539 = vmatpush1.msra.mxu0 0.0
  %2540 = vmatprep.subr.mxu0 0.0
  %2541 = vmatpush1.msra.mxu0 0.0
  %2542 = vmatprep.subr.mxu0 0.0
  %2543 = vmatpush1.msra.mxu0 0.0
  %2544 = vmatprep.subr.mxu0 0.0
  %2545 = vmatpush1.msra.mxu0 0.0
  %2546 = vmatprep.subr.mxu0 0.0
  %2547 = vmatpush1.msra.mxu0 0.0
  %2548 = vmatprep.subr.mxu0 0.0
  %2549 = vmatpush1.msra.mxu0 0.0
  %2550 = vmatprep.subr.mxu0 0.0
  %2551 = vmatpush1.msra.mxu0 0.0
  %2552 = vmatprep.subr.mxu0 0.0
  %2553 = vmatpush1.msra.mxu0 0.0
  %2554 = vmatprep.subr.mxu0 0.0
  %2555 = vmatpush1.msra.mxu0 0.0
  %2556 = vmatprep.subr.mxu0 0.0
  %2557 = vmatpush1.msra.mxu0 0.0
  %2558 = vmatprep.subr.mxu0 0.0
  %2559 = vmatpush1.msra.mxu0 0.0
  %2560 = vmatprep.subr.mxu0 0.0
  %2561 = vmatpush1.msra.mxu0 0.0
  %2562 = vmatprep.subr.mxu0 0.0
  %2563 = vmatpush1.msra.mxu0 0.0
  %2564 = vmatprep.subr.mxu0 0.0
  %2565 = vmatpush1.msra.mxu0 0.0
  %2566 = vmatprep.subr.mxu0 0.0
  %2567 = vmatpush1.msra.mxu0 0.0
  %2568 = vmatprep.subr.mxu0 0.0
  %2569 = vmatpush1.msra.mxu0 0.0
  %2570 = vmatprep.subr.mxu0 0.0
  %2571 = vmatpush1.msra.mxu0 0.0
  %2572 = vmatprep.subr.mxu0 0.0
  %2573 = vmatpush1.msra.mxu0 0.0
  %2574 = vmatprep.subr.mxu0 0.0
  %2575 = vmatpush1.msra.mxu0 0.0
  %2576 = vmatprep.subr.mxu0 0.0
  %2577 = vmatpush1.msra.mxu0 0.0
  %2578 = vmatprep.subr.mxu0 0.0
  %2579 = vmatpush1.msra.mxu0 0.0
  %2580 = vmatprep.subr.mxu0 0.0
  %2581 = vmatpush1.msra.mxu0 0.0
  %2582 = vmatprep.subr.mxu0 0.0
  %2583 = vmatpush1.msra.mxu0 0.0
  %2584 = vmatprep.subr.mxu0 0.0
  %2585 = vmatpush1.msra.mxu0 0.0
  %2586 = vmatprep.subr.mxu0 0.0
  %2587 = vmatpush1.msra.mxu0 0.0
  %2588 = vmatprep.subr.mxu0 0.0
  %2589 = vmatpush1.msra.mxu0 0.0
  %2590 = vmatprep.subr.mxu0 0.0
  %2591 = vmatpush1.msra.mxu0 0.0
  %2592 = vmatprep.mubr.f32.mxu0 0.0
  %2593 = vmatmul.mubr.f32.gmra.mrb[0].mxu0 %v2526
  %v2594 = vpop.f32.mrb[0].mxu0
  %v2595 = vadd.f32 %v303, %v2594
  %v2596 = vpop.f32.mrb[0].mxu0
  %2597 = vdwg.mxu0
  %v2598 = vxor.u32 %v2595, 2147483648
  %v2599 = vmul.f32 %v2598, 1.442695
  %v2600 = vpow.pop %v2599
  %v2601 = vadd.f32 %v2600, 1.0
  %v2602 = vrcp.pop %v2601
  %v2603 = vmul.f32 1.0, %v2602
  %v2604 = vsel %vm112, %v2603, %v2595
  %s2605 = scalar_lea.vmem %s6, 64
  %2606 = vst.msk [vmem:[%s2605] sm:$0xff] %vm392, %v2604
  %2608 = vrot.lane.b32.xlu0 %v2335, 96
  %v2609 = vpop.permute.xlu0 %2608
  %2610 = vrot.lane.b32.xlu0 %v2342, 96
  %v2611 = vpop.permute.xlu0 %2610
  %v2612 = vsel %vm397, %v2609, %v2611
  %2616 = vrot.lane.b32.xlu0 %v2521, 96
  %v2617 = vpop.permute.xlu0 %2616
  %v2619 = vsel %vm397, %v2611, %v2617
  %v2620 = vld [vmem:[%s3] sm:$0xff]
  %v2621 = vld [vmem:[%s3 + $0x8] sm:$0xff]
  %v2622 = vld [vmem:[%s3 + $0x10] sm:$0xff]
  %v2623 = vld [vmem:[%s3 + $0x18] sm:$0xff]
  %v2624 = vld [vmem:[%s3 + $0x20] sm:$0xff]
  %v2625 = vld [vmem:[%s3 + $0x28] sm:$0xff]
  %v2626 = vld [vmem:[%s3 + $0x30] sm:$0xff]
  %v2627 = vld [vmem:[%s3 + $0x38] sm:$0xff]
  %v2628 = vld [vmem:[%s3 + $0x40] sm:$0xff]
  %v2629 = vld [vmem:[%s3 + $0x48] sm:$0xff]
  %v2630 = vld [vmem:[%s3 + $0x50] sm:$0xff]
  %v2631 = vld [vmem:[%s3 + $0x58] sm:$0xff]
  %v2632 = vld [vmem:[%s3 + $0x60] sm:$0xff]
  %v2633 = vld [vmem:[%s3 + $0x68] sm:$0xff]
  %v2634 = vld [vmem:[%s3 + $0x70] sm:$0xff]
  %v2635 = vld [vmem:[%s3 + $0x78] sm:$0xff]
  %v2636 = vld [vmem:[%s3 + $0x80] sm:$0xff]
  %v2637 = vld [vmem:[%s3 + $0x88] sm:$0xff]
  %v2638 = vld [vmem:[%s3 + $0x90] sm:$0xff]
  %v2639 = vld [vmem:[%s3 + $0x98] sm:$0xff]
  %v2640 = vld [vmem:[%s3 + $0xa0] sm:$0xff]
  %v2641 = vld [vmem:[%s3 + $0xa8] sm:$0xff]
  %v2642 = vld [vmem:[%s3 + $0xb0] sm:$0xff]
  %v2643 = vld [vmem:[%s3 + $0xb8] sm:$0xff]
  %v2644 = vld [vmem:[%s3 + $0xc0] sm:$0xff]
  %v2645 = vld [vmem:[%s3 + $0xc8] sm:$0xff]
  %v2646 = vld [vmem:[%s3 + $0xd0] sm:$0xff]
  %v2647 = vld [vmem:[%s3 + $0xd8] sm:$0xff]
  %v2648 = vld [vmem:[%s3 + $0xe0] sm:$0xff]
  %v2649 = vld [vmem:[%s3 + $0xe8] sm:$0xff]
  %v2650 = vld [vmem:[%s3 + $0xf0] sm:$0xff]
  %v2651 = vld [vmem:[%s3 + $0xf8] sm:$0xff]
  %v2652 = vld [vmem:[%s3 + $0x100] sm:$0xff]
  %v2653 = vld [vmem:[%s3 + $0x108] sm:$0xff]
  %v2654 = vld [vmem:[%s3 + $0x110] sm:$0xff]
  %v2655 = vld [vmem:[%s3 + $0x118] sm:$0xff]
  %v2656 = vsel %vm153, %v2521, 0
  %2658 = vmatprep.subr.mxu0 0.0
  %2659 = vmatpush1.msra.mxu0 %v2620
  %2660 = vmatprep.subr.mxu0 0.0
  %2661 = vmatpush1.msra.mxu0 %v2621
  %2662 = vmatprep.subr.mxu0 0.0
  %2663 = vmatpush1.msra.mxu0 %v2622
  %2664 = vmatprep.subr.mxu0 0.0
  %2665 = vmatpush1.msra.mxu0 %v2623
  %2666 = vmatprep.subr.mxu0 0.0
  %2667 = vmatpush1.msra.mxu0 %v2624
  %2668 = vmatprep.subr.mxu0 0.0
  %2669 = vmatpush1.msra.mxu0 %v2625
  %2670 = vmatprep.subr.mxu0 0.0
  %2671 = vmatpush1.msra.mxu0 %v2626
  %2672 = vmatprep.subr.mxu0 0.0
  %2673 = vmatpush1.msra.mxu0 %v2627
  %2674 = vmatprep.subr.mxu0 0.0
  %2675 = vmatpush1.msra.mxu0 %v2628
  %2676 = vmatprep.subr.mxu0 0.0
  %2677 = vmatpush1.msra.mxu0 %v2629
  %2678 = vmatprep.subr.mxu0 0.0
  %2679 = vmatpush1.msra.mxu0 %v2630
  %2680 = vmatprep.subr.mxu0 0.0
  %2681 = vmatpush1.msra.mxu0 %v2631
  %2682 = vmatprep.subr.mxu0 0.0
  %2683 = vmatpush1.msra.mxu0 %v2632
  %2684 = vmatprep.subr.mxu0 0.0
  %2685 = vmatpush1.msra.mxu0 %v2633
  %2686 = vmatprep.subr.mxu0 0.0
  %2687 = vmatpush1.msra.mxu0 %v2634
  %2688 = vmatprep.subr.mxu0 0.0
  %2689 = vmatpush1.msra.mxu0 %v2635
  %2690 = vmatprep.subr.mxu0 0.0
  %2691 = vmatpush1.msra.mxu0 %v2636
  %2692 = vmatprep.subr.mxu0 0.0
  %2693 = vmatpush1.msra.mxu0 %v2637
  %2694 = vmatprep.subr.mxu0 0.0
  %2695 = vmatpush1.msra.mxu0 %v2638
  %2696 = vmatprep.subr.mxu0 0.0
  %2697 = vmatpush1.msra.mxu0 %v2639
  %2698 = vmatprep.subr.mxu0 0.0
  %2699 = vmatpush1.msra.mxu0 %v2640
  %2700 = vmatprep.subr.mxu0 0.0
  %2701 = vmatpush1.msra.mxu0 %v2641
  %2702 = vmatprep.subr.mxu0 0.0
  %2703 = vmatpush1.msra.mxu0 %v2642
  %2704 = vmatprep.subr.mxu0 0.0
  %2705 = vmatpush1.msra.mxu0 %v2643
  %2706 = vmatprep.subr.mxu0 0.0
  %2707 = vmatpush1.msra.mxu0 %v2644
  %2708 = vmatprep.subr.mxu0 0.0
  %2709 = vmatpush1.msra.mxu0 %v2645
  %2710 = vmatprep.subr.mxu0 0.0
  %2711 = vmatpush1.msra.mxu0 %v2646
  %2712 = vmatprep.subr.mxu0 0.0
  %2713 = vmatpush1.msra.mxu0 %v2647
  %2714 = vmatprep.subr.mxu0 0.0
  %2715 = vmatpush1.msra.mxu0 %v2648
  %2716 = vmatprep.subr.mxu0 0.0
  %2717 = vmatpush1.msra.mxu0 %v2649
  %2718 = vmatprep.subr.mxu0 0.0
  %2719 = vmatpush1.msra.mxu0 %v2650
  %2720 = vmatprep.subr.mxu0 0.0
  %2721 = vmatpush1.msra.mxu0 %v2651
  %2722 = vmatprep.mubr.f32.mxu0 %v2619
  %2723 = vmatmul.mubr.f32.gmra.mrb[0].mxu0 %v2612
  %v2724 = vpop.f32.mrb[0].mxu0
  %v2725 = vadd.f32 %v151, %v2724
  %v2726 = vpop.f32.mrb[0].mxu0
  %2727 = vdwg.mxu0
  %2728 = vmatprep.subr.mxu0 0.0
  %2729 = vmatpush1.msra.mxu0 %v2652
  %2730 = vmatprep.subr.mxu0 0.0
  %2731 = vmatpush1.msra.mxu0 %v2653
  %2732 = vmatprep.subr.mxu0 0.0
  %2733 = vmatpush1.msra.mxu0 %v2654
  %2734 = vmatprep.subr.mxu0 0.0
  %2735 = vmatpush1.msra.mxu0 %v2655
  %2736 = vmatprep.subr.mxu0 0.0
  %2737 = vmatpush1.msra.mxu0 0.0
  %2738 = vmatprep.subr.mxu0 0.0
  %2739 = vmatpush1.msra.mxu0 0.0
  %2740 = vmatprep.subr.mxu0 0.0
  %2741 = vmatpush1.msra.mxu0 0.0
  %2742 = vmatprep.subr.mxu0 0.0
  %2743 = vmatpush1.msra.mxu0 0.0
  %2744 = vmatprep.subr.mxu0 0.0
  %2745 = vmatpush1.msra.mxu0 0.0
  %2746 = vmatprep.subr.mxu0 0.0
  %2747 = vmatpush1.msra.mxu0 0.0
  %2748 = vmatprep.subr.mxu0 0.0
  %2749 = vmatpush1.msra.mxu0 0.0
  %2750 = vmatprep.subr.mxu0 0.0
  %2751 = vmatpush1.msra.mxu0 0.0
  %2752 = vmatprep.subr.mxu0 0.0
  %2753 = vmatpush1.msra.mxu0 0.0
  %2754 = vmatprep.subr.mxu0 0.0
  %2755 = vmatpush1.msra.mxu0 0.0
  %2756 = vmatprep.subr.mxu0 0.0
  %2757 = vmatpush1.msra.mxu0 0.0
  %2758 = vmatprep.subr.mxu0 0.0
  %2759 = vmatpush1.msra.mxu0 0.0
  %2760 = vmatprep.subr.mxu0 0.0
  %2761 = vmatpush1.msra.mxu0 0.0
  %2762 = vmatprep.subr.mxu0 0.0
  %2763 = vmatpush1.msra.mxu0 0.0
  %2764 = vmatprep.subr.mxu0 0.0
  %2765 = vmatpush1.msra.mxu0 0.0
  %2766 = vmatprep.subr.mxu0 0.0
  %2767 = vmatpush1.msra.mxu0 0.0
  %2768 = vmatprep.subr.mxu0 0.0
  %2769 = vmatpush1.msra.mxu0 0.0
  %2770 = vmatprep.subr.mxu0 0.0
  %2771 = vmatpush1.msra.mxu0 0.0
  %2772 = vmatprep.subr.mxu0 0.0
  %2773 = vmatpush1.msra.mxu0 0.0
  %2774 = vmatprep.subr.mxu0 0.0
  %2775 = vmatpush1.msra.mxu0 0.0
  %2776 = vmatprep.subr.mxu0 0.0
  %2777 = vmatpush1.msra.mxu0 0.0
  %2778 = vmatprep.subr.mxu0 0.0
  %2779 = vmatpush1.msra.mxu0 0.0
  %2780 = vmatprep.subr.mxu0 0.0
  %2781 = vmatpush1.msra.mxu0 0.0
  %2782 = vmatprep.subr.mxu0 0.0
  %2783 = vmatpush1.msra.mxu0 0.0
  %2784 = vmatprep.subr.mxu0 0.0
  %2785 = vmatpush1.msra.mxu0 0.0
  %2786 = vmatprep.subr.mxu0 0.0
  %2787 = vmatpush1.msra.mxu0 0.0
  %2788 = vmatprep.subr.mxu0 0.0
  %2789 = vmatpush1.msra.mxu0 0.0
  %2790 = vmatprep.subr.mxu0 0.0
  %2791 = vmatpush1.msra.mxu0 0.0
  %2792 = vmatprep.mubr.f32.mxu0 0.0
  %2793 = vmatmul.mubr.f32.gmra.mrb[0].mxu0 %v2656
  %v2794 = vpop.f32.mrb[0].mxu0
  %v2795 = vadd.f32 %v2725, %v2794
  %v2796 = vpop.f32.mrb[0].mxu0
  %2797 = vdwg.mxu0
  %v2798 = vtanh.pop %v2795
  %2800 = vrot.lane.b32.xlu0 %v2798, 96
  %v2801 = vpop.permute.xlu0 %2800
  %v2802 = vsel %vm308, %v2801, 0
  %2804 = vmatprep.subr.mxu0 0.0
  %2805 = vmatpush1.msra.mxu0 %v313
  %2806 = vmatprep.subr.mxu0 0.0
  %2807 = vmatpush1.msra.mxu0 0.0
  %2808 = vmatprep.subr.mxu0 0.0
  %2809 = vmatpush1.msra.mxu0 0.0
  %2810 = vmatprep.subr.mxu0 0.0
  %2811 = vmatpush1.msra.mxu0 0.0
  %2812 = vmatprep.subr.mxu0 0.0
  %2813 = vmatpush1.msra.mxu0 0.0
  %2814 = vmatprep.subr.mxu0 0.0
  %2815 = vmatpush1.msra.mxu0 0.0
  %2816 = vmatprep.subr.mxu0 0.0
  %2817 = vmatpush1.msra.mxu0 0.0
  %2818 = vmatprep.subr.mxu0 0.0
  %2819 = vmatpush1.msra.mxu0 0.0
  %2820 = vmatprep.subr.mxu0 0.0
  %2821 = vmatpush1.msra.mxu0 0.0
  %2822 = vmatprep.subr.mxu0 0.0
  %2823 = vmatpush1.msra.mxu0 0.0
  %2824 = vmatprep.subr.mxu0 0.0
  %2825 = vmatpush1.msra.mxu0 0.0
  %2826 = vmatprep.subr.mxu0 0.0
  %2827 = vmatpush1.msra.mxu0 0.0
  %2828 = vmatprep.subr.mxu0 0.0
  %2829 = vmatpush1.msra.mxu0 0.0
  %2830 = vmatprep.subr.mxu0 0.0
  %2831 = vmatpush1.msra.mxu0 0.0
  %2832 = vmatprep.subr.mxu0 0.0
  %2833 = vmatpush1.msra.mxu0 0.0
  %2834 = vmatprep.subr.mxu0 0.0
  %2835 = vmatpush1.msra.mxu0 0.0
  %2836 = vmatprep.subr.mxu0 0.0
  %2837 = vmatpush1.msra.mxu0 0.0
  %2838 = vmatprep.subr.mxu0 0.0
  %2839 = vmatpush1.msra.mxu0 0.0
  %2840 = vmatprep.subr.mxu0 0.0
  %2841 = vmatpush1.msra.mxu0 0.0
  %2842 = vmatprep.subr.mxu0 0.0
  %2843 = vmatpush1.msra.mxu0 0.0
  %2844 = vmatprep.subr.mxu0 0.0
  %2845 = vmatpush1.msra.mxu0 0.0
  %2846 = vmatprep.subr.mxu0 0.0
  %2847 = vmatpush1.msra.mxu0 0.0
  %2848 = vmatprep.subr.mxu0 0.0
  %2849 = vmatpush1.msra.mxu0 0.0
  %2850 = vmatprep.subr.mxu0 0.0
  %2851 = vmatpush1.msra.mxu0 0.0
  %2852 = vmatprep.subr.mxu0 0.0
  %2853 = vmatpush1.msra.mxu0 0.0
  %2854 = vmatprep.subr.mxu0 0.0
  %2855 = vmatpush1.msra.mxu0 0.0
  %2856 = vmatprep.subr.mxu0 0.0
  %2857 = vmatpush1.msra.mxu0 0.0
  %2858 = vmatprep.subr.mxu0 0.0
  %2859 = vmatpush1.msra.mxu0 0.0
  %2860 = vmatprep.subr.mxu0 0.0
  %2861 = vmatpush1.msra.mxu0 0.0
  %2862 = vmatprep.subr.mxu0 0.0
  %2863 = vmatpush1.msra.mxu0 0.0
  %2864 = vmatprep.subr.mxu0 0.0
  %2865 = vmatpush1.msra.mxu0 0.0
  %2866 = vmatprep.subr.mxu0 0.0
  %2867 = vmatpush1.msra.mxu0 0.0
  %2868 = vmatprep.mubr.f32.mxu0 0.0
  %2869 = vmatmul.mubr.f32.gmra.mrb[0].mxu0 %v2802
  %v2870 = vpop.f32.mrb[0].mxu0
  %v2871 = vadd.f32 %v303, %v2870
  %v2872 = vpop.f32.mrb[0].mxu0
  %2873 = vdwg.mxu0
  %v2874 = vxor.u32 %v2871, 2147483648
  %v2875 = vmul.f32 %v2874, 1.442695
  %v2876 = vpow.pop %v2875
  %v2877 = vadd.f32 %v2876, 1.0
  %v2878 = vrcp.pop %v2877
  %v2879 = vmul.f32 1.0, %v2878
  %v2880 = vsel %vm112, %v2879, %v2871
  %s2881 = scalar_lea.vmem %s6, 72
  %2882 = vst.msk [vmem:[%s2881] sm:$0xff] %vm392, %v2880
  // Predicated region
  $region26: #{tpu_custom_call.1} parent=0 // pred_check
    _
  $region27: #{tpu_custom_call.1} parent=0 // pred_check_branch
    %2884 = sbr.rel (0) target = $region29
  $region28: #{tpu_custom_call.1} parent=0 // pred_region
    _
  $region29: #{tpu_custom_call.1} parent=0 // pred_fallthru
    _
  // Predicated region
  $region30: #{tpu_custom_call.1} parent=0 // pred_check
    _
  $region31: #{tpu_custom_call.1} parent=0 // pred_check_branch
    %2886 = sbr.rel (0) target = $region33
  $region32: #{tpu_custom_call.1} parent=0 // pred_region
    _
  $region33: #{tpu_custom_call.1} parent=0 // pred_fallthru
    _

</llo_original>
